<compile_context>
chip_gen: v7x
topology: tpu7x:2x2x1
jax: 0.10.0
libtpu: 0.0.40
codegen_flags: <defaults>
</compile_context>

<pallas_src>
import functools

import jax
import jax.numpy as jnp
from jax.experimental import pallas as pl
from jax.experimental.pallas import tpu as pltpu


def _context_kernel(x_ref, wkv_ref, wout_ref, cw_ref, m_ref, z_ref, acc_ref,
                    *, heads, dim_head, compute_dtype):
    """Phase A: online-softmax context accumulation + output-weight fold.

    x_ref   : [1, C, tile_n]   one batch element, one spatial tile (N on lanes)
    wkv_ref : [2*hid, C]       k/v rows of the to_qkv 1x1 weight
    wout_ref: [C, hid]         to_out 1x1 weight ([Cout, Cin])
    cw_ref  : [1, C, hid]      per-batch fused Wout∘context, written last tile
    m_ref   : [hid, 1]  f32    running max per (head, d)
    z_ref   : [hid, 1]  f32    running softmax denominator per (head, d)
    acc_ref : [hid, dh] f32    un-normalized context, rows = (head, d)
    """
    dh = dim_head
    hid = heads * dh
    j = pl.program_id(1)

    @pl.when(j == 0)
    def _init():
        m_ref[...] = jnp.full_like(m_ref, -jnp.inf)
        z_ref[...] = jnp.zeros_like(z_ref)
        acc_ref[...] = jnp.zeros_like(acc_ref)

    x = x_ref[0]                                                     # [C, tn]
    # Fused k/v projection for all heads: one MXU dot (contraction over C).
    kv = jnp.dot(wkv_ref[...], x,
                 preferred_element_type=jnp.float32)                 # [2*hid, tn] f32

    for h in range(heads):                                           # static unroll
        r0, r1 = h * dh, (h + 1) * dh
        k = kv[r0:r1, :]                                             # [dh, tn]
        v = kv[hid + r0:hid + r1, :]                                 # [dh, tn]

        # online softmax over the spatial (lane) axis — f32 bookkeeping
        m_old = m_ref[r0:r1, :]                                      # [dh, 1]
        m_new = jnp.maximum(m_old, jnp.max(k, axis=1, keepdims=True))
        alpha = jnp.exp(m_old - m_new)                               # [dh, 1]
        ek = jnp.exp(k - m_new)                                      # [dh, tn]
        z_ref[r0:r1, :] = alpha * z_ref[r0:r1, :] + jnp.sum(ek, axis=1, keepdims=True)
        # A[d, e] += sum_n ek[d, n] * v[e, n]   (bf16 operands, f32 accumulate)
        pk = jax.lax.dot_general(
            ek.astype(compute_dtype), v.astype(compute_dtype),
            (((1,), (1,)), ((), ())),
            preferred_element_type=jnp.float32)                      # [dh, dh]
        acc_ref[r0:r1, :] = alpha * acc_ref[r0:r1, :] + pk
        m_ref[r0:r1, :] = m_new

    @pl.when(j == pl.num_programs(1) - 1)
    def _finalize():
        for h in range(heads):
            r0, r1 = h * dh, (h + 1) * dh
            # Normalize AFTER the context dot: dh reciprocals + dh*dh multiplies
            # instead of N*dh elementwise divides.
            ctx = acc_ref[r0:r1, :] * pl.reciprocal(z_ref[r0:r1, :], approx=False)
            # Fold the output projection per head:
            #   CW_h[c, d] = sum_e Wout[c, h*dh+e] * ctx[d, e]
            cw_h = jax.lax.dot_general(
                wout_ref[:, r0:r1], ctx.astype(compute_dtype),
                (((1,), (1,)), ((), ())),
                preferred_element_type=jnp.float32)                  # [C, dh]
            cw_ref[0, :, r0:r1] = cw_h.astype(cw_ref.dtype)


def _output_kernel(x_ref, wq_ref, cw_ref, b_ref, o_ref, *, compute_dtype):
    """Phase B: per spatial tile, q projection + fused attention-out / to_out.

    x_ref : [1, C, tile_n];  wq_ref: [hid, C];  cw_ref: [1, C, hid]
    b_ref : [C, 1] f32;      o_ref : [1, C, tile_n]
    """
    x = x_ref[0]                                                     # [C, tn]
    q = jnp.dot(wq_ref[...], x, preferred_element_type=jnp.float32)  # [hid, tn]
    y = jnp.dot(cw_ref[0], q.astype(compute_dtype),
                preferred_element_type=jnp.float32)                  # [C, tn]
    o_ref[0] = (y + b_ref[...]).astype(o_ref.dtype)


def linear_attention(x, wqkv, wout, bout, *, heads, dim_head,
                     compute_dtype=jnp.bfloat16, tile_n=None):
    """x: [B, C, H, W]; wqkv: [3*heads*dim_head, C] (Conv2d [Cout, Cin]);
    wout: [C, heads*dim_head]; bout: [C]  ->  [B, C, H, W].

    Note: head slices assume dim_head is a multiple of 128 (module default) for
    aligned sublane/lane slicing; other values stay correct but force relayouts.
    """
    B, C, H, W = x.shape
    N = H * W
    hid = heads * dim_head
    assert wqkv.shape == (3 * hid, C) and wout.shape == (C, hid) and bout.shape == (C,)

    if tile_n is None:   # largest lane-aligned tile that divides N
        tile_n = next((t for t in (512, 256, 128) if N % t == 0), N)
    assert N % tile_n == 0, (N, tile_n)
    n_tiles = N // tile_n

    # NCHW -> [B, C, N] is a pure reshape: no transposes, no channel padding.
    x_cn = x.reshape(B, C, N).astype(compute_dtype)
    wq = wqkv[:hid].astype(compute_dtype)                 # q rows     [hid, C]
    wkv = wqkv[hid:].astype(compute_dtype)                # k,v rows   [2*hid, C]
    wout_c = wout.astype(compute_dtype)                   # [C, hid]
    bias = bout.reshape(C, 1).astype(jnp.float32)

    # ---- Phase A: per-batch fused (Wout ∘ context) via online softmax ----
    ctx_kern = functools.partial(_context_kernel, heads=heads,
                                 dim_head=dim_head, compute_dtype=compute_dtype)
    cw = pl.pallas_call(
        ctx_kern,
        out_shape=jax.ShapeDtypeStruct((B, C, hid), compute_dtype),
        grid_spec=pltpu.PrefetchScalarGridSpec(
            num_scalar_prefetch=0,
            grid=(B, n_tiles),
            in_specs=[
                pl.BlockSpec((1, C, tile_n), lambda b, j: (b, 0, j)),   # x tile
                pl.BlockSpec((2 * hid, C), lambda b, j: (0, 0)),        # Wkv
                pl.BlockSpec((C, hid), lambda b, j: (0, 0)),            # Wout
            ],
            out_specs=pl.BlockSpec((1, C, hid), lambda b, j: (b, 0, 0)),
            scratch_shapes=[
                pltpu.VMEM((hid, 1), jnp.float32),          # running max
                pltpu.VMEM((hid, 1), jnp.float32),          # running denominator
                pltpu.VMEM((hid, dim_head), jnp.float32),   # un-normalized context
            ]),
        compiler_params=pltpu.CompilerParams(
            dimension_semantics=("parallel", "arbitrary")),
    )(x_cn, wkv, wout_c)

    # ---- Phase B: per spatial tile, q projection + single fused output dot ----
    out_kern = functools.partial(_output_kernel, compute_dtype=compute_dtype)
    out = pl.pallas_call(
        out_kern,
        out_shape=jax.ShapeDtypeStruct((B, C, N), x.dtype),
        grid_spec=pltpu.PrefetchScalarGridSpec(
            num_scalar_prefetch=0,
            grid=(B, n_tiles),
            in_specs=[
                pl.BlockSpec((1, C, tile_n), lambda b, i: (b, 0, i)),   # x tile
                pl.BlockSpec((hid, C), lambda b, i: (0, 0)),            # Wq
                pl.BlockSpec((1, C, hid), lambda b, i: (b, 0, 0)),      # fused CW
                pl.BlockSpec((C, 1), lambda b, i: (0, 0)),              # bias
            ],
            out_specs=pl.BlockSpec((1, C, tile_n), lambda b, i: (b, 0, i)),
        ),
        compiler_params=pltpu.CompilerParams(
            dimension_semantics=("parallel", "parallel")),   # fills both v7x TCs
    )(x_cn, wq, cw, bias)

    return out.reshape(B, C, H, W)


def _reference(x, wqkv, wout, bout, *, heads, dim_head):
    """Plain-JAX replica of the PyTorch forward (sanity check)."""
    B, C, H, W = x.shape
    N = H * W
    hi = jax.lax.Precision.HIGHEST
    qkv = jnp.einsum('bchw,oc->bohw', x, wqkv, precision=hi)       # 1x1 conv, no bias
    qkv = qkv.reshape(B, 3, heads, dim_head, N)                    # (qkv, heads, c)
    q, k, v = qkv[:, 0], qkv[:, 1], qkv[:, 2]                      # [B, heads, dh, N]
    k = jax.nn.softmax(k, axis=-1)
    context = jnp.einsum('bhdn,bhen->bhde', k, v, precision=hi)
    out = jnp.einsum('bhde,bhdn->bhen', context, q, precision=hi)
    out = out.reshape(B, heads * dim_head, H, W)
    y = jnp.einsum('bohw,co->bchw', out, wout, precision=hi)
    return y + bout[None, :, None, None]


if __name__ == "__main__":
    B, DIM, Hs, Ws = 2, 32, 16, 16          # N = 256 -> two 128-wide spatial tiles
    HEADS, DIM_HEAD = 4, 128                # module defaults
    HID = HEADS * DIM_HEAD

    key = jax.random.PRNGKey(0)
    k0, k1, k2, k3 = jax.random.split(key, 4)
    x = jax.random.normal(k0, (B, DIM, Hs, Ws), jnp.float32)
    # PyTorch-native Conv2d 1x1 weight layouts ([Cout, Cin]):
    wqkv = (0.05 * jax.random.normal(k1, (3 * HID, DIM))).astype(jnp.float32)
    wout = (0.05 * jax.random.normal(k2, (DIM, HID))).astype(jnp.float32)
    bout = (0.05 * jax.random.normal(k3, (DIM,))).astype(jnp.float32)

    ref = _reference(x, wqkv, wout, bout, heads=HEADS, dim_head=DIM_HEAD)

    # f32 path: tight check of the tiled online-softmax / fused-projection math.
    out_f32 = linear_attention(x, wqkv, wout, bout, heads=HEADS,
                               dim_head=DIM_HEAD, compute_dtype=jnp.float32,
                               tile_n=128)
    out_f32 = jax.block_until_ready(out_f32)
    assert out_f32.shape == (B, DIM, Hs, Ws), out_f32.shape
    assert jnp.all(jnp.isfinite(out_f32))
    err_f32 = float(jnp.max(jnp.abs(out_f32 - ref)))
    assert err_f32 < 2e-3, err_f32

    # bf16 MXU path (production default): tolerance reflects bf16 rounding only.
    out_bf16 = linear_attention(x, wqkv, wout, bout, heads=HEADS,
                                dim_head=DIM_HEAD, compute_dtype=jnp.bfloat16,
                                tile_n=128)
    out_bf16 = jax.block_until_ready(out_bf16)
    assert jnp.all(jnp.isfinite(out_bf16))
    err_bf16 = float(jnp.max(jnp.abs(out_bf16 - ref)))
    assert err_bf16 < 1e-1, err_bf16

    print("KERNEL_OK")
</pallas_src>

<mosaic_0001>
module attributes {stable_mosaic.version = 11 : i64} {
  func.func @_context_kernel(%arg0: i32, %arg1: i32, %arg2: memref<1x32x128xf32, #tpu.memory_space<vmem>>, %arg3: memref<1024x32xf32, #tpu.memory_space<vmem>>, %arg4: memref<32x512xf32, #tpu.memory_space<vmem>>, %arg5: memref<1x32x512xf32, #tpu.memory_space<vmem>>, %arg6: memref<512x1xf32, #tpu.memory_space<vmem>>, %arg7: memref<512x1xf32, #tpu.memory_space<vmem>>, %arg8: memref<512x128xf32, #tpu.memory_space<vmem>>) attributes {dimension_semantics = [#tpu.dimension_semantics<parallel>, #tpu.dimension_semantics<arbitrary>], iteration_bounds = array<i64: 2, 2>, scalar_prefetch = 0 : i64, scratch_operands = 3 : i64, tpu.core_type = #tpu.core_type<tc>, window_params = [{transform_indices = @transform_0, window_bounds = array<i64: 1, 32, 128>}, {pipeline_mode = #tpu.pipeline_mode<synchronous>, transform_indices = @transform_1, window_bounds = array<i64: 1024, 32>}, {pipeline_mode = #tpu.pipeline_mode<synchronous>, transform_indices = @transform_2, window_bounds = array<i64: 32, 512>}, {transform_indices = @transform_3, window_bounds = array<i64: 1, 32, 512>}]} {
    %c0_i32 = arith.constant 0 : i32
    %0 = arith.cmpi eq, %arg1, %c0_i32 : i32
    %1 = arith.extui %0 : i1 to i32
    %c0_i32_0 = arith.constant 0 : i32
    %2 = arith.cmpi ne, %1, %c0_i32_0 : i32
    scf.if %2 {
      %cst_63 = arith.constant 0xFF800000 : f32
      %106 = vector.broadcast %cst_63 : f32 to vector<512x1xf32>
      %c0_64 = arith.constant 0 : index
      %c0_65 = arith.constant 0 : index
      %107 = vector.load %arg6[%c0_64, %c0_65] : memref<512x1xf32, #tpu.memory_space<vmem>>, vector<512x1xf32>
      tpu.vector_store %arg6[%c0_64, %c0_65], %106 {strides = array<i32>} : memref<512x1xf32, #tpu.memory_space<vmem>>, vector<512x1xf32>,
      %cst_66 = arith.constant 0.000000e+00 : f32
      %108 = vector.broadcast %cst_66 : f32 to vector<512x1xf32>
      %c0_67 = arith.constant 0 : index
      %c0_68 = arith.constant 0 : index
      %109 = vector.load %arg7[%c0_67, %c0_68] : memref<512x1xf32, #tpu.memory_space<vmem>>, vector<512x1xf32>
      tpu.vector_store %arg7[%c0_67, %c0_68], %108 {strides = array<i32>} : memref<512x1xf32, #tpu.memory_space<vmem>>, vector<512x1xf32>,
      %cst_69 = arith.constant 0.000000e+00 : f32
      %110 = vector.broadcast %cst_69 : f32 to vector<512x128xf32>
      %c0_70 = arith.constant 0 : index
      %c0_71 = arith.constant 0 : index
      %111 = vector.load %arg8[%c0_70, %c0_71] : memref<512x128xf32, #tpu.memory_space<vmem>>, vector<512x128xf32>
      tpu.vector_store %arg8[%c0_70, %c0_71], %110 {strides = array<i32>} : memref<512x128xf32, #tpu.memory_space<vmem>>, vector<512x128xf32>,
    } else {
    }
    %c0 = arith.constant 0 : index
    %c0_1 = arith.constant 0 : index
    %c0_2 = arith.constant 0 : index
    %3 = vector.load %arg2[%c0, %c0_1, %c0_2] : memref<1x32x128xf32, #tpu.memory_space<vmem>>, vector<1x32x128xf32>
    %4 = vector.shape_cast %3 : vector<1x32x128xf32> to vector<32x128xf32>
    %c0_3 = arith.constant 0 : index
    %c0_4 = arith.constant 0 : index
    %5 = vector.load %arg3[%c0_3, %c0_4] : memref<1024x32xf32, #tpu.memory_space<vmem>>, vector<1024x32xf32>
    %cst = arith.constant dense<0.000000e+00> : vector<1024x128xf32>
    %6 = tpu.matmul %5, %4, %cst {dimension_numbers = #tpu.dot_dimension_numbers<[1], [0], [0], [1], [0, 0, 1, 1], [], []>} : vector<1024x32xf32>, vector<32x128xf32>, vector<1024x128xf32> -> vector<1024x128xf32>
    %7 = vector.extract_strided_slice %6 {offsets = [0, 0], sizes = [128, 128], strides = [1, 1]} : vector<1024x128xf32> to vector<128x128xf32>
    %8 = vector.extract_strided_slice %6 {offsets = [512, 0], sizes = [128, 128], strides = [1, 1]} : vector<1024x128xf32> to vector<128x128xf32>
    %c0_5 = arith.constant 0 : index
    %c0_6 = arith.constant 0 : index
    %9 = vector.load %arg6[%c0_5, %c0_6] : memref<512x1xf32, #tpu.memory_space<vmem>>, vector<128x1xf32>
    %cst_7 = arith.constant dense<0xFF800000> : vector<128xf32>
    %10 = vector.multi_reduction <maximumf>, %7, %cst_7 [1] : vector<128x128xf32> to vector<128xf32>
    %11 = vector.shape_cast %10 : vector<128xf32> to vector<128x1xf32>
    %12 = arith.maximumf %9, %11 : vector<128x1xf32>
    %13 = arith.subf %9, %12 : vector<128x1xf32>
    %14 = math.exp %13 : vector<128x1xf32>
    %15 = vector.broadcast %12 : vector<128x1xf32> to vector<128x128xf32>
    %16 = arith.subf %7, %15 : vector<128x128xf32>
    %17 = math.exp %16 : vector<128x128xf32>
    %c0_8 = arith.constant 0 : index
    %c0_9 = arith.constant 0 : index
    %18 = vector.load %arg7[%c0_8, %c0_9] : memref<512x1xf32, #tpu.memory_space<vmem>>, vector<128x1xf32>
    %19 = arith.mulf %14, %18 : vector<128x1xf32>
    %cst_10 = arith.constant dense<0.000000e+00> : vector<128xf32>
    %20 = vector.multi_reduction <add>, %17, %cst_10 [1] : vector<128x128xf32> to vector<128xf32>
    %21 = vector.shape_cast %20 : vector<128xf32> to vector<128x1xf32>
    %22 = arith.addf %19, %21 : vector<128x1xf32>
    %c0_11 = arith.constant 0 : index
    %c0_12 = arith.constant 0 : index
    %23 = vector.load %arg7[%c0_11, %c0_12] : memref<512x1xf32, #tpu.memory_space<vmem>>, vector<128x1xf32>
    tpu.vector_store %arg7[%c0_11, %c0_12], %22 {strides = array<i32>} : memref<512x1xf32, #tpu.memory_space<vmem>>, vector<128x1xf32>,
    %cst_13 = arith.constant dense<0.000000e+00> : vector<128x128xf32>
    %24 = tpu.matmul %17, %8, %cst_13 {dimension_numbers = #tpu.dot_dimension_numbers<[1], [1], [0], [0], [0, 0, 1, 0], [], []>} : vector<128x128xf32>, vector<128x128xf32>, vector<128x128xf32> -> vector<128x128xf32>
    %c0_14 = arith.constant 0 : index
    %c0_15 = arith.constant 0 : index
    %25 = vector.load %arg8[%c0_14, %c0_15] : memref<512x128xf32, #tpu.memory_space<vmem>>, vector<128x128xf32>
    %26 = vector.broadcast %14 : vector<128x1xf32> to vector<128x128xf32>
    %27 = arith.mulf %26, %25 : vector<128x128xf32>
    %28 = arith.addf %27, %24 : vector<128x128xf32>
    %c0_16 = arith.constant 0 : index
    %c0_17 = arith.constant 0 : index
    %29 = vector.load %arg8[%c0_16, %c0_17] : memref<512x128xf32, #tpu.memory_space<vmem>>, vector<128x128xf32>
    tpu.vector_store %arg8[%c0_16, %c0_17], %28 {strides = array<i32>} : memref<512x128xf32, #tpu.memory_space<vmem>>, vector<128x128xf32>,
    %c0_18 = arith.constant 0 : index
    %c0_19 = arith.constant 0 : index
    %30 = vector.load %arg6[%c0_18, %c0_19] : memref<512x1xf32, #tpu.memory_space<vmem>>, vector<128x1xf32>
    tpu.vector_store %arg6[%c0_18, %c0_19], %12 {strides = array<i32>} : memref<512x1xf32, #tpu.memory_space<vmem>>, vector<128x1xf32>,
    %31 = vector.extract_strided_slice %6 {offsets = [128, 0], sizes = [128, 128], strides = [1, 1]} : vector<1024x128xf32> to vector<128x128xf32>
    %32 = vector.extract_strided_slice %6 {offsets = [640, 0], sizes = [128, 128], strides = [1, 1]} : vector<1024x128xf32> to vector<128x128xf32>
    %c128 = arith.constant 128 : index
    %c0_20 = arith.constant 0 : index
    %33 = vector.load %arg6[%c128, %c0_20] : memref<512x1xf32, #tpu.memory_space<vmem>>, vector<128x1xf32>
    %cst_21 = arith.constant dense<0xFF800000> : vector<128xf32>
    %34 = vector.multi_reduction <maximumf>, %31, %cst_21 [1] : vector<128x128xf32> to vector<128xf32>
    %35 = vector.shape_cast %34 : vector<128xf32> to vector<128x1xf32>
    %36 = arith.maximumf %33, %35 : vector<128x1xf32>
    %37 = arith.subf %33, %36 : vector<128x1xf32>
    %38 = math.exp %37 : vector<128x1xf32>
    %39 = vector.broadcast %36 : vector<128x1xf32> to vector<128x128xf32>
    %40 = arith.subf %31, %39 : vector<128x128xf32>
    %41 = math.exp %40 : vector<128x128xf32>
    %c128_22 = arith.constant 128 : index
    %c0_23 = arith.constant 0 : index
    %42 = vector.load %arg7[%c128_22, %c0_23] : memref<512x1xf32, #tpu.memory_space<vmem>>, vector<128x1xf32>
    %43 = arith.mulf %38, %42 : vector<128x1xf32>
    %cst_24 = arith.constant dense<0.000000e+00> : vector<128xf32>
    %44 = vector.multi_reduction <add>, %41, %cst_24 [1] : vector<128x128xf32> to vector<128xf32>
    %45 = vector.shape_cast %44 : vector<128xf32> to vector<128x1xf32>
    %46 = arith.addf %43, %45 : vector<128x1xf32>
    %c128_25 = arith.constant 128 : index
    %c0_26 = arith.constant 0 : index
    %47 = vector.load %arg7[%c128_25, %c0_26] : memref<512x1xf32, #tpu.memory_space<vmem>>, vector<128x1xf32>
    tpu.vector_store %arg7[%c128_25, %c0_26], %46 {strides = array<i32>} : memref<512x1xf32, #tpu.memory_space<vmem>>, vector<128x1xf32>,
    %cst_27 = arith.constant dense<0.000000e+00> : vector<128x128xf32>
    %48 = tpu.matmul %41, %32, %cst_27 {dimension_numbers = #tpu.dot_dimension_numbers<[1], [1], [0], [0], [0, 0, 1, 0], [], []>} : vector<128x128xf32>, vector<128x128xf32>, vector<128x128xf32> -> vector<128x128xf32>
    %c128_28 = arith.constant 128 : index
    %c0_29 = arith.constant 0 : index
    %49 = vector.load %arg8[%c128_28, %c0_29] : memref<512x128xf32, #tpu.memory_space<vmem>>, vector<128x128xf32>
    %50 = vector.broadcast %38 : vector<128x1xf32> to vector<128x128xf32>
    %51 = arith.mulf %50, %49 : vector<128x128xf32>
    %52 = arith.addf %51, %48 : vector<128x128xf32>
    %c128_30 = arith.constant 128 : index
    %c0_31 = arith.constant 0 : index
    %53 = vector.load %arg8[%c128_30, %c0_31] : memref<512x128xf32, #tpu.memory_space<vmem>>, vector<128x128xf32>
    tpu.vector_store %arg8[%c128_30, %c0_31], %52 {strides = array<i32>} : memref<512x128xf32, #tpu.memory_space<vmem>>, vector<128x128xf32>,
    %c128_32 = arith.constant 128 : index
    %c0_33 = arith.constant 0 : index
    %54 = vector.load %arg6[%c128_32, %c0_33] : memref<512x1xf32, #tpu.memory_space<vmem>>, vector<128x1xf32>
    tpu.vector_store %arg6[%c128_32, %c0_33], %36 {strides = array<i32>} : memref<512x1xf32, #tpu.memory_space<vmem>>, vector<128x1xf32>,
    %55 = vector.extract_strided_slice %6 {offsets = [256, 0], sizes = [128, 128], strides = [1, 1]} : vector<1024x128xf32> to vector<128x128xf32>
    %56 = vector.extract_strided_slice %6 {offsets = [768, 0], sizes = [128, 128], strides = [1, 1]} : vector<1024x128xf32> to vector<128x128xf32>
    %c256 = arith.constant 256 : index
    %c0_34 = arith.constant 0 : index
    %57 = vector.load %arg6[%c256, %c0_34] : memref<512x1xf32, #tpu.memory_space<vmem>>, vector<128x1xf32>
    %cst_35 = arith.constant dense<0xFF800000> : vector<128xf32>
    %58 = vector.multi_reduction <maximumf>, %55, %cst_35 [1] : vector<128x128xf32> to vector<128xf32>
    %59 = vector.shape_cast %58 : vector<128xf32> to vector<128x1xf32>
    %60 = arith.maximumf %57, %59 : vector<128x1xf32>
    %61 = arith.subf %57, %60 : vector<128x1xf32>
    %62 = math.exp %61 : vector<128x1xf32>
    %63 = vector.broadcast %60 : vector<128x1xf32> to vector<128x128xf32>
    %64 = arith.subf %55, %63 : vector<128x128xf32>
    %65 = math.exp %64 : vector<128x128xf32>
    %c256_36 = arith.constant 256 : index
    %c0_37 = arith.constant 0 : index
    %66 = vector.load %arg7[%c256_36, %c0_37] : memref<512x1xf32, #tpu.memory_space<vmem>>, vector<128x1xf32>
    %67 = arith.mulf %62, %66 : vector<128x1xf32>
    %cst_38 = arith.constant dense<0.000000e+00> : vector<128xf32>
    %68 = vector.multi_reduction <add>, %65, %cst_38 [1] : vector<128x128xf32> to vector<128xf32>
    %69 = vector.shape_cast %68 : vector<128xf32> to vector<128x1xf32>
    %70 = arith.addf %67, %69 : vector<128x1xf32>
    %c256_39 = arith.constant 256 : index
    %c0_40 = arith.constant 0 : index
    %71 = vector.load %arg7[%c256_39, %c0_40] : memref<512x1xf32, #tpu.memory_space<vmem>>, vector<128x1xf32>
    tpu.vector_store %arg7[%c256_39, %c0_40], %70 {strides = array<i32>} : memref<512x1xf32, #tpu.memory_space<vmem>>, vector<128x1xf32>,
    %cst_41 = arith.constant dense<0.000000e+00> : vector<128x128xf32>
    %72 = tpu.matmul %65, %56, %cst_41 {dimension_numbers = #tpu.dot_dimension_numbers<[1], [1], [0], [0], [0, 0, 1, 0], [], []>} : vector<128x128xf32>, vector<128x128xf32>, vector<128x128xf32> -> vector<128x128xf32>
    %c256_42 = arith.constant 256 : index
    %c0_43 = arith.constant 0 : index
    %73 = vector.load %arg8[%c256_42, %c0_43] : memref<512x128xf32, #tpu.memory_space<vmem>>, vector<128x128xf32>
    %74 = vector.broadcast %62 : vector<128x1xf32> to vector<128x128xf32>
    %75 = arith.mulf %74, %73 : vector<128x128xf32>
    %76 = arith.addf %75, %72 : vector<128x128xf32>
    %c256_44 = arith.constant 256 : index
    %c0_45 = arith.constant 0 : index
    %77 = vector.load %arg8[%c256_44, %c0_45] : memref<512x128xf32, #tpu.memory_space<vmem>>, vector<128x128xf32>
    tpu.vector_store %arg8[%c256_44, %c0_45], %76 {strides = array<i32>} : memref<512x128xf32, #tpu.memory_space<vmem>>, vector<128x128xf32>,
    %c256_46 = arith.constant 256 : index
    %c0_47 = arith.constant 0 : index
    %78 = vector.load %arg6[%c256_46, %c0_47] : memref<512x1xf32, #tpu.memory_space<vmem>>, vector<128x1xf32>
    tpu.vector_store %arg6[%c256_46, %c0_47], %60 {strides = array<i32>} : memref<512x1xf32, #tpu.memory_space<vmem>>, vector<128x1xf32>,
    %79 = vector.extract_strided_slice %6 {offsets = [384, 0], sizes = [128, 128], strides = [1, 1]} : vector<1024x128xf32> to vector<128x128xf32>
    %80 = vector.extract_strided_slice %6 {offsets = [896, 0], sizes = [128, 128], strides = [1, 1]} : vector<1024x128xf32> to vector<128x128xf32>
    %c384 = arith.constant 384 : index
    %c0_48 = arith.constant 0 : index
    %81 = vector.load %arg6[%c384, %c0_48] : memref<512x1xf32, #tpu.memory_space<vmem>>, vector<128x1xf32>
    %cst_49 = arith.constant dense<0xFF800000> : vector<128xf32>
    %82 = vector.multi_reduction <maximumf>, %79, %cst_49 [1] : vector<128x128xf32> to vector<128xf32>
    %83 = vector.shape_cast %82 : vector<128xf32> to vector<128x1xf32>
    %84 = arith.maximumf %81, %83 : vector<128x1xf32>
    %85 = arith.subf %81, %84 : vector<128x1xf32>
    %86 = math.exp %85 : vector<128x1xf32>
    %87 = vector.broadcast %84 : vector<128x1xf32> to vector<128x128xf32>
    %88 = arith.subf %79, %87 : vector<128x128xf32>
    %89 = math.exp %88 : vector<128x128xf32>
    %c384_50 = arith.constant 384 : index
    %c0_51 = arith.constant 0 : index
    %90 = vector.load %arg7[%c384_50, %c0_51] : memref<512x1xf32, #tpu.memory_space<vmem>>, vector<128x1xf32>
    %91 = arith.mulf %86, %90 : vector<128x1xf32>
    %cst_52 = arith.constant dense<0.000000e+00> : vector<128xf32>
    %92 = vector.multi_reduction <add>, %89, %cst_52 [1] : vector<128x128xf32> to vector<128xf32>
    %93 = vector.shape_cast %92 : vector<128xf32> to vector<128x1xf32>
    %94 = arith.addf %91, %93 : vector<128x1xf32>
    %c384_53 = arith.constant 384 : index
    %c0_54 = arith.constant 0 : index
    %95 = vector.load %arg7[%c384_53, %c0_54] : memref<512x1xf32, #tpu.memory_space<vmem>>, vector<128x1xf32>
    tpu.vector_store %arg7[%c384_53, %c0_54], %94 {strides = array<i32>} : memref<512x1xf32, #tpu.memory_space<vmem>>, vector<128x1xf32>,
    %cst_55 = arith.constant dense<0.000000e+00> : vector<128x128xf32>
    %96 = tpu.matmul %89, %80, %cst_55 {dimension_numbers = #tpu.dot_dimension_numbers<[1], [1], [0], [0], [0, 0, 1, 0], [], []>} : vector<128x128xf32>, vector<128x128xf32>, vector<128x128xf32> -> vector<128x128xf32>
    %c384_56 = arith.constant 384 : index
    %c0_57 = arith.constant 0 : index
    %97 = vector.load %arg8[%c384_56, %c0_57] : memref<512x128xf32, #tpu.memory_space<vmem>>, vector<128x128xf32>
    %98 = vector.broadcast %86 : vector<128x1xf32> to vector<128x128xf32>
    %99 = arith.mulf %98, %97 : vector<128x128xf32>
    %100 = arith.addf %99, %96 : vector<128x128xf32>
    %c384_58 = arith.constant 384 : index
    %c0_59 = arith.constant 0 : index
    %101 = vector.load %arg8[%c384_58, %c0_59] : memref<512x128xf32, #tpu.memory_space<vmem>>, vector<128x128xf32>
    tpu.vector_store %arg8[%c384_58, %c0_59], %100 {strides = array<i32>} : memref<512x128xf32, #tpu.memory_space<vmem>>, vector<128x128xf32>,
    %c384_60 = arith.constant 384 : index
    %c0_61 = arith.constant 0 : index
    %102 = vector.load %arg6[%c384_60, %c0_61] : memref<512x1xf32, #tpu.memory_space<vmem>>, vector<128x1xf32>
    tpu.vector_store %arg6[%c384_60, %c0_61], %84 {strides = array<i32>} : memref<512x1xf32, #tpu.memory_space<vmem>>, vector<128x1xf32>,
    %c1_i32 = arith.constant 1 : i32
    %103 = arith.cmpi eq, %arg1, %c1_i32 : i32
    %104 = arith.extui %103 : i1 to i32
    %c0_i32_62 = arith.constant 0 : i32
    %105 = arith.cmpi ne, %104, %c0_i32_62 : i32
    scf.if %105 {
      %c0_63 = arith.constant 0 : index
      %c0_64 = arith.constant 0 : index
      %106 = vector.load %arg8[%c0_63, %c0_64] : memref<512x128xf32, #tpu.memory_space<vmem>>, vector<128x128xf32>
      %c0_65 = arith.constant 0 : index
      %c0_66 = arith.constant 0 : index
      %107 = vector.load %arg7[%c0_65, %c0_66] : memref<512x1xf32, #tpu.memory_space<vmem>>, vector<128x1xf32>
      %108 = tpu.reciprocal %107 : vector<128x1xf32> -> vector<128x1xf32>
      %109 = vector.broadcast %108 : vector<128x1xf32> to vector<128x128xf32>
      %110 = arith.mulf %106, %109 : vector<128x128xf32>
      %c0_67 = arith.constant 0 : index
      %c0_68 = arith.constant 0 : index
      %111 = vector.load %arg4[%c0_67, %c0_68] : memref<32x512xf32, #tpu.memory_space<vmem>>, vector<32x128xf32>
      %cst_69 = arith.constant dense<0.000000e+00> : vector<32x128xf32>
      %112 = tpu.matmul %111, %110, %cst_69 {dimension_numbers = #tpu.dot_dimension_numbers<[1], [1], [0], [0], [0, 0, 1, 0], [], []>} : vector<32x128xf32>, vector<128x128xf32>, vector<32x128xf32> -> vector<32x128xf32>
      %c0_70 = arith.constant 0 : index
      %c0_71 = arith.constant 0 : index
      %c0_72 = arith.constant 0 : index
      %113 = vector.load %arg5[%c0_70, %c0_71, %c0_72] : memref<1x32x512xf32, #tpu.memory_space<vmem>>, vector<1x32x128xf32>
      %114 = vector.shape_cast %113 : vector<1x32x128xf32> to vector<32x128xf32>
      %115 = vector.shape_cast %112 : vector<32x128xf32> to vector<1x32x128xf32>
      tpu.vector_store %arg5[%c0_70, %c0_71, %c0_72], %115 {strides = array<i32>} : memref<1x32x512xf32, #tpu.memory_space<vmem>>, vector<1x32x128xf32>,
      %c128_73 = arith.constant 128 : index
      %c0_74 = arith.constant 0 : index
      %116 = vector.load %arg8[%c128_73, %c0_74] : memref<512x128xf32, #tpu.memory_space<vmem>>, vector<128x128xf32>
      %c128_75 = arith.constant 128 : index
      %c0_76 = arith.constant 0 : index
      %117 = vector.load %arg7[%c128_75, %c0_76] : memref<512x1xf32, #tpu.memory_space<vmem>>, vector<128x1xf32>
      %118 = tpu.reciprocal %117 : vector<128x1xf32> -> vector<128x1xf32>
      %119 = vector.broadcast %118 : vector<128x1xf32> to vector<128x128xf32>
      %120 = arith.mulf %116, %119 : vector<128x128xf32>
      %c0_77 = arith.constant 0 : index
      %c128_78 = arith.constant 128 : index
      %121 = vector.load %arg4[%c0_77, %c128_78] : memref<32x512xf32, #tpu.memory_space<vmem>>, vector<32x128xf32>
      %cst_79 = arith.constant dense<0.000000e+00> : vector<32x128xf32>
      %122 = tpu.matmul %121, %120, %cst_79 {dimension_numbers = #tpu.dot_dimension_numbers<[1], [1], [0], [0], [0, 0, 1, 0], [], []>} : vector<32x128xf32>, vector<128x128xf32>, vector<32x128xf32> -> vector<32x128xf32>
      %c0_80 = arith.constant 0 : index
      %c0_81 = arith.constant 0 : index
      %c128_82 = arith.constant 128 : index
      %123 = vector.load %arg5[%c0_80, %c0_81, %c128_82] : memref<1x32x512xf32, #tpu.memory_space<vmem>>, vector<1x32x128xf32>
      %124 = vector.shape_cast %123 : vector<1x32x128xf32> to vector<32x128xf32>
      %125 = vector.shape_cast %122 : vector<32x128xf32> to vector<1x32x128xf32>
      tpu.vector_store %arg5[%c0_80, %c0_81, %c128_82], %125 {strides = array<i32>} : memref<1x32x512xf32, #tpu.memory_space<vmem>>, vector<1x32x128xf32>,
      %c256_83 = arith.constant 256 : index
      %c0_84 = arith.constant 0 : index
      %126 = vector.load %arg8[%c256_83, %c0_84] : memref<512x128xf32, #tpu.memory_space<vmem>>, vector<128x128xf32>
      %c256_85 = arith.constant 256 : index
      %c0_86 = arith.constant 0 : index
      %127 = vector.load %arg7[%c256_85, %c0_86] : memref<512x1xf32, #tpu.memory_space<vmem>>, vector<128x1xf32>
      %128 = tpu.reciprocal %127 : vector<128x1xf32> -> vector<128x1xf32>
      %129 = vector.broadcast %128 : vector<128x1xf32> to vector<128x128xf32>
      %130 = arith.mulf %126, %129 : vector<128x128xf32>
      %c0_87 = arith.constant 0 : index
      %c256_88 = arith.constant 256 : index
      %131 = vector.load %arg4[%c0_87, %c256_88] : memref<32x512xf32, #tpu.memory_space<vmem>>, vector<32x128xf32>
      %cst_89 = arith.constant dense<0.000000e+00> : vector<32x128xf32>
      %132 = tpu.matmul %131, %130, %cst_89 {dimension_numbers = #tpu.dot_dimension_numbers<[1], [1], [0], [0], [0, 0, 1, 0], [], []>} : vector<32x128xf32>, vector<128x128xf32>, vector<32x128xf32> -> vector<32x128xf32>
      %c0_90 = arith.constant 0 : index
      %c0_91 = arith.constant 0 : index
      %c256_92 = arith.constant 256 : index
      %133 = vector.load %arg5[%c0_90, %c0_91, %c256_92] : memref<1x32x512xf32, #tpu.memory_space<vmem>>, vector<1x32x128xf32>
      %134 = vector.shape_cast %133 : vector<1x32x128xf32> to vector<32x128xf32>
      %135 = vector.shape_cast %132 : vector<32x128xf32> to vector<1x32x128xf32>
      tpu.vector_store %arg5[%c0_90, %c0_91, %c256_92], %135 {strides = array<i32>} : memref<1x32x512xf32, #tpu.memory_space<vmem>>, vector<1x32x128xf32>,
      %c384_93 = arith.constant 384 : index
      %c0_94 = arith.constant 0 : index
      %136 = vector.load %arg8[%c384_93, %c0_94] : memref<512x128xf32, #tpu.memory_space<vmem>>, vector<128x128xf32>
      %c384_95 = arith.constant 384 : index
      %c0_96 = arith.constant 0 : index
      %137 = vector.load %arg7[%c384_95, %c0_96] : memref<512x1xf32, #tpu.memory_space<vmem>>, vector<128x1xf32>
      %138 = tpu.reciprocal %137 : vector<128x1xf32> -> vector<128x1xf32>
      %139 = vector.broadcast %138 : vector<128x1xf32> to vector<128x128xf32>
      %140 = arith.mulf %136, %139 : vector<128x128xf32>
      %c0_97 = arith.constant 0 : index
      %c384_98 = arith.constant 384 : index
      %141 = vector.load %arg4[%c0_97, %c384_98] : memref<32x512xf32, #tpu.memory_space<vmem>>, vector<32x128xf32>
      %cst_99 = arith.constant dense<0.000000e+00> : vector<32x128xf32>
      %142 = tpu.matmul %141, %140, %cst_99 {dimension_numbers = #tpu.dot_dimension_numbers<[1], [1], [0], [0], [0, 0, 1, 0], [], []>} : vector<32x128xf32>, vector<128x128xf32>, vector<32x128xf32> -> vector<32x128xf32>
      %c0_100 = arith.constant 0 : index
      %c0_101 = arith.constant 0 : index
      %c384_102 = arith.constant 384 : index
      %143 = vector.load %arg5[%c0_100, %c0_101, %c384_102] : memref<1x32x512xf32, #tpu.memory_space<vmem>>, vector<1x32x128xf32>
      %144 = vector.shape_cast %143 : vector<1x32x128xf32> to vector<32x128xf32>
      %145 = vector.shape_cast %142 : vector<32x128xf32> to vector<1x32x128xf32>
      tpu.vector_store %arg5[%c0_100, %c0_101, %c384_102], %145 {strides = array<i32>} : memref<1x32x512xf32, #tpu.memory_space<vmem>>, vector<1x32x128xf32>,
    } else {
    }
    return
  }
  func.func @transform_0(%arg0: i32, %arg1: i32) -> (i32, i32, i32) {
    %c0_i32 = arith.constant 0 : i32
    %c0_i32_0 = arith.constant 0 : i32
    return %arg0, %c0_i32, %arg1 : i32, i32, i32
  }
  func.func @transform_1(%arg0: i32, %arg1: i32) -> (i32, i32) {
    %c0_i32 = arith.constant 0 : i32
    %c0_i32_0 = arith.constant 0 : i32
    %c0_i32_1 = arith.constant 0 : i32
    return %c0_i32, %c0_i32_0 : i32, i32
  }
  func.func @transform_2(%arg0: i32, %arg1: i32) -> (i32, i32) {
    %c0_i32 = arith.constant 0 : i32
    %c0_i32_0 = arith.constant 0 : i32
    %c0_i32_1 = arith.constant 0 : i32
    return %c0_i32, %c0_i32_0 : i32, i32
  }
  func.func @transform_3(%arg0: i32, %arg1: i32) -> (i32, i32, i32) {
    %c0_i32 = arith.constant 0 : i32
    %c0_i32_0 = arith.constant 0 : i32
    %c0_i32_1 = arith.constant 0 : i32
    return %arg0, %c0_i32, %c0_i32_0 : i32, i32, i32
  }
}

</mosaic_0001>

<llo_original>
// kernel: tpu_custom_call.1
$region0: #{tpu_custom_call.1}
  #allocation0 [shape = 'u32[]', space=smem, size = 0x4, offset = 0x4, fixed_abs, tag = 'smem constant byte address 0x4 - core index']
  #allocation1 [shape = 'u32[144,128]{1,0:T(1,128)}', space=vmem, size = 0x12000, scoped, tag = 'internal scratch']
  #allocation2 [shape = 'f32[512,1]{1,0:T(8,128)}', space=vmem, size = 0x40000, scoped, tag = 'scratch operand']
  #allocation3 [shape = 'f32[512,1]{1,0:T(8,128)}', space=vmem, size = 0x40000, scoped, tag = 'scratch operand']
  #allocation4 [shape = 'f32[512,128]{1,0:T(8,128)}', space=vmem, size = 0x40000, scoped, tag = 'scratch operand']
  %s0 = inlined_call_operand.vmem [shape: f32[2,32,256], index: 0, kind: input, shape index: {}]
  %s1 = inlined_call_operand.vmem [shape: f32[1024,32], index: 1, kind: input, shape index: {}]
  %s2 = inlined_call_operand.vmem [shape: f32[32,512], index: 2, kind: input, shape index: {}]
  %s3 = inlined_call_operand.hbm [shape: f32[2,32,512], index: 3, kind: output, shape index: {}]
  %s4 = sld [smem:[#allocation0]]
  $region91: #{tpu_custom_call.1} parent=0
    _
  %s6 = ssub.s32 1, %s4
  %s7 = scalar_select 0, %s6, %s4
  $region1: #{tpu_custom_call.1} parent=0
    #allocation5 [shape = 'u8[32768]{0}', space=vmem, size = 0x8000, scoped, tag = 'input window, operand 0']
    #allocation6 [shape = 'u8[131072]{0}', space=vmem, size = 0x20000, scoped, tag = 'output window, operand 0']
    #allocation7 [shape = 's32[2]{0}', space=sflag, size = 0x8, scoped, tag = 'scoped memory for tpu_custom_call.1']
    %8 = vsyncpa [#allocation7], 0
    %s9 = scalar_lea.sflag [#allocation7], 1
    %10 = vsyncpa %s9, 0
    loop: start=0, step=1, limit=6
    $region2: #{tpu_custom_call.1} parent=1 // loop_pre_header
      _
    $region3: #{tpu_custom_call.1} parent=1 // loop_header
      %s12 = sphi 0, %s16
      %p13 = scmp.ge.s32.totalorder %s12, 6
      %s19 = sphi 0, %s31
      %s20 = sphi 0, %s27
      %s21 = sphi 0, %s19
      %s22 = sphi 0, %s20
      %s23 = sphi 0, %s21
      %s24 = sphi 0, %s22
      %s36 = sphi 0, %s38
      %s39 = sphi 0, %s36
      %s40 = sphi 0, %s39
      %s56 = sphi 0, %s40
      %s60 = sphi 0, %s60
      %s62 = sphi 0, %s60
      %s63 = sphi 0, %s62
      %s77 = sphi 0, %s63
      %s81 = sphi 0, %s81
      %s83 = sphi 0, %s81
      %s84 = sphi 0, %s83
      %s98 = sphi 0, %s84
      %s104 = sphi 0, %s106
      %s107 = sphi 0, %s104
      %s108 = sphi 0, %s107
      %s124 = sphi 0, %s108
    $region4: #{tpu_custom_call.1} parent=1 // loop_header_branch
      %15 = sbr.rel (%p13) target = $region8
    $region5: #{tpu_custom_call.1} parent=1 // loop_body
      %s17 = ssub.s32 %s12, 1
      %s18 = ssub.s32 %s12, 2
      %s25 = sadd.s32 1, %s20
      %p26 = scmp.ge.s32.totalorder %s25, 2
      %s27 = scalar_select %p26, 0, %s25
      %s28 = sadd.s32 1, %s19
      %s29 = scalar_select %p26, %s28, %s19
      %p30 = scmp.ge.s32.totalorder %s29, 2
      %s31 = scalar_select %p30, 0, %s29
      %s32 = ssub.s32 %s19, %s31
      %s33 = ssub.s32 %s20, %s27
      %s34 = sor.u32 %s32, %s33
      %p35 = scmp.eq.s32.totalorder %s34, 0
      %s37 = sadd.s32 %s36, 1
      %s38 = scalar_select %p35, %s36, %s37
      %p41 = pneg %p35
      %p42 = scmp.eq.s32.totalorder %s12, 3
      %p43 = por %p41, %p42
      %p44 = scmp.ne.s32.totalorder %s36, %s39
      %p45 = scmp.eq.s32.totalorder %s12, 0
      %p46 = por %p44, %p45
      %p47 = scmp.ne.s32.totalorder %s36, %s39
      %p48 = scmp.eq.s32.totalorder %s17, 3
      %p49 = por %p47, %p48
      %p50 = scmp.ne.s32.totalorder %s39, %s40
      %p51 = scmp.eq.s32.totalorder %s17, 0
      %p52 = por %p50, %p51
      %p53 = scmp.ne.s32.totalorder %s39, %s40
      %p54 = scmp.eq.s32.totalorder %s18, 3
      %p55 = por %p53, %p54
      %p57 = scmp.ne.s32.totalorder %s40, %s56
      %p58 = scmp.eq.s32.totalorder %s18, 0
      %p59 = por %p57, %p58
      %s61 = sadd.s32 %s60, 1
      %p64 = scmp.eq.s32.totalorder %s12, 3
      %p65 = scmp.ne.s32.totalorder %s60, %s62
      %p66 = scmp.eq.s32.totalorder %s12, 0
      %p67 = por %p65, %p66
      %p68 = scmp.ne.s32.totalorder %s60, %s62
      %p69 = scmp.eq.s32.totalorder %s17, 3
      %p70 = por %p68, %p69
      %p71 = scmp.ne.s32.totalorder %s62, %s63
      %p72 = scmp.eq.s32.totalorder %s17, 0
      %p73 = por %p71, %p72
      %p74 = scmp.ne.s32.totalorder %s62, %s63
      %p75 = scmp.eq.s32.totalorder %s18, 3
      %p76 = por %p74, %p75
      %p78 = scmp.ne.s32.totalorder %s63, %s77
      %p79 = scmp.eq.s32.totalorder %s18, 0
      %p80 = por %p78, %p79
      %s82 = sadd.s32 %s81, 1
      %p85 = scmp.eq.s32.totalorder %s12, 3
      %p86 = scmp.ne.s32.totalorder %s81, %s83
      %p87 = scmp.eq.s32.totalorder %s12, 0
      %p88 = por %p86, %p87
      %p89 = scmp.ne.s32.totalorder %s81, %s83
      %p90 = scmp.eq.s32.totalorder %s17, 3
      %p91 = por %p89, %p90
      %p92 = scmp.ne.s32.totalorder %s83, %s84
      %p93 = scmp.eq.s32.totalorder %s17, 0
      %p94 = por %p92, %p93
      %p95 = scmp.ne.s32.totalorder %s83, %s84
      %p96 = scmp.eq.s32.totalorder %s18, 3
      %p97 = por %p95, %p96
      %p99 = scmp.ne.s32.totalorder %s84, %s98
      %p100 = scmp.eq.s32.totalorder %s18, 0
      %p101 = por %p99, %p100
      %s102 = ssub.s32 %s19, %s31
      %p103 = scmp.eq.s32.totalorder %s102, 0
      %s105 = sadd.s32 %s104, 1
      %s106 = scalar_select %p103, %s104, %s105
      %p109 = pneg %p103
      %p110 = scmp.eq.s32.totalorder %s12, 3
      %p111 = por %p109, %p110
      %p112 = scmp.ne.s32.totalorder %s104, %s107
      %p113 = scmp.eq.s32.totalorder %s12, 0
      %p114 = por %p112, %p113
      %p115 = scmp.ne.s32.totalorder %s104, %s107
      %p116 = scmp.eq.s32.totalorder %s17, 3
      %p117 = por %p115, %p116
      %p118 = scmp.ne.s32.totalorder %s107, %s108
      %p119 = scmp.eq.s32.totalorder %s17, 0
      %p120 = por %p118, %p119
      %p121 = scmp.ne.s32.totalorder %s107, %s108
      %p122 = scmp.eq.s32.totalorder %s18, 3
      %p123 = por %p121, %p122
      %p125 = scmp.ne.s32.totalorder %s108, %s124
      %p126 = scmp.eq.s32.totalorder %s18, 0
      %p127 = por %p125, %p126
      %p128 = scmp.le.s32.totalorder 1, %s12
      %p129 = scmp.lt.s32.totalorder %s12, 5
      %p130 = pnand %p128, %p129
      %p131 = pneg %p130
      // Predicated region
      $region9: #{tpu_custom_call.1} parent=5 // pred_check
        _
      $region10: #{tpu_custom_call.1} parent=5 // pred_check_branch
        %133 = sbr.rel (%p130) target = $region12
      $region11: #{tpu_custom_call.1} parent=5 // pred_region
        %s134 = ssub.s32 %s12, 1
        // Predicated region
        $region13: #{tpu_custom_call.1} parent=11 // pred_check
          %p135 = pneg %p73
        $region14: #{tpu_custom_call.1} parent=11 // pred_check_branch
          %137 = sbr.rel (%p135) target = $region16
        $region15: #{tpu_custom_call.1} parent=11 // pred_region
          _
        $region16: #{tpu_custom_call.1} parent=11 // pred_fallthru
          _
        // Predicated region
        $region17: #{tpu_custom_call.1} parent=11 // pred_check
          %p138 = pneg %p94
        $region18: #{tpu_custom_call.1} parent=11 // pred_check_branch
          %140 = sbr.rel (%p138) target = $region20
        $region19: #{tpu_custom_call.1} parent=11 // pred_region
          _
        $region20: #{tpu_custom_call.1} parent=11 // pred_fallthru
          _
      $region12: #{tpu_custom_call.1} parent=5 // pred_fallthru
        _
      %p141 = scmp.lt.s32.totalorder %s12, 4
      // Predicated region
      $region21: #{tpu_custom_call.1} parent=5 // pred_check
        %p142 = pneg %p141
      $region22: #{tpu_custom_call.1} parent=5 // pred_check_branch
        %144 = sbr.rel (%p142) target = $region24
      $region23: #{tpu_custom_call.1} parent=5 // pred_region
        // Predicated region
        $region25: #{tpu_custom_call.1} parent=23 // pred_check
          %p145 = pneg %p46
        $region26: #{tpu_custom_call.1} parent=23 // pred_check_branch
          %147 = sbr.rel (%p145) target = $region28
        $region27: #{tpu_custom_call.1} parent=23 // pred_region
          %s148 = sand.u32 %s36, 1
          %s149 = sand.u32 %s36, 1
          %s150 = smul.addr %s149, 32
          %s151 = scalar_lea.vmem [#allocation5], %s150
          %s152 = smul.addr %s19, 8
          %s153 = sadd.s32 %s20, %s152
          %s154 = smul.addr %s153, 8
          %s155 = scalar_lea.vmem %s0, %s154
          // Predicated region
          $region29: #{tpu_custom_call.1} parent=27 // pred_check
            _
          $region30: #{tpu_custom_call.1} parent=27 // pred_check_branch
            %157 = sbr.rel (0) target = $region32
          $region31: #{tpu_custom_call.1} parent=27 // pred_region
            // Predicated region
            $region33: #{tpu_custom_call.1} parent=31 // pred_check
              _
            $region34: #{tpu_custom_call.1} parent=31 // pred_check_branch
              %159 = sbr.rel (0) target = $region36
            $region35: #{tpu_custom_call.1} parent=31 // pred_region
              // Predicated region
              $region48: #{tpu_custom_call.1} parent=35 // pred_check
                _
              $region49: #{tpu_custom_call.1} parent=35 // pred_check_branch
                %180 = sbr.rel (0) target = $region51
              $region50: #{tpu_custom_call.1} parent=35 // pred_region
                loop: start=0, step=1, limit=1
                $region52: #{tpu_custom_call.1} parent=50 // loop_pre_header
                  _
                $region53: #{tpu_custom_call.1} parent=50 // loop_header
                  %s182 = sphi 0, %s186
                  %p183 = scmp.ge.s32.totalorder %s182, 1
                  %s187 = sphi %s155, %s155
                  %s188 = sphi %s151, %s151
                $region54: #{tpu_custom_call.1} parent=50 // loop_header_branch
                  %185 = sbr.rel (%p183) target = $region58
                $region55: #{tpu_custom_call.1} parent=50 // loop_body
                  %v189 = vld [vmem:[%s187] sm:$0xff]
                  %190 = vst [vmem:[%s188] sm:$0xff] %v189
                  %v191 = vld [vmem:[%s187 + $0x10] sm:$0xff]
                  %192 = vst [vmem:[%s188 + $0x8] sm:$0xff] %v191
                  %v193 = vld [vmem:[%s187 + $0x20] sm:$0xff]
                  %194 = vst [vmem:[%s188 + $0x10] sm:$0xff] %v193
                  %v195 = vld [vmem:[%s187 + $0x30] sm:$0xff]
                  %196 = vst [vmem:[%s188 + $0x18] sm:$0xff] %v195
                $region56: #{tpu_custom_call.1} parent=50 // loop_footer
                  %s186 = sadd.s32 1, %s182
                $region57: #{tpu_custom_call.1} parent=50 // loop_footer_branch
                  %181 = sbr.rel target = $region53
                $region58: #{tpu_custom_call.1} parent=50 // loop_exit
                  _
              $region51: #{tpu_custom_call.1} parent=35 // pred_fallthru
                _
              // Predicated region
              $region59: #{tpu_custom_call.1} parent=35 // pred_check
                _
              $region60: #{tpu_custom_call.1} parent=35 // pred_check_branch
                %198 = sbr.rel target = $region62
              $region61: #{tpu_custom_call.1} parent=35 // pred_region
                _
              $region62: #{tpu_custom_call.1} parent=35 // pred_fallthru
                _
            $region36: #{tpu_custom_call.1} parent=31 // pred_fallthru
              _
            // Predicated region
            $region37: #{tpu_custom_call.1} parent=31 // pred_check
              _
            $region38: #{tpu_custom_call.1} parent=31 // pred_check_branch
              %161 = sbr.rel target = $region40
            $region39: #{tpu_custom_call.1} parent=31 // pred_region
              loop: start=0, step=1, limit=1
              $region41: #{tpu_custom_call.1} parent=39 // loop_pre_header
                _
              $region42: #{tpu_custom_call.1} parent=39 // loop_header
                %s164 = sphi 0, %s168
                %p165 = scmp.ge.s32.totalorder %s164, 1
                %s169 = sphi %s155, %s155
                %s170 = sphi %s151, %s151
              $region43: #{tpu_custom_call.1} parent=39 // loop_header_branch
                %167 = sbr.rel (%p165) target = $region47
              $region44: #{tpu_custom_call.1} parent=39 // loop_body
                %v171 = vld [vmem:[%s169] sm:$0xff]
                %172 = vst [vmem:[%s170] sm:$0xff] %v171
                %v173 = vld [vmem:[%s169 + $0x10] sm:$0xff]
                %174 = vst [vmem:[%s170 + $0x8] sm:$0xff] %v173
                %v175 = vld [vmem:[%s169 + $0x20] sm:$0xff]
                %176 = vst [vmem:[%s170 + $0x10] sm:$0xff] %v175
                %v177 = vld [vmem:[%s169 + $0x30] sm:$0xff]
                %178 = vst [vmem:[%s170 + $0x18] sm:$0xff] %v177
              $region45: #{tpu_custom_call.1} parent=39 // loop_footer
                %s168 = sadd.s32 1, %s164
              $region46: #{tpu_custom_call.1} parent=39 // loop_footer_branch
                %163 = sbr.rel target = $region42
              $region47: #{tpu_custom_call.1} parent=39 // loop_exit
                _
            $region40: #{tpu_custom_call.1} parent=31 // pred_fallthru
              _
          $region32: #{tpu_custom_call.1} parent=27 // pred_fallthru
            _
          %199 = vnop
        $region28: #{tpu_custom_call.1} parent=23 // pred_fallthru
          _
      $region24: #{tpu_custom_call.1} parent=5 // pred_fallthru
        _
      %p200 = scmp.le.s32.totalorder 1, %s12
      %p201 = scmp.lt.s32.totalorder %s12, 5
      %p202 = pnand %p200, %p201
      %p203 = pneg %p202
      // Predicated region
      $region63: #{tpu_custom_call.1} parent=5 // pred_check
        _
      $region64: #{tpu_custom_call.1} parent=5 // pred_check_branch
        %205 = sbr.rel (%p202) target = $region66
      $region65: #{tpu_custom_call.1} parent=5 // pred_region
        %s206 = ssub.s32 %s12, 1
        %s207 = sand.u32 %s39, 1
        %s208 = sand.u32 %s39, 1
        %s209 = smul.addr %s208, 32
        %s210 = scalar_lea.vmem [#allocation5], %s209
        // Predicated region
        $region67: #{tpu_custom_call.1} parent=65 // pred_check
          %p211 = pneg %p52
        $region68: #{tpu_custom_call.1} parent=65 // pred_check_branch
          %213 = sbr.rel (%p211) target = $region70
        $region69: #{tpu_custom_call.1} parent=65 // pred_region
          _
        $region70: #{tpu_custom_call.1} parent=65 // pred_fallthru
          _
        %s214 = sand.u32 %s39, 1
        %s215 = sand.u32 %s39, 1
        %s216 = smul.addr %s215, 32
        %s217 = scalar_lea.vmem [#allocation5], %s216
        %p218 = pneg %p52
        %p219 = pneg %p49
        %p220 = pneg %p73
        %p221 = pneg %p70
        %p222 = pneg %p94
        %p223 = pneg %p91
        %p224 = pneg %p120
        %p225 = pneg %p117
        %s226 = sand.u32 %s107, 1
        %s227 = scalar_lea.sflag [#allocation7], %s226
        %s228 = sand.u32 %s107, 1
        %s229 = smul.addr %s228, 128
        %s230 = scalar_lea.vmem [#allocation6], %s229
        %p231 = scmp.eq.s32.totalorder %s22, 0
        // Predicated region
        $region71: #{tpu_custom_call.1} parent=65 // pred_check
          %p232 = pneg %p231
        $region72: #{tpu_custom_call.1} parent=65 // pred_check_branch
          %234 = sbr.rel (%p232) target = $region74
        $region73: #{tpu_custom_call.1} parent=65 // pred_region
          %vm235 = vcmask 7168
          %236 = vst.msk [vmem:[#allocation2] sm:$0xff] %vm235, -inf
          %237 = vst.msk [vmem:[#allocation2 + $0x8] sm:$0xff] %vm235, -inf
          %238 = vst.msk [vmem:[#allocation2 + $0x10] sm:$0xff] %vm235, -inf
          %239 = vst.msk [vmem:[#allocation2 + $0x18] sm:$0xff] %vm235, -inf
          %240 = vst.msk [vmem:[#allocation2 + $0x20] sm:$0xff] %vm235, -inf
          %241 = vst.msk [vmem:[#allocation2 + $0x28] sm:$0xff] %vm235, -inf
          %242 = vst.msk [vmem:[#allocation2 + $0x30] sm:$0xff] %vm235, -inf
          %243 = vst.msk [vmem:[#allocation2 + $0x38] sm:$0xff] %vm235, -inf
          %244 = vst.msk [vmem:[#allocation2 + $0x40] sm:$0xff] %vm235, -inf
          %245 = vst.msk [vmem:[#allocation2 + $0x48] sm:$0xff] %vm235, -inf
          %246 = vst.msk [vmem:[#allocation2 + $0x50] sm:$0xff] %vm235, -inf
          %247 = vst.msk [vmem:[#allocation2 + $0x58] sm:$0xff] %vm235, -inf
          %248 = vst.msk [vmem:[#allocation2 + $0x60] sm:$0xff] %vm235, -inf
          %249 = vst.msk [vmem:[#allocation2 + $0x68] sm:$0xff] %vm235, -inf
          %250 = vst.msk [vmem:[#allocation2 + $0x70] sm:$0xff] %vm235, -inf
          %251 = vst.msk [vmem:[#allocation2 + $0x78] sm:$0xff] %vm235, -inf
          %252 = vst.msk [vmem:[#allocation2 + $0x80] sm:$0xff] %vm235, -inf
          %253 = vst.msk [vmem:[#allocation2 + $0x88] sm:$0xff] %vm235, -inf
          %254 = vst.msk [vmem:[#allocation2 + $0x90] sm:$0xff] %vm235, -inf
          %255 = vst.msk [vmem:[#allocation2 + $0x98] sm:$0xff] %vm235, -inf
          %256 = vst.msk [vmem:[#allocation2 + $0xa0] sm:$0xff] %vm235, -inf
          %257 = vst.msk [vmem:[#allocation2 + $0xa8] sm:$0xff] %vm235, -inf
          %258 = vst.msk [vmem:[#allocation2 + $0xb0] sm:$0xff] %vm235, -inf
          %259 = vst.msk [vmem:[#allocation2 + $0xb8] sm:$0xff] %vm235, -inf
          %260 = vst.msk [vmem:[#allocation2 + $0xc0] sm:$0xff] %vm235, -inf
          %261 = vst.msk [vmem:[#allocation2 + $0xc8] sm:$0xff] %vm235, -inf
          %262 = vst.msk [vmem:[#allocation2 + $0xd0] sm:$0xff] %vm235, -inf
          %263 = vst.msk [vmem:[#allocation2 + $0xd8] sm:$0xff] %vm235, -inf
          %264 = vst.msk [vmem:[#allocation2 + $0xe0] sm:$0xff] %vm235, -inf
          %265 = vst.msk [vmem:[#allocation2 + $0xe8] sm:$0xff] %vm235, -inf
          %266 = vst.msk [vmem:[#allocation2 + $0xf0] sm:$0xff] %vm235, -inf
          %267 = vst.msk [vmem:[#allocation2 + $0xf8] sm:$0xff] %vm235, -inf
          %268 = vst.msk [vmem:[#allocation2 + $0x100] sm:$0xff] %vm235, -inf
          %269 = vst.msk [vmem:[#allocation2 + $0x108] sm:$0xff] %vm235, -inf
          %270 = vst.msk [vmem:[#allocation2 + $0x110] sm:$0xff] %vm235, -inf
          %271 = vst.msk [vmem:[#allocation2 + $0x118] sm:$0xff] %vm235, -inf
          %272 = vst.msk [vmem:[#allocation2 + $0x120] sm:$0xff] %vm235, -inf
          %273 = vst.msk [vmem:[#allocation2 + $0x128] sm:$0xff] %vm235, -inf
          %274 = vst.msk [vmem:[#allocation2 + $0x130] sm:$0xff] %vm235, -inf
          %275 = vst.msk [vmem:[#allocation2 + $0x138] sm:$0xff] %vm235, -inf
          %276 = vst.msk [vmem:[#allocation2 + $0x140] sm:$0xff] %vm235, -inf
          %277 = vst.msk [vmem:[#allocation2 + $0x148] sm:$0xff] %vm235, -inf
          %278 = vst.msk [vmem:[#allocation2 + $0x150] sm:$0xff] %vm235, -inf
          %279 = vst.msk [vmem:[#allocation2 + $0x158] sm:$0xff] %vm235, -inf
          %280 = vst.msk [vmem:[#allocation2 + $0x160] sm:$0xff] %vm235, -inf
          %281 = vst.msk [vmem:[#allocation2 + $0x168] sm:$0xff] %vm235, -inf
          %282 = vst.msk [vmem:[#allocation2 + $0x170] sm:$0xff] %vm235, -inf
          %283 = vst.msk [vmem:[#allocation2 + $0x178] sm:$0xff] %vm235, -inf
          %284 = vst.msk [vmem:[#allocation2 + $0x180] sm:$0xff] %vm235, -inf
          %285 = vst.msk [vmem:[#allocation2 + $0x188] sm:$0xff] %vm235, -inf
          %286 = vst.msk [vmem:[#allocation2 + $0x190] sm:$0xff] %vm235, -inf
          %287 = vst.msk [vmem:[#allocation2 + $0x198] sm:$0xff] %vm235, -inf
          %288 = vst.msk [vmem:[#allocation2 + $0x1a0] sm:$0xff] %vm235, -inf
          %289 = vst.msk [vmem:[#allocation2 + $0x1a8] sm:$0xff] %vm235, -inf
          %290 = vst.msk [vmem:[#allocation2 + $0x1b0] sm:$0xff] %vm235, -inf
          %291 = vst.msk [vmem:[#allocation2 + $0x1b8] sm:$0xff] %vm235, -inf
          %292 = vst.msk [vmem:[#allocation2 + $0x1c0] sm:$0xff] %vm235, -inf
          %293 = vst.msk [vmem:[#allocation2 + $0x1c8] sm:$0xff] %vm235, -inf
          %294 = vst.msk [vmem:[#allocation2 + $0x1d0] sm:$0xff] %vm235, -inf
          %295 = vst.msk [vmem:[#allocation2 + $0x1d8] sm:$0xff] %vm235, -inf
          %296 = vst.msk [vmem:[#allocation2 + $0x1e0] sm:$0xff] %vm235, -inf
          %297 = vst.msk [vmem:[#allocation2 + $0x1e8] sm:$0xff] %vm235, -inf
          %298 = vst.msk [vmem:[#allocation2 + $0x1f0] sm:$0xff] %vm235, -inf
          %299 = vst.msk [vmem:[#allocation2 + $0x1f8] sm:$0xff] %vm235, -inf
          %300 = vst.msk [vmem:[#allocation3] sm:$0xff] %vm235, 0.0
          %301 = vst.msk [vmem:[#allocation3 + $0x8] sm:$0xff] %vm235, 0.0
          %302 = vst.msk [vmem:[#allocation3 + $0x10] sm:$0xff] %vm235, 0.0
          %303 = vst.msk [vmem:[#allocation3 + $0x18] sm:$0xff] %vm235, 0.0
          %304 = vst.msk [vmem:[#allocation3 + $0x20] sm:$0xff] %vm235, 0.0
          %305 = vst.msk [vmem:[#allocation3 + $0x28] sm:$0xff] %vm235, 0.0
          %306 = vst.msk [vmem:[#allocation3 + $0x30] sm:$0xff] %vm235, 0.0
          %307 = vst.msk [vmem:[#allocation3 + $0x38] sm:$0xff] %vm235, 0.0
          %308 = vst.msk [vmem:[#allocation3 + $0x40] sm:$0xff] %vm235, 0.0
          %309 = vst.msk [vmem:[#allocation3 + $0x48] sm:$0xff] %vm235, 0.0
          %310 = vst.msk [vmem:[#allocation3 + $0x50] sm:$0xff] %vm235, 0.0
          %311 = vst.msk [vmem:[#allocation3 + $0x58] sm:$0xff] %vm235, 0.0
          %312 = vst.msk [vmem:[#allocation3 + $0x60] sm:$0xff] %vm235, 0.0
          %313 = vst.msk [vmem:[#allocation3 + $0x68] sm:$0xff] %vm235, 0.0
          %314 = vst.msk [vmem:[#allocation3 + $0x70] sm:$0xff] %vm235, 0.0
          %315 = vst.msk [vmem:[#allocation3 + $0x78] sm:$0xff] %vm235, 0.0
          %316 = vst.msk [vmem:[#allocation3 + $0x80] sm:$0xff] %vm235, 0.0
          %317 = vst.msk [vmem:[#allocation3 + $0x88] sm:$0xff] %vm235, 0.0
          %318 = vst.msk [vmem:[#allocation3 + $0x90] sm:$0xff] %vm235, 0.0
          %319 = vst.msk [vmem:[#allocation3 + $0x98] sm:$0xff] %vm235, 0.0
          %320 = vst.msk [vmem:[#allocation3 + $0xa0] sm:$0xff] %vm235, 0.0
          %321 = vst.msk [vmem:[#allocation3 + $0xa8] sm:$0xff] %vm235, 0.0
          %322 = vst.msk [vmem:[#allocation3 + $0xb0] sm:$0xff] %vm235, 0.0
          %323 = vst.msk [vmem:[#allocation3 + $0xb8] sm:$0xff] %vm235, 0.0
          %324 = vst.msk [vmem:[#allocation3 + $0xc0] sm:$0xff] %vm235, 0.0
          %325 = vst.msk [vmem:[#allocation3 + $0xc8] sm:$0xff] %vm235, 0.0
          %326 = vst.msk [vmem:[#allocation3 + $0xd0] sm:$0xff] %vm235, 0.0
          %327 = vst.msk [vmem:[#allocation3 + $0xd8] sm:$0xff] %vm235, 0.0
          %328 = vst.msk [vmem:[#allocation3 + $0xe0] sm:$0xff] %vm235, 0.0
          %329 = vst.msk [vmem:[#allocation3 + $0xe8] sm:$0xff] %vm235, 0.0
          %330 = vst.msk [vmem:[#allocation3 + $0xf0] sm:$0xff] %vm235, 0.0
          %331 = vst.msk [vmem:[#allocation3 + $0xf8] sm:$0xff] %vm235, 0.0
          %332 = vst.msk [vmem:[#allocation3 + $0x100] sm:$0xff] %vm235, 0.0
          %333 = vst.msk [vmem:[#allocation3 + $0x108] sm:$0xff] %vm235, 0.0
          %334 = vst.msk [vmem:[#allocation3 + $0x110] sm:$0xff] %vm235, 0.0
          %335 = vst.msk [vmem:[#allocation3 + $0x118] sm:$0xff] %vm235, 0.0
          %336 = vst.msk [vmem:[#allocation3 + $0x120] sm:$0xff] %vm235, 0.0
          %337 = vst.msk [vmem:[#allocation3 + $0x128] sm:$0xff] %vm235, 0.0
          %338 = vst.msk [vmem:[#allocation3 + $0x130] sm:$0xff] %vm235, 0.0
          %339 = vst.msk [vmem:[#allocation3 + $0x138] sm:$0xff] %vm235, 0.0
          %340 = vst.msk [vmem:[#allocation3 + $0x140] sm:$0xff] %vm235, 0.0
          %341 = vst.msk [vmem:[#allocation3 + $0x148] sm:$0xff] %vm235, 0.0
          %342 = vst.msk [vmem:[#allocation3 + $0x150] sm:$0xff] %vm235, 0.0
          %343 = vst.msk [vmem:[#allocation3 + $0x158] sm:$0xff] %vm235, 0.0
          %344 = vst.msk [vmem:[#allocation3 + $0x160] sm:$0xff] %vm235, 0.0
          %345 = vst.msk [vmem:[#allocation3 + $0x168] sm:$0xff] %vm235, 0.0
          %346 = vst.msk [vmem:[#allocation3 + $0x170] sm:$0xff] %vm235, 0.0
          %347 = vst.msk [vmem:[#allocation3 + $0x178] sm:$0xff] %vm235, 0.0
          %348 = vst.msk [vmem:[#allocation3 + $0x180] sm:$0xff] %vm235, 0.0
          %349 = vst.msk [vmem:[#allocation3 + $0x188] sm:$0xff] %vm235, 0.0
          %350 = vst.msk [vmem:[#allocation3 + $0x190] sm:$0xff] %vm235, 0.0
          %351 = vst.msk [vmem:[#allocation3 + $0x198] sm:$0xff] %vm235, 0.0
          %352 = vst.msk [vmem:[#allocation3 + $0x1a0] sm:$0xff] %vm235, 0.0
          %353 = vst.msk [vmem:[#allocation3 + $0x1a8] sm:$0xff] %vm235, 0.0
          %354 = vst.msk [vmem:[#allocation3 + $0x1b0] sm:$0xff] %vm235, 0.0
          %355 = vst.msk [vmem:[#allocation3 + $0x1b8] sm:$0xff] %vm235, 0.0
          %356 = vst.msk [vmem:[#allocation3 + $0x1c0] sm:$0xff] %vm235, 0.0
          %357 = vst.msk [vmem:[#allocation3 + $0x1c8] sm:$0xff] %vm235, 0.0
          %358 = vst.msk [vmem:[#allocation3 + $0x1d0] sm:$0xff] %vm235, 0.0
          %359 = vst.msk [vmem:[#allocation3 + $0x1d8] sm:$0xff] %vm235, 0.0
          %360 = vst.msk [vmem:[#allocation3 + $0x1e0] sm:$0xff] %vm235, 0.0
          %361 = vst.msk [vmem:[#allocation3 + $0x1e8] sm:$0xff] %vm235, 0.0
          %362 = vst.msk [vmem:[#allocation3 + $0x1f0] sm:$0xff] %vm235, 0.0
          %363 = vst.msk [vmem:[#allocation3 + $0x1f8] sm:$0xff] %vm235, 0.0
          %364 = vst [vmem:[#allocation4] sm:$0xff] 0.0
          %365 = vst [vmem:[#allocation4 + $0x8] sm:$0xff] 0.0
          %366 = vst [vmem:[#allocation4 + $0x10] sm:$0xff] 0.0
          %367 = vst [vmem:[#allocation4 + $0x18] sm:$0xff] 0.0
          %368 = vst [vmem:[#allocation4 + $0x20] sm:$0xff] 0.0
          %369 = vst [vmem:[#allocation4 + $0x28] sm:$0xff] 0.0
          %370 = vst [vmem:[#allocation4 + $0x30] sm:$0xff] 0.0
          %371 = vst [vmem:[#allocation4 + $0x38] sm:$0xff] 0.0
          %372 = vst [vmem:[#allocation4 + $0x40] sm:$0xff] 0.0
          %373 = vst [vmem:[#allocation4 + $0x48] sm:$0xff] 0.0
          %374 = vst [vmem:[#allocation4 + $0x50] sm:$0xff] 0.0
          %375 = vst [vmem:[#allocation4 + $0x58] sm:$0xff] 0.0
          %376 = vst [vmem:[#allocation4 + $0x60] sm:$0xff] 0.0
          %377 = vst [vmem:[#allocation4 + $0x68] sm:$0xff] 0.0
          %378 = vst [vmem:[#allocation4 + $0x70] sm:$0xff] 0.0
          %379 = vst [vmem:[#allocation4 + $0x78] sm:$0xff] 0.0
          %380 = vst [vmem:[#allocation4 + $0x80] sm:$0xff] 0.0
          %381 = vst [vmem:[#allocation4 + $0x88] sm:$0xff] 0.0
          %382 = vst [vmem:[#allocation4 + $0x90] sm:$0xff] 0.0
          %383 = vst [vmem:[#allocation4 + $0x98] sm:$0xff] 0.0
          %384 = vst [vmem:[#allocation4 + $0xa0] sm:$0xff] 0.0
          %385 = vst [vmem:[#allocation4 + $0xa8] sm:$0xff] 0.0
          %386 = vst [vmem:[#allocation4 + $0xb0] sm:$0xff] 0.0
          %387 = vst [vmem:[#allocation4 + $0xb8] sm:$0xff] 0.0
          %388 = vst [vmem:[#allocation4 + $0xc0] sm:$0xff] 0.0
          %389 = vst [vmem:[#allocation4 + $0xc8] sm:$0xff] 0.0
          %390 = vst [vmem:[#allocation4 + $0xd0] sm:$0xff] 0.0
          %391 = vst [vmem:[#allocation4 + $0xd8] sm:$0xff] 0.0
          %392 = vst [vmem:[#allocation4 + $0xe0] sm:$0xff] 0.0
          %393 = vst [vmem:[#allocation4 + $0xe8] sm:$0xff] 0.0
          %394 = vst [vmem:[#allocation4 + $0xf0] sm:$0xff] 0.0
          %395 = vst [vmem:[#allocation4 + $0xf8] sm:$0xff] 0.0
          %396 = vst [vmem:[#allocation4 + $0x100] sm:$0xff] 0.0
          %397 = vst [vmem:[#allocation4 + $0x108] sm:$0xff] 0.0
          %398 = vst [vmem:[#allocation4 + $0x110] sm:$0xff] 0.0
          %399 = vst [vmem:[#allocation4 + $0x118] sm:$0xff] 0.0
          %400 = vst [vmem:[#allocation4 + $0x120] sm:$0xff] 0.0
          %401 = vst [vmem:[#allocation4 + $0x128] sm:$0xff] 0.0
          %402 = vst [vmem:[#allocation4 + $0x130] sm:$0xff] 0.0
          %403 = vst [vmem:[#allocation4 + $0x138] sm:$0xff] 0.0
          %404 = vst [vmem:[#allocation4 + $0x140] sm:$0xff] 0.0
          %405 = vst [vmem:[#allocation4 + $0x148] sm:$0xff] 0.0
          %406 = vst [vmem:[#allocation4 + $0x150] sm:$0xff] 0.0
          %407 = vst [vmem:[#allocation4 + $0x158] sm:$0xff] 0.0
          %408 = vst [vmem:[#allocation4 + $0x160] sm:$0xff] 0.0
          %409 = vst [vmem:[#allocation4 + $0x168] sm:$0xff] 0.0
          %410 = vst [vmem:[#allocation4 + $0x170] sm:$0xff] 0.0
          %411 = vst [vmem:[#allocation4 + $0x178] sm:$0xff] 0.0
          %412 = vst [vmem:[#allocation4 + $0x180] sm:$0xff] 0.0
          %413 = vst [vmem:[#allocation4 + $0x188] sm:$0xff] 0.0
          %414 = vst [vmem:[#allocation4 + $0x190] sm:$0xff] 0.0
          %415 = vst [vmem:[#allocation4 + $0x198] sm:$0xff] 0.0
          %416 = vst [vmem:[#allocation4 + $0x1a0] sm:$0xff] 0.0
          %417 = vst [vmem:[#allocation4 + $0x1a8] sm:$0xff] 0.0
          %418 = vst [vmem:[#allocation4 + $0x1b0] sm:$0xff] 0.0
          %419 = vst [vmem:[#allocation4 + $0x1b8] sm:$0xff] 0.0
          %420 = vst [vmem:[#allocation4 + $0x1c0] sm:$0xff] 0.0
          %421 = vst [vmem:[#allocation4 + $0x1c8] sm:$0xff] 0.0
          %422 = vst [vmem:[#allocation4 + $0x1d0] sm:$0xff] 0.0
          %423 = vst [vmem:[#allocation4 + $0x1d8] sm:$0xff] 0.0
          %424 = vst [vmem:[#allocation4 + $0x1e0] sm:$0xff] 0.0
          %425 = vst [vmem:[#allocation4 + $0x1e8] sm:$0xff] 0.0
          %426 = vst [vmem:[#allocation4 + $0x1f0] sm:$0xff] 0.0
          %427 = vst [vmem:[#allocation4 + $0x1f8] sm:$0xff] 0.0
        $region74: #{tpu_custom_call.1} parent=65 // pred_fallthru
          _
        %v428 = vld [vmem:[%s210] sm:$0xff]
        %v429 = vld [vmem:[%s210 + $0x8] sm:$0xff]
        %v430 = vld [vmem:[%s210 + $0x10] sm:$0xff]
        %v431 = vld [vmem:[%s210 + $0x18] sm:$0xff]
        %v432 = vld [vmem:[%s1] sm:$0xff]
        %v433 = vld [vmem:[%s1 + $0x8] sm:$0xff]
        %v434 = vld [vmem:[%s1 + $0x10] sm:$0xff]
        %v435 = vld [vmem:[%s1 + $0x18] sm:$0xff]
        %v436 = vld [vmem:[%s1 + $0x20] sm:$0xff]
        %v437 = vld [vmem:[%s1 + $0x28] sm:$0xff]
        %v438 = vld [vmem:[%s1 + $0x30] sm:$0xff]
        %v439 = vld [vmem:[%s1 + $0x38] sm:$0xff]
        %v440 = vld [vmem:[%s1 + $0x40] sm:$0xff]
        %v441 = vld [vmem:[%s1 + $0x48] sm:$0xff]
        %v442 = vld [vmem:[%s1 + $0x50] sm:$0xff]
        %v443 = vld [vmem:[%s1 + $0x58] sm:$0xff]
        %v444 = vld [vmem:[%s1 + $0x60] sm:$0xff]
        %v445 = vld [vmem:[%s1 + $0x68] sm:$0xff]
        %v446 = vld [vmem:[%s1 + $0x70] sm:$0xff]
        %v447 = vld [vmem:[%s1 + $0x78] sm:$0xff]
        %v448 = vld [vmem:[%s1 + $0x80] sm:$0xff]
        %v449 = vld [vmem:[%s1 + $0x88] sm:$0xff]
        %v450 = vld [vmem:[%s1 + $0x90] sm:$0xff]
        %v451 = vld [vmem:[%s1 + $0x98] sm:$0xff]
        %v452 = vld [vmem:[%s1 + $0xa0] sm:$0xff]
        %v453 = vld [vmem:[%s1 + $0xa8] sm:$0xff]
        %v454 = vld [vmem:[%s1 + $0xb0] sm:$0xff]
        %v455 = vld [vmem:[%s1 + $0xb8] sm:$0xff]
        %v456 = vld [vmem:[%s1 + $0xc0] sm:$0xff]
        %v457 = vld [vmem:[%s1 + $0xc8] sm:$0xff]
        %v458 = vld [vmem:[%s1 + $0xd0] sm:$0xff]
        %v459 = vld [vmem:[%s1 + $0xd8] sm:$0xff]
        %v460 = vld [vmem:[%s1 + $0xe0] sm:$0xff]
        %v461 = vld [vmem:[%s1 + $0xe8] sm:$0xff]
        %v462 = vld [vmem:[%s1 + $0xf0] sm:$0xff]
        %v463 = vld [vmem:[%s1 + $0xf8] sm:$0xff]
        %v464 = vld [vmem:[%s1 + $0x100] sm:$0xff]
        %v465 = vld [vmem:[%s1 + $0x108] sm:$0xff]
        %v466 = vld [vmem:[%s1 + $0x110] sm:$0xff]
        %v467 = vld [vmem:[%s1 + $0x118] sm:$0xff]
        %v468 = vld [vmem:[%s1 + $0x120] sm:$0xff]
        %v469 = vld [vmem:[%s1 + $0x128] sm:$0xff]
        %v470 = vld [vmem:[%s1 + $0x130] sm:$0xff]
        %v471 = vld [vmem:[%s1 + $0x138] sm:$0xff]
        %v472 = vld [vmem:[%s1 + $0x140] sm:$0xff]
        %v473 = vld [vmem:[%s1 + $0x148] sm:$0xff]
        %v474 = vld [vmem:[%s1 + $0x150] sm:$0xff]
        %v475 = vld [vmem:[%s1 + $0x158] sm:$0xff]
        %v476 = vld [vmem:[%s1 + $0x160] sm:$0xff]
        %v477 = vld [vmem:[%s1 + $0x168] sm:$0xff]
        %v478 = vld [vmem:[%s1 + $0x170] sm:$0xff]
        %v479 = vld [vmem:[%s1 + $0x178] sm:$0xff]
        %v480 = vld [vmem:[%s1 + $0x180] sm:$0xff]
        %v481 = vld [vmem:[%s1 + $0x188] sm:$0xff]
        %v482 = vld [vmem:[%s1 + $0x190] sm:$0xff]
        %v483 = vld [vmem:[%s1 + $0x198] sm:$0xff]
        %v484 = vld [vmem:[%s1 + $0x1a0] sm:$0xff]
        %v485 = vld [vmem:[%s1 + $0x1a8] sm:$0xff]
        %v486 = vld [vmem:[%s1 + $0x1b0] sm:$0xff]
        %v487 = vld [vmem:[%s1 + $0x1b8] sm:$0xff]
        %v488 = vld [vmem:[%s1 + $0x1c0] sm:$0xff]
        %v489 = vld [vmem:[%s1 + $0x1c8] sm:$0xff]
        %v490 = vld [vmem:[%s1 + $0x1d0] sm:$0xff]
        %v491 = vld [vmem:[%s1 + $0x1d8] sm:$0xff]
        %v492 = vld [vmem:[%s1 + $0x1e0] sm:$0xff]
        %v493 = vld [vmem:[%s1 + $0x1e8] sm:$0xff]
        %v494 = vld [vmem:[%s1 + $0x1f0] sm:$0xff]
        %v495 = vld [vmem:[%s1 + $0x1f8] sm:$0xff]
        %v496 = vld [vmem:[%s1 + $0x200] sm:$0xff]
        %v497 = vld [vmem:[%s1 + $0x208] sm:$0xff]
        %v498 = vld [vmem:[%s1 + $0x210] sm:$0xff]
        %v499 = vld [vmem:[%s1 + $0x218] sm:$0xff]
        %v500 = vld [vmem:[%s1 + $0x220] sm:$0xff]
        %v501 = vld [vmem:[%s1 + $0x228] sm:$0xff]
        %v502 = vld [vmem:[%s1 + $0x230] sm:$0xff]
        %v503 = vld [vmem:[%s1 + $0x238] sm:$0xff]
        %v504 = vld [vmem:[%s1 + $0x240] sm:$0xff]
        %v505 = vld [vmem:[%s1 + $0x248] sm:$0xff]
        %v506 = vld [vmem:[%s1 + $0x250] sm:$0xff]
        %v507 = vld [vmem:[%s1 + $0x258] sm:$0xff]
        %v508 = vld [vmem:[%s1 + $0x260] sm:$0xff]
        %v509 = vld [vmem:[%s1 + $0x268] sm:$0xff]
        %v510 = vld [vmem:[%s1 + $0x270] sm:$0xff]
        %v511 = vld [vmem:[%s1 + $0x278] sm:$0xff]
        %v512 = vld [vmem:[%s1 + $0x280] sm:$0xff]
        %v513 = vld [vmem:[%s1 + $0x288] sm:$0xff]
        %v514 = vld [vmem:[%s1 + $0x290] sm:$0xff]
        %v515 = vld [vmem:[%s1 + $0x298] sm:$0xff]
        %v516 = vld [vmem:[%s1 + $0x2a0] sm:$0xff]
        %v517 = vld [vmem:[%s1 + $0x2a8] sm:$0xff]
        %v518 = vld [vmem:[%s1 + $0x2b0] sm:$0xff]
        %v519 = vld [vmem:[%s1 + $0x2b8] sm:$0xff]
        %v520 = vld [vmem:[%s1 + $0x2c0] sm:$0xff]
        %v521 = vld [vmem:[%s1 + $0x2c8] sm:$0xff]
        %v522 = vld [vmem:[%s1 + $0x2d0] sm:$0xff]
        %v523 = vld [vmem:[%s1 + $0x2d8] sm:$0xff]
        %v524 = vld [vmem:[%s1 + $0x2e0] sm:$0xff]
        %v525 = vld [vmem:[%s1 + $0x2e8] sm:$0xff]
        %v526 = vld [vmem:[%s1 + $0x2f0] sm:$0xff]
        %v527 = vld [vmem:[%s1 + $0x2f8] sm:$0xff]
        %v528 = vld [vmem:[%s1 + $0x300] sm:$0xff]
        %v529 = vld [vmem:[%s1 + $0x308] sm:$0xff]
        %v530 = vld [vmem:[%s1 + $0x310] sm:$0xff]
        %v531 = vld [vmem:[%s1 + $0x318] sm:$0xff]
        %v532 = vld [vmem:[%s1 + $0x320] sm:$0xff]
        %v533 = vld [vmem:[%s1 + $0x328] sm:$0xff]
        %v534 = vld [vmem:[%s1 + $0x330] sm:$0xff]
        %v535 = vld [vmem:[%s1 + $0x338] sm:$0xff]
        %v536 = vld [vmem:[%s1 + $0x340] sm:$0xff]
        %v537 = vld [vmem:[%s1 + $0x348] sm:$0xff]
        %v538 = vld [vmem:[%s1 + $0x350] sm:$0xff]
        %v539 = vld [vmem:[%s1 + $0x358] sm:$0xff]
        %v540 = vld [vmem:[%s1 + $0x360] sm:$0xff]
        %v541 = vld [vmem:[%s1 + $0x368] sm:$0xff]
        %v542 = vld [vmem:[%s1 + $0x370] sm:$0xff]
        %v543 = vld [vmem:[%s1 + $0x378] sm:$0xff]
        %v544 = vld [vmem:[%s1 + $0x380] sm:$0xff]
        %v545 = vld [vmem:[%s1 + $0x388] sm:$0xff]
        %v546 = vld [vmem:[%s1 + $0x390] sm:$0xff]
        %v547 = vld [vmem:[%s1 + $0x398] sm:$0xff]
        %v548 = vld [vmem:[%s1 + $0x3a0] sm:$0xff]
        %v549 = vld [vmem:[%s1 + $0x3a8] sm:$0xff]
        %v550 = vld [vmem:[%s1 + $0x3b0] sm:$0xff]
        %v551 = vld [vmem:[%s1 + $0x3b8] sm:$0xff]
        %v552 = vld [vmem:[%s1 + $0x3c0] sm:$0xff]
        %v553 = vld [vmem:[%s1 + $0x3c8] sm:$0xff]
        %v554 = vld [vmem:[%s1 + $0x3d0] sm:$0xff]
        %v555 = vld [vmem:[%s1 + $0x3d8] sm:$0xff]
        %v556 = vld [vmem:[%s1 + $0x3e0] sm:$0xff]
        %v557 = vld [vmem:[%s1 + $0x3e8] sm:$0xff]
        %v558 = vld [vmem:[%s1 + $0x3f0] sm:$0xff]
        %v559 = vld [vmem:[%s1 + $0x3f8] sm:$0xff]
        %vm560 = vcmask 261120
        %v562 = vsel %vm560, %v432, 0
        %v565 = vsel %vm560, %v433, 0
        %v568 = vsel %vm560, %v434, 0
        %v571 = vsel %vm560, %v435, 0
        %v574 = vsel %vm560, %v436, 0
        %v577 = vsel %vm560, %v437, 0
        %v580 = vsel %vm560, %v438, 0
        %v583 = vsel %vm560, %v439, 0
        %v586 = vsel %vm560, %v440, 0
        %v589 = vsel %vm560, %v441, 0
        %v592 = vsel %vm560, %v442, 0
        %v595 = vsel %vm560, %v443, 0
        %v598 = vsel %vm560, %v444, 0
        %v601 = vsel %vm560, %v445, 0
        %v604 = vsel %vm560, %v446, 0
        %v607 = vsel %vm560, %v447, 0
        %v610 = vsel %vm560, %v448, 0
        %v613 = vsel %vm560, %v449, 0
        %v616 = vsel %vm560, %v450, 0
        %v619 = vsel %vm560, %v451, 0
        %v622 = vsel %vm560, %v452, 0
        %v625 = vsel %vm560, %v453, 0
        %v628 = vsel %vm560, %v454, 0
        %v631 = vsel %vm560, %v455, 0
        %v634 = vsel %vm560, %v456, 0
        %v637 = vsel %vm560, %v457, 0
        %v640 = vsel %vm560, %v458, 0
        %v643 = vsel %vm560, %v459, 0
        %v646 = vsel %vm560, %v460, 0
        %v649 = vsel %vm560, %v461, 0
        %v652 = vsel %vm560, %v462, 0
        %v655 = vsel %vm560, %v463, 0
        %v658 = vsel %vm560, %v464, 0
        %v661 = vsel %vm560, %v465, 0
        %v664 = vsel %vm560, %v466, 0
        %v667 = vsel %vm560, %v467, 0
        %v670 = vsel %vm560, %v468, 0
        %v673 = vsel %vm560, %v469, 0
        %v676 = vsel %vm560, %v470, 0
        %v679 = vsel %vm560, %v471, 0
        %v682 = vsel %vm560, %v472, 0
        %v685 = vsel %vm560, %v473, 0
        %v688 = vsel %vm560, %v474, 0
        %v691 = vsel %vm560, %v475, 0
        %v694 = vsel %vm560, %v476, 0
        %v697 = vsel %vm560, %v477, 0
        %v700 = vsel %vm560, %v478, 0
        %v703 = vsel %vm560, %v479, 0
        %v706 = vsel %vm560, %v480, 0
        %v709 = vsel %vm560, %v481, 0
        %v712 = vsel %vm560, %v482, 0
        %v715 = vsel %vm560, %v483, 0
        %v718 = vsel %vm560, %v484, 0
        %v721 = vsel %vm560, %v485, 0
        %v724 = vsel %vm560, %v486, 0
        %v727 = vsel %vm560, %v487, 0
        %v730 = vsel %vm560, %v488, 0
        %v733 = vsel %vm560, %v489, 0
        %v736 = vsel %vm560, %v490, 0
        %v739 = vsel %vm560, %v491, 0
        %v742 = vsel %vm560, %v492, 0
        %v745 = vsel %vm560, %v493, 0
        %v748 = vsel %vm560, %v494, 0
        %v751 = vsel %vm560, %v495, 0
        %v754 = vsel %vm560, %v496, 0
        %v757 = vsel %vm560, %v497, 0
        %v760 = vsel %vm560, %v498, 0
        %v763 = vsel %vm560, %v499, 0
        %v766 = vsel %vm560, %v500, 0
        %v769 = vsel %vm560, %v501, 0
        %v772 = vsel %vm560, %v502, 0
        %v775 = vsel %vm560, %v503, 0
        %v778 = vsel %vm560, %v504, 0
        %v781 = vsel %vm560, %v505, 0
        %v784 = vsel %vm560, %v506, 0
        %v787 = vsel %vm560, %v507, 0
        %v790 = vsel %vm560, %v508, 0
        %v793 = vsel %vm560, %v509, 0
        %v796 = vsel %vm560, %v510, 0
        %v799 = vsel %vm560, %v511, 0
        %v802 = vsel %vm560, %v512, 0
        %v805 = vsel %vm560, %v513, 0
        %v808 = vsel %vm560, %v514, 0
        %v811 = vsel %vm560, %v515, 0
        %v814 = vsel %vm560, %v516, 0
        %v817 = vsel %vm560, %v517, 0
        %v820 = vsel %vm560, %v518, 0
        %v823 = vsel %vm560, %v519, 0
        %v826 = vsel %vm560, %v520, 0
        %v829 = vsel %vm560, %v521, 0
        %v832 = vsel %vm560, %v522, 0
        %v835 = vsel %vm560, %v523, 0
        %v838 = vsel %vm560, %v524, 0
        %v841 = vsel %vm560, %v525, 0
        %v844 = vsel %vm560, %v526, 0
        %v847 = vsel %vm560, %v527, 0
        %v850 = vsel %vm560, %v528, 0
        %v853 = vsel %vm560, %v529, 0
        %v856 = vsel %vm560, %v530, 0
        %v859 = vsel %vm560, %v531, 0
        %v862 = vsel %vm560, %v532, 0
        %v865 = vsel %vm560, %v533, 0
        %v868 = vsel %vm560, %v534, 0
        %v871 = vsel %vm560, %v535, 0
        %v874 = vsel %vm560, %v536, 0
        %v877 = vsel %vm560, %v537, 0
        %v880 = vsel %vm560, %v538, 0
        %v883 = vsel %vm560, %v539, 0
        %v886 = vsel %vm560, %v540, 0
        %v889 = vsel %vm560, %v541, 0
        %v892 = vsel %vm560, %v542, 0
        %v895 = vsel %vm560, %v543, 0
        %v898 = vsel %vm560, %v544, 0
        %v901 = vsel %vm560, %v545, 0
        %v904 = vsel %vm560, %v546, 0
        %v907 = vsel %vm560, %v547, 0
        %v910 = vsel %vm560, %v548, 0
        %v913 = vsel %vm560, %v549, 0
        %v916 = vsel %vm560, %v550, 0
        %v919 = vsel %vm560, %v551, 0
        %v922 = vsel %vm560, %v552, 0
        %v925 = vsel %vm560, %v553, 0
        %v928 = vsel %vm560, %v554, 0
        %v931 = vsel %vm560, %v555, 0
        %v934 = vsel %vm560, %v556, 0
        %v937 = vsel %vm560, %v557, 0
        %v940 = vsel %vm560, %v558, 0
        %v943 = vsel %vm560, %v559, 0
        %945 = vmatprep.subr.mxu0 0.0
        %946 = vmatpush1.msra.mxu0 %v428
        %947 = vmatprep.subr.mxu0 0.0
        %948 = vmatpush1.msra.mxu0 %v429
        %949 = vmatprep.subr.mxu0 0.0
        %950 = vmatpush1.msra.mxu0 %v430
        %951 = vmatprep.subr.mxu0 0.0
        %952 = vmatpush1.msra.mxu0 %v431
        %953 = vmatprep.subr.mxu0 0.0
        %954 = vmatpush1.msra.mxu0 0.0
        %955 = vmatprep.subr.mxu0 0.0
        %956 = vmatpush1.msra.mxu0 0.0
        %957 = vmatprep.subr.mxu0 0.0
        %958 = vmatpush1.msra.mxu0 0.0
        %959 = vmatprep.subr.mxu0 0.0
        %960 = vmatpush1.msra.mxu0 0.0
        %961 = vmatprep.subr.mxu0 0.0
        %962 = vmatpush1.msra.mxu0 0.0
        %963 = vmatprep.subr.mxu0 0.0
        %964 = vmatpush1.msra.mxu0 0.0
        %965 = vmatprep.subr.mxu0 0.0
        %966 = vmatpush1.msra.mxu0 0.0
        %967 = vmatprep.subr.mxu0 0.0
        %968 = vmatpush1.msra.mxu0 0.0
        %969 = vmatprep.subr.mxu0 0.0
        %970 = vmatpush1.msra.mxu0 0.0
        %971 = vmatprep.subr.mxu0 0.0
        %972 = vmatpush1.msra.mxu0 0.0
        %973 = vmatprep.subr.mxu0 0.0
        %974 = vmatpush1.msra.mxu0 0.0
        %975 = vmatprep.subr.mxu0 0.0
        %976 = vmatpush1.msra.mxu0 0.0
        %977 = vmatprep.subr.mxu0 0.0
        %978 = vmatpush1.msra.mxu0 0.0
        %979 = vmatprep.subr.mxu0 0.0
        %980 = vmatpush1.msra.mxu0 0.0
        %981 = vmatprep.subr.mxu0 0.0
        %982 = vmatpush1.msra.mxu0 0.0
        %983 = vmatprep.subr.mxu0 0.0
        %984 = vmatpush1.msra.mxu0 0.0
        %985 = vmatprep.subr.mxu0 0.0
        %986 = vmatpush1.msra.mxu0 0.0
        %987 = vmatprep.subr.mxu0 0.0
        %988 = vmatpush1.msra.mxu0 0.0
        %989 = vmatprep.subr.mxu0 0.0
        %990 = vmatpush1.msra.mxu0 0.0
        %991 = vmatprep.subr.mxu0 0.0
        %992 = vmatpush1.msra.mxu0 0.0
        %993 = vmatprep.subr.mxu0 0.0
        %994 = vmatpush1.msra.mxu0 0.0
        %995 = vmatprep.subr.mxu0 0.0
        %996 = vmatpush1.msra.mxu0 0.0
        %997 = vmatprep.subr.mxu0 0.0
        %998 = vmatpush1.msra.mxu0 0.0
        %999 = vmatprep.subr.mxu0 0.0
        %1000 = vmatpush1.msra.mxu0 0.0
        %1001 = vmatprep.subr.mxu0 0.0
        %1002 = vmatpush1.msra.mxu0 0.0
        %1003 = vmatprep.subr.mxu0 0.0
        %1004 = vmatpush1.msra.mxu0 0.0
        %1005 = vmatprep.subr.mxu0 0.0
        %1006 = vmatpush1.msra.mxu0 0.0
        %1007 = vmatprep.subr.mxu0 0.0
        %1008 = vmatpush1.msra.mxu0 0.0
        %1009 = vmatprep.mubr.f32.mxu0 0.0
        %1010 = vmatmul.mubr.f32.gmra.mrb[0].mxu0 %v562
        %v1011 = vpop.f32.mrb[0].mxu0
        %v1012 = vadd.f32 0.0, %v1011
        %v1013 = vpop.f32.mrb[0].mxu0
        %1014 = vmatprep.mubr.f32.mxu0 0.0
        %1015 = vmatmul.mubr.f32.gmra.mrb[0].mxu0 %v565
        %v1016 = vpop.f32.mrb[0].mxu0
        %v1017 = vadd.f32 0.0, %v1016
        %v1018 = vpop.f32.mrb[0].mxu0
        %1019 = vmatprep.mubr.f32.mxu0 0.0
        %1020 = vmatmul.mubr.f32.gmra.mrb[0].mxu0 %v568
        %v1021 = vpop.f32.mrb[0].mxu0
        %v1022 = vadd.f32 0.0, %v1021
        %v1023 = vpop.f32.mrb[0].mxu0
        %1024 = vmatprep.mubr.f32.mxu0 0.0
        %1025 = vmatmul.mubr.f32.gmra.mrb[0].mxu0 %v571
        %v1026 = vpop.f32.mrb[0].mxu0
        %v1027 = vadd.f32 0.0, %v1026
        %v1028 = vpop.f32.mrb[0].mxu0
        %1029 = vmatprep.mubr.f32.mxu0 0.0
        %1030 = vmatmul.mubr.f32.gmra.mrb[0].mxu0 %v574
        %v1031 = vpop.f32.mrb[0].mxu0
        %v1032 = vadd.f32 0.0, %v1031
        %v1033 = vpop.f32.mrb[0].mxu0
        %1034 = vmatprep.mubr.f32.mxu0 0.0
        %1035 = vmatmul.mubr.f32.gmra.mrb[0].mxu0 %v577
        %v1036 = vpop.f32.mrb[0].mxu0
        %v1037 = vadd.f32 0.0, %v1036
        %v1038 = vpop.f32.mrb[0].mxu0
        %1039 = vmatprep.mubr.f32.mxu0 0.0
        %1040 = vmatmul.mubr.f32.gmra.mrb[0].mxu0 %v580
        %v1041 = vpop.f32.mrb[0].mxu0
        %v1042 = vadd.f32 0.0, %v1041
        %v1043 = vpop.f32.mrb[0].mxu0
        %1044 = vmatprep.mubr.f32.mxu0 0.0
        %1045 = vmatmul.mubr.f32.gmra.mrb[0].mxu0 %v583
        %v1046 = vpop.f32.mrb[0].mxu0
        %v1047 = vadd.f32 0.0, %v1046
        %v1048 = vpop.f32.mrb[0].mxu0
        %1049 = vmatprep.mubr.f32.mxu0 0.0
        %1050 = vmatmul.mubr.f32.gmra.mrb[0].mxu0 %v586
        %v1051 = vpop.f32.mrb[0].mxu0
        %v1052 = vadd.f32 0.0, %v1051
        %v1053 = vpop.f32.mrb[0].mxu0
        %1054 = vmatprep.mubr.f32.mxu0 0.0
        %1055 = vmatmul.mubr.f32.gmra.mrb[0].mxu0 %v589
        %v1056 = vpop.f32.mrb[0].mxu0
        %v1057 = vadd.f32 0.0, %v1056
        %v1058 = vpop.f32.mrb[0].mxu0
        %1059 = vmatprep.mubr.f32.mxu0 0.0
        %1060 = vmatmul.mubr.f32.gmra.mrb[0].mxu0 %v592
        %v1061 = vpop.f32.mrb[0].mxu0
        %v1062 = vadd.f32 0.0, %v1061
        %v1063 = vpop.f32.mrb[0].mxu0
        %1064 = vmatprep.mubr.f32.mxu0 0.0
        %1065 = vmatmul.mubr.f32.gmra.mrb[0].mxu0 %v595
        %v1066 = vpop.f32.mrb[0].mxu0
        %v1067 = vadd.f32 0.0, %v1066
        %v1068 = vpop.f32.mrb[0].mxu0
        %1069 = vmatprep.mubr.f32.mxu0 0.0
        %1070 = vmatmul.mubr.f32.gmra.mrb[0].mxu0 %v598
        %v1071 = vpop.f32.mrb[0].mxu0
        %v1072 = vadd.f32 0.0, %v1071
        %v1073 = vpop.f32.mrb[0].mxu0
        %1074 = vmatprep.mubr.f32.mxu0 0.0
        %1075 = vmatmul.mubr.f32.gmra.mrb[0].mxu0 %v601
        %v1076 = vpop.f32.mrb[0].mxu0
        %v1077 = vadd.f32 0.0, %v1076
        %v1078 = vpop.f32.mrb[0].mxu0
        %1079 = vmatprep.mubr.f32.mxu0 0.0
        %1080 = vmatmul.mubr.f32.gmra.mrb[0].mxu0 %v604
        %v1081 = vpop.f32.mrb[0].mxu0
        %v1082 = vadd.f32 0.0, %v1081
        %v1083 = vpop.f32.mrb[0].mxu0
        %1084 = vmatprep.mubr.f32.mxu0 0.0
        %1085 = vmatmul.mubr.f32.gmra.mrb[0].mxu0 %v607
        %v1086 = vpop.f32.mrb[0].mxu0
        %v1087 = vadd.f32 0.0, %v1086
        %v1088 = vpop.f32.mrb[0].mxu0
        %1089 = vmatprep.mubr.f32.mxu0 0.0
        %1090 = vmatmul.mubr.f32.gmra.mrb[0].mxu0 %v610
        %v1091 = vpop.f32.mrb[0].mxu0
        %v1092 = vadd.f32 0.0, %v1091
        %v1093 = vpop.f32.mrb[0].mxu0
        %1094 = vmatprep.mubr.f32.mxu0 0.0
        %1095 = vmatmul.mubr.f32.gmra.mrb[0].mxu0 %v613
        %v1096 = vpop.f32.mrb[0].mxu0
        %v1097 = vadd.f32 0.0, %v1096
        %v1098 = vpop.f32.mrb[0].mxu0
        %1099 = vmatprep.mubr.f32.mxu0 0.0
        %1100 = vmatmul.mubr.f32.gmra.mrb[0].mxu0 %v616
        %v1101 = vpop.f32.mrb[0].mxu0
        %v1102 = vadd.f32 0.0, %v1101
        %v1103 = vpop.f32.mrb[0].mxu0
        %1104 = vmatprep.mubr.f32.mxu0 0.0
        %1105 = vmatmul.mubr.f32.gmra.mrb[0].mxu0 %v619
        %v1106 = vpop.f32.mrb[0].mxu0
        %v1107 = vadd.f32 0.0, %v1106
        %v1108 = vpop.f32.mrb[0].mxu0
        %1109 = vmatprep.mubr.f32.mxu0 0.0
        %1110 = vmatmul.mubr.f32.gmra.mrb[0].mxu0 %v622
        %v1111 = vpop.f32.mrb[0].mxu0
        %v1112 = vadd.f32 0.0, %v1111
        %v1113 = vpop.f32.mrb[0].mxu0
        %1114 = vmatprep.mubr.f32.mxu0 0.0
        %1115 = vmatmul.mubr.f32.gmra.mrb[0].mxu0 %v625
        %v1116 = vpop.f32.mrb[0].mxu0
        %v1117 = vadd.f32 0.0, %v1116
        %v1118 = vpop.f32.mrb[0].mxu0
        %1119 = vmatprep.mubr.f32.mxu0 0.0
        %1120 = vmatmul.mubr.f32.gmra.mrb[0].mxu0 %v628
        %v1121 = vpop.f32.mrb[0].mxu0
        %v1122 = vadd.f32 0.0, %v1121
        %v1123 = vpop.f32.mrb[0].mxu0
        %1124 = vmatprep.mubr.f32.mxu0 0.0
        %1125 = vmatmul.mubr.f32.gmra.mrb[0].mxu0 %v631
        %v1126 = vpop.f32.mrb[0].mxu0
        %v1127 = vadd.f32 0.0, %v1126
        %v1128 = vpop.f32.mrb[0].mxu0
        %1129 = vmatprep.mubr.f32.mxu0 0.0
        %1130 = vmatmul.mubr.f32.gmra.mrb[0].mxu0 %v634
        %v1131 = vpop.f32.mrb[0].mxu0
        %v1132 = vadd.f32 0.0, %v1131
        %v1133 = vpop.f32.mrb[0].mxu0
        %1134 = vmatprep.mubr.f32.mxu0 0.0
        %1135 = vmatmul.mubr.f32.gmra.mrb[0].mxu0 %v637
        %v1136 = vpop.f32.mrb[0].mxu0
        %v1137 = vadd.f32 0.0, %v1136
        %v1138 = vpop.f32.mrb[0].mxu0
        %1139 = vmatprep.mubr.f32.mxu0 0.0
        %1140 = vmatmul.mubr.f32.gmra.mrb[0].mxu0 %v640
        %v1141 = vpop.f32.mrb[0].mxu0
        %v1142 = vadd.f32 0.0, %v1141
        %v1143 = vpop.f32.mrb[0].mxu0
        %1144 = vmatprep.mubr.f32.mxu0 0.0
        %1145 = vmatmul.mubr.f32.gmra.mrb[0].mxu0 %v643
        %v1146 = vpop.f32.mrb[0].mxu0
        %v1147 = vadd.f32 0.0, %v1146
        %v1148 = vpop.f32.mrb[0].mxu0
        %1149 = vmatprep.mubr.f32.mxu0 0.0
        %1150 = vmatmul.mubr.f32.gmra.mrb[0].mxu0 %v646
        %v1151 = vpop.f32.mrb[0].mxu0
        %v1152 = vadd.f32 0.0, %v1151
        %v1153 = vpop.f32.mrb[0].mxu0
        %1154 = vmatprep.mubr.f32.mxu0 0.0
        %1155 = vmatmul.mubr.f32.gmra.mrb[0].mxu0 %v649
        %v1156 = vpop.f32.mrb[0].mxu0
        %v1157 = vadd.f32 0.0, %v1156
        %v1158 = vpop.f32.mrb[0].mxu0
        %1159 = vmatprep.mubr.f32.mxu0 0.0
        %1160 = vmatmul.mubr.f32.gmra.mrb[0].mxu0 %v652
        %v1161 = vpop.f32.mrb[0].mxu0
        %v1162 = vadd.f32 0.0, %v1161
        %v1163 = vpop.f32.mrb[0].mxu0
        %1164 = vmatprep.mubr.f32.mxu0 0.0
        %1165 = vmatmul.mubr.f32.gmra.mrb[0].mxu0 %v655
        %v1166 = vpop.f32.mrb[0].mxu0
        %v1167 = vadd.f32 0.0, %v1166
        %v1168 = vpop.f32.mrb[0].mxu0
        %1169 = vmatprep.mubr.f32.mxu0 0.0
        %1170 = vmatmul.mubr.f32.gmra.mrb[0].mxu0 %v658
        %v1171 = vpop.f32.mrb[0].mxu0
        %v1172 = vadd.f32 0.0, %v1171
        %v1173 = vpop.f32.mrb[0].mxu0
        %1174 = vmatprep.mubr.f32.mxu0 0.0
        %1175 = vmatmul.mubr.f32.gmra.mrb[0].mxu0 %v661
        %v1176 = vpop.f32.mrb[0].mxu0
        %v1177 = vadd.f32 0.0, %v1176
        %v1178 = vpop.f32.mrb[0].mxu0
        %1179 = vmatprep.mubr.f32.mxu0 0.0
        %1180 = vmatmul.mubr.f32.gmra.mrb[0].mxu0 %v664
        %v1181 = vpop.f32.mrb[0].mxu0
        %v1182 = vadd.f32 0.0, %v1181
        %v1183 = vpop.f32.mrb[0].mxu0
        %1184 = vmatprep.mubr.f32.mxu0 0.0
        %1185 = vmatmul.mubr.f32.gmra.mrb[0].mxu0 %v667
        %v1186 = vpop.f32.mrb[0].mxu0
        %v1187 = vadd.f32 0.0, %v1186
        %v1188 = vpop.f32.mrb[0].mxu0
        %1189 = vmatprep.mubr.f32.mxu0 0.0
        %1190 = vmatmul.mubr.f32.gmra.mrb[0].mxu0 %v670
        %v1191 = vpop.f32.mrb[0].mxu0
        %v1192 = vadd.f32 0.0, %v1191
        %v1193 = vpop.f32.mrb[0].mxu0
        %1194 = vmatprep.mubr.f32.mxu0 0.0
        %1195 = vmatmul.mubr.f32.gmra.mrb[0].mxu0 %v673
        %v1196 = vpop.f32.mrb[0].mxu0
        %v1197 = vadd.f32 0.0, %v1196
        %v1198 = vpop.f32.mrb[0].mxu0
        %1199 = vmatprep.mubr.f32.mxu0 0.0
        %1200 = vmatmul.mubr.f32.gmra.mrb[0].mxu0 %v676
        %v1201 = vpop.f32.mrb[0].mxu0
        %v1202 = vadd.f32 0.0, %v1201
        %v1203 = vpop.f32.mrb[0].mxu0
        %1204 = vmatprep.mubr.f32.mxu0 0.0
        %1205 = vmatmul.mubr.f32.gmra.mrb[0].mxu0 %v679
        %v1206 = vpop.f32.mrb[0].mxu0
        %v1207 = vadd.f32 0.0, %v1206
        %v1208 = vpop.f32.mrb[0].mxu0
        %1209 = vmatprep.mubr.f32.mxu0 0.0
        %1210 = vmatmul.mubr.f32.gmra.mrb[0].mxu0 %v682
        %v1211 = vpop.f32.mrb[0].mxu0
        %v1212 = vadd.f32 0.0, %v1211
        %v1213 = vpop.f32.mrb[0].mxu0
        %1214 = vmatprep.mubr.f32.mxu0 0.0
        %1215 = vmatmul.mubr.f32.gmra.mrb[0].mxu0 %v685
        %v1216 = vpop.f32.mrb[0].mxu0
        %v1217 = vadd.f32 0.0, %v1216
        %v1218 = vpop.f32.mrb[0].mxu0
        %1219 = vmatprep.mubr.f32.mxu0 0.0
        %1220 = vmatmul.mubr.f32.gmra.mrb[0].mxu0 %v688
        %v1221 = vpop.f32.mrb[0].mxu0
        %v1222 = vadd.f32 0.0, %v1221
        %v1223 = vpop.f32.mrb[0].mxu0
        %1224 = vmatprep.mubr.f32.mxu0 0.0
        %1225 = vmatmul.mubr.f32.gmra.mrb[0].mxu0 %v691
        %v1226 = vpop.f32.mrb[0].mxu0
        %v1227 = vadd.f32 0.0, %v1226
        %v1228 = vpop.f32.mrb[0].mxu0
        %1229 = vmatprep.mubr.f32.mxu0 0.0
        %1230 = vmatmul.mubr.f32.gmra.mrb[0].mxu0 %v694
        %v1231 = vpop.f32.mrb[0].mxu0
        %v1232 = vadd.f32 0.0, %v1231
        %v1233 = vpop.f32.mrb[0].mxu0
        %1234 = vmatprep.mubr.f32.mxu0 0.0
        %1235 = vmatmul.mubr.f32.gmra.mrb[0].mxu0 %v697
        %v1236 = vpop.f32.mrb[0].mxu0
        %v1237 = vadd.f32 0.0, %v1236
        %v1238 = vpop.f32.mrb[0].mxu0
        %1239 = vmatprep.mubr.f32.mxu0 0.0
        %1240 = vmatmul.mubr.f32.gmra.mrb[0].mxu0 %v700
        %v1241 = vpop.f32.mrb[0].mxu0
        %v1242 = vadd.f32 0.0, %v1241
        %v1243 = vpop.f32.mrb[0].mxu0
        %1244 = vmatprep.mubr.f32.mxu0 0.0
        %1245 = vmatmul.mubr.f32.gmra.mrb[0].mxu0 %v703
        %v1246 = vpop.f32.mrb[0].mxu0
        %v1247 = vadd.f32 0.0, %v1246
        %v1248 = vpop.f32.mrb[0].mxu0
        %1249 = vmatprep.mubr.f32.mxu0 0.0
        %1250 = vmatmul.mubr.f32.gmra.mrb[0].mxu0 %v706
        %v1251 = vpop.f32.mrb[0].mxu0
        %v1252 = vadd.f32 0.0, %v1251
        %v1253 = vpop.f32.mrb[0].mxu0
        %1254 = vmatprep.mubr.f32.mxu0 0.0
        %1255 = vmatmul.mubr.f32.gmra.mrb[0].mxu0 %v709
        %v1256 = vpop.f32.mrb[0].mxu0
        %v1257 = vadd.f32 0.0, %v1256
        %v1258 = vpop.f32.mrb[0].mxu0
        %1259 = vmatprep.mubr.f32.mxu0 0.0
        %1260 = vmatmul.mubr.f32.gmra.mrb[0].mxu0 %v712
        %v1261 = vpop.f32.mrb[0].mxu0
        %v1262 = vadd.f32 0.0, %v1261
        %v1263 = vpop.f32.mrb[0].mxu0
        %1264 = vmatprep.mubr.f32.mxu0 0.0
        %1265 = vmatmul.mubr.f32.gmra.mrb[0].mxu0 %v715
        %v1266 = vpop.f32.mrb[0].mxu0
        %v1267 = vadd.f32 0.0, %v1266
        %v1268 = vpop.f32.mrb[0].mxu0
        %1269 = vmatprep.mubr.f32.mxu0 0.0
        %1270 = vmatmul.mubr.f32.gmra.mrb[0].mxu0 %v718
        %v1271 = vpop.f32.mrb[0].mxu0
        %v1272 = vadd.f32 0.0, %v1271
        %v1273 = vpop.f32.mrb[0].mxu0
        %1274 = vmatprep.mubr.f32.mxu0 0.0
        %1275 = vmatmul.mubr.f32.gmra.mrb[0].mxu0 %v721
        %v1276 = vpop.f32.mrb[0].mxu0
        %v1277 = vadd.f32 0.0, %v1276
        %v1278 = vpop.f32.mrb[0].mxu0
        %1279 = vmatprep.mubr.f32.mxu0 0.0
        %1280 = vmatmul.mubr.f32.gmra.mrb[0].mxu0 %v724
        %v1281 = vpop.f32.mrb[0].mxu0
        %v1282 = vadd.f32 0.0, %v1281
        %v1283 = vpop.f32.mrb[0].mxu0
        %1284 = vmatprep.mubr.f32.mxu0 0.0
        %1285 = vmatmul.mubr.f32.gmra.mrb[0].mxu0 %v727
        %v1286 = vpop.f32.mrb[0].mxu0
        %v1287 = vadd.f32 0.0, %v1286
        %v1288 = vpop.f32.mrb[0].mxu0
        %1289 = vmatprep.mubr.f32.mxu0 0.0
        %1290 = vmatmul.mubr.f32.gmra.mrb[0].mxu0 %v730
        %v1291 = vpop.f32.mrb[0].mxu0
        %v1292 = vadd.f32 0.0, %v1291
        %v1293 = vpop.f32.mrb[0].mxu0
        %1294 = vmatprep.mubr.f32.mxu0 0.0
        %1295 = vmatmul.mubr.f32.gmra.mrb[0].mxu0 %v733
        %v1296 = vpop.f32.mrb[0].mxu0
        %v1297 = vadd.f32 0.0, %v1296
        %v1298 = vpop.f32.mrb[0].mxu0
        %1299 = vmatprep.mubr.f32.mxu0 0.0
        %1300 = vmatmul.mubr.f32.gmra.mrb[0].mxu0 %v736
        %v1301 = vpop.f32.mrb[0].mxu0
        %v1302 = vadd.f32 0.0, %v1301
        %v1303 = vpop.f32.mrb[0].mxu0
        %1304 = vmatprep.mubr.f32.mxu0 0.0
        %1305 = vmatmul.mubr.f32.gmra.mrb[0].mxu0 %v739
        %v1306 = vpop.f32.mrb[0].mxu0
        %v1307 = vadd.f32 0.0, %v1306
        %v1308 = vpop.f32.mrb[0].mxu0
        %1309 = vmatprep.mubr.f32.mxu0 0.0
        %1310 = vmatmul.mubr.f32.gmra.mrb[0].mxu0 %v742
        %v1311 = vpop.f32.mrb[0].mxu0
        %v1312 = vadd.f32 0.0, %v1311
        %v1313 = vpop.f32.mrb[0].mxu0
        %1314 = vmatprep.mubr.f32.mxu0 0.0
        %1315 = vmatmul.mubr.f32.gmra.mrb[0].mxu0 %v745
        %v1316 = vpop.f32.mrb[0].mxu0
        %v1317 = vadd.f32 0.0, %v1316
        %v1318 = vpop.f32.mrb[0].mxu0
        %1319 = vmatprep.mubr.f32.mxu0 0.0
        %1320 = vmatmul.mubr.f32.gmra.mrb[0].mxu0 %v748
        %v1321 = vpop.f32.mrb[0].mxu0
        %v1322 = vadd.f32 0.0, %v1321
        %v1323 = vpop.f32.mrb[0].mxu0
        %1324 = vmatprep.mubr.f32.mxu0 0.0
        %1325 = vmatmul.mubr.f32.gmra.mrb[0].mxu0 %v751
        %v1326 = vpop.f32.mrb[0].mxu0
        %v1327 = vadd.f32 0.0, %v1326
        %v1328 = vpop.f32.mrb[0].mxu0
        %1329 = vmatprep.mubr.f32.mxu0 0.0
        %1330 = vmatmul.mubr.f32.gmra.mrb[0].mxu0 %v754
        %v1331 = vpop.f32.mrb[0].mxu0
        %v1332 = vadd.f32 0.0, %v1331
        %v1333 = vpop.f32.mrb[0].mxu0
        %1334 = vmatprep.mubr.f32.mxu0 0.0
        %1335 = vmatmul.mubr.f32.gmra.mrb[0].mxu0 %v757
        %v1336 = vpop.f32.mrb[0].mxu0
        %v1337 = vadd.f32 0.0, %v1336
        %v1338 = vpop.f32.mrb[0].mxu0
        %1339 = vmatprep.mubr.f32.mxu0 0.0
        %1340 = vmatmul.mubr.f32.gmra.mrb[0].mxu0 %v760
        %v1341 = vpop.f32.mrb[0].mxu0
        %v1342 = vadd.f32 0.0, %v1341
        %v1343 = vpop.f32.mrb[0].mxu0
        %1344 = vmatprep.mubr.f32.mxu0 0.0
        %1345 = vmatmul.mubr.f32.gmra.mrb[0].mxu0 %v763
        %v1346 = vpop.f32.mrb[0].mxu0
        %v1347 = vadd.f32 0.0, %v1346
        %v1348 = vpop.f32.mrb[0].mxu0
        %1349 = vmatprep.mubr.f32.mxu0 0.0
        %1350 = vmatmul.mubr.f32.gmra.mrb[0].mxu0 %v766
        %v1351 = vpop.f32.mrb[0].mxu0
        %v1352 = vadd.f32 0.0, %v1351
        %v1353 = vpop.f32.mrb[0].mxu0
        %1354 = vmatprep.mubr.f32.mxu0 0.0
        %1355 = vmatmul.mubr.f32.gmra.mrb[0].mxu0 %v769
        %v1356 = vpop.f32.mrb[0].mxu0
        %v1357 = vadd.f32 0.0, %v1356
        %v1358 = vpop.f32.mrb[0].mxu0
        %1359 = vmatprep.mubr.f32.mxu0 0.0
        %1360 = vmatmul.mubr.f32.gmra.mrb[0].mxu0 %v772
        %v1361 = vpop.f32.mrb[0].mxu0
        %v1362 = vadd.f32 0.0, %v1361
        %v1363 = vpop.f32.mrb[0].mxu0
        %1364 = vmatprep.mubr.f32.mxu0 0.0
        %1365 = vmatmul.mubr.f32.gmra.mrb[0].mxu0 %v775
        %v1366 = vpop.f32.mrb[0].mxu0
        %v1367 = vadd.f32 0.0, %v1366
        %v1368 = vpop.f32.mrb[0].mxu0
        %1369 = vmatprep.mubr.f32.mxu0 0.0
        %1370 = vmatmul.mubr.f32.gmra.mrb[0].mxu0 %v778
        %v1371 = vpop.f32.mrb[0].mxu0
        %v1372 = vadd.f32 0.0, %v1371
        %v1373 = vpop.f32.mrb[0].mxu0
        %1374 = vmatprep.mubr.f32.mxu0 0.0
        %1375 = vmatmul.mubr.f32.gmra.mrb[0].mxu0 %v781
        %v1376 = vpop.f32.mrb[0].mxu0
        %v1377 = vadd.f32 0.0, %v1376
        %v1378 = vpop.f32.mrb[0].mxu0
        %1379 = vmatprep.mubr.f32.mxu0 0.0
        %1380 = vmatmul.mubr.f32.gmra.mrb[0].mxu0 %v784
        %v1381 = vpop.f32.mrb[0].mxu0
        %v1382 = vadd.f32 0.0, %v1381
        %v1383 = vpop.f32.mrb[0].mxu0
        %1384 = vmatprep.mubr.f32.mxu0 0.0
        %1385 = vmatmul.mubr.f32.gmra.mrb[0].mxu0 %v787
        %v1386 = vpop.f32.mrb[0].mxu0
        %v1387 = vadd.f32 0.0, %v1386
        %v1388 = vpop.f32.mrb[0].mxu0
        %1389 = vmatprep.mubr.f32.mxu0 0.0
        %1390 = vmatmul.mubr.f32.gmra.mrb[0].mxu0 %v790
        %v1391 = vpop.f32.mrb[0].mxu0
        %v1392 = vadd.f32 0.0, %v1391
        %v1393 = vpop.f32.mrb[0].mxu0
        %1394 = vmatprep.mubr.f32.mxu0 0.0
        %1395 = vmatmul.mubr.f32.gmra.mrb[0].mxu0 %v793
        %v1396 = vpop.f32.mrb[0].mxu0
        %v1397 = vadd.f32 0.0, %v1396
        %v1398 = vpop.f32.mrb[0].mxu0
        %1399 = vmatprep.mubr.f32.mxu0 0.0
        %1400 = vmatmul.mubr.f32.gmra.mrb[0].mxu0 %v796
        %v1401 = vpop.f32.mrb[0].mxu0
        %v1402 = vadd.f32 0.0, %v1401
        %v1403 = vpop.f32.mrb[0].mxu0
        %1404 = vmatprep.mubr.f32.mxu0 0.0
        %1405 = vmatmul.mubr.f32.gmra.mrb[0].mxu0 %v799
        %v1406 = vpop.f32.mrb[0].mxu0
        %v1407 = vadd.f32 0.0, %v1406
        %v1408 = vpop.f32.mrb[0].mxu0
        %1409 = vmatprep.mubr.f32.mxu0 0.0
        %1410 = vmatmul.mubr.f32.gmra.mrb[0].mxu0 %v802
        %v1411 = vpop.f32.mrb[0].mxu0
        %v1412 = vadd.f32 0.0, %v1411
        %v1413 = vpop.f32.mrb[0].mxu0
        %1414 = vmatprep.mubr.f32.mxu0 0.0
        %1415 = vmatmul.mubr.f32.gmra.mrb[0].mxu0 %v805
        %v1416 = vpop.f32.mrb[0].mxu0
        %v1417 = vadd.f32 0.0, %v1416
        %v1418 = vpop.f32.mrb[0].mxu0
        %1419 = vmatprep.mubr.f32.mxu0 0.0
        %1420 = vmatmul.mubr.f32.gmra.mrb[0].mxu0 %v808
        %v1421 = vpop.f32.mrb[0].mxu0
        %v1422 = vadd.f32 0.0, %v1421
        %v1423 = vpop.f32.mrb[0].mxu0
        %1424 = vmatprep.mubr.f32.mxu0 0.0
        %1425 = vmatmul.mubr.f32.gmra.mrb[0].mxu0 %v811
        %v1426 = vpop.f32.mrb[0].mxu0
        %v1427 = vadd.f32 0.0, %v1426
        %v1428 = vpop.f32.mrb[0].mxu0
        %1429 = vmatprep.mubr.f32.mxu0 0.0
        %1430 = vmatmul.mubr.f32.gmra.mrb[0].mxu0 %v814
        %v1431 = vpop.f32.mrb[0].mxu0
        %v1432 = vadd.f32 0.0, %v1431
        %v1433 = vpop.f32.mrb[0].mxu0
        %1434 = vmatprep.mubr.f32.mxu0 0.0
        %1435 = vmatmul.mubr.f32.gmra.mrb[0].mxu0 %v817
        %v1436 = vpop.f32.mrb[0].mxu0
        %v1437 = vadd.f32 0.0, %v1436
        %v1438 = vpop.f32.mrb[0].mxu0
        %1439 = vmatprep.mubr.f32.mxu0 0.0
        %1440 = vmatmul.mubr.f32.gmra.mrb[0].mxu0 %v820
        %v1441 = vpop.f32.mrb[0].mxu0
        %v1442 = vadd.f32 0.0, %v1441
        %v1443 = vpop.f32.mrb[0].mxu0
        %1444 = vmatprep.mubr.f32.mxu0 0.0
        %1445 = vmatmul.mubr.f32.gmra.mrb[0].mxu0 %v823
        %v1446 = vpop.f32.mrb[0].mxu0
        %v1447 = vadd.f32 0.0, %v1446
        %v1448 = vpop.f32.mrb[0].mxu0
        %1449 = vmatprep.mubr.f32.mxu0 0.0
        %1450 = vmatmul.mubr.f32.gmra.mrb[0].mxu0 %v826
        %v1451 = vpop.f32.mrb[0].mxu0
        %v1452 = vadd.f32 0.0, %v1451
        %v1453 = vpop.f32.mrb[0].mxu0
        %1454 = vmatprep.mubr.f32.mxu0 0.0
        %1455 = vmatmul.mubr.f32.gmra.mrb[0].mxu0 %v829
        %v1456 = vpop.f32.mrb[0].mxu0
        %v1457 = vadd.f32 0.0, %v1456
        %v1458 = vpop.f32.mrb[0].mxu0
        %1459 = vmatprep.mubr.f32.mxu0 0.0
        %1460 = vmatmul.mubr.f32.gmra.mrb[0].mxu0 %v832
        %v1461 = vpop.f32.mrb[0].mxu0
        %v1462 = vadd.f32 0.0, %v1461
        %v1463 = vpop.f32.mrb[0].mxu0
        %1464 = vmatprep.mubr.f32.mxu0 0.0
        %1465 = vmatmul.mubr.f32.gmra.mrb[0].mxu0 %v835
        %v1466 = vpop.f32.mrb[0].mxu0
        %v1467 = vadd.f32 0.0, %v1466
        %v1468 = vpop.f32.mrb[0].mxu0
        %1469 = vmatprep.mubr.f32.mxu0 0.0
        %1470 = vmatmul.mubr.f32.gmra.mrb[0].mxu0 %v838
        %v1471 = vpop.f32.mrb[0].mxu0
        %v1472 = vadd.f32 0.0, %v1471
        %v1473 = vpop.f32.mrb[0].mxu0
        %1474 = vmatprep.mubr.f32.mxu0 0.0
        %1475 = vmatmul.mubr.f32.gmra.mrb[0].mxu0 %v841
        %v1476 = vpop.f32.mrb[0].mxu0
        %v1477 = vadd.f32 0.0, %v1476
        %v1478 = vpop.f32.mrb[0].mxu0
        %1479 = vmatprep.mubr.f32.mxu0 0.0
        %1480 = vmatmul.mubr.f32.gmra.mrb[0].mxu0 %v844
        %v1481 = vpop.f32.mrb[0].mxu0
        %v1482 = vadd.f32 0.0, %v1481
        %v1483 = vpop.f32.mrb[0].mxu0
        %1484 = vmatprep.mubr.f32.mxu0 0.0
        %1485 = vmatmul.mubr.f32.gmra.mrb[0].mxu0 %v847
        %v1486 = vpop.f32.mrb[0].mxu0
        %v1487 = vadd.f32 0.0, %v1486
        %v1488 = vpop.f32.mrb[0].mxu0
        %1489 = vmatprep.mubr.f32.mxu0 0.0
        %1490 = vmatmul.mubr.f32.gmra.mrb[0].mxu0 %v850
        %v1491 = vpop.f32.mrb[0].mxu0
        %v1492 = vadd.f32 0.0, %v1491
        %v1493 = vpop.f32.mrb[0].mxu0
        %1494 = vmatprep.mubr.f32.mxu0 0.0
        %1495 = vmatmul.mubr.f32.gmra.mrb[0].mxu0 %v853
        %v1496 = vpop.f32.mrb[0].mxu0
        %v1497 = vadd.f32 0.0, %v1496
        %v1498 = vpop.f32.mrb[0].mxu0
        %1499 = vmatprep.mubr.f32.mxu0 0.0
        %1500 = vmatmul.mubr.f32.gmra.mrb[0].mxu0 %v856
        %v1501 = vpop.f32.mrb[0].mxu0
        %v1502 = vadd.f32 0.0, %v1501
        %v1503 = vpop.f32.mrb[0].mxu0
        %1504 = vmatprep.mubr.f32.mxu0 0.0
        %1505 = vmatmul.mubr.f32.gmra.mrb[0].mxu0 %v859
        %v1506 = vpop.f32.mrb[0].mxu0
        %v1507 = vadd.f32 0.0, %v1506
        %v1508 = vpop.f32.mrb[0].mxu0
        %1509 = vmatprep.mubr.f32.mxu0 0.0
        %1510 = vmatmul.mubr.f32.gmra.mrb[0].mxu0 %v862
        %v1511 = vpop.f32.mrb[0].mxu0
        %v1512 = vadd.f32 0.0, %v1511
        %v1513 = vpop.f32.mrb[0].mxu0
        %1514 = vmatprep.mubr.f32.mxu0 0.0
        %1515 = vmatmul.mubr.f32.gmra.mrb[0].mxu0 %v865
        %v1516 = vpop.f32.mrb[0].mxu0
        %v1517 = vadd.f32 0.0, %v1516
        %v1518 = vpop.f32.mrb[0].mxu0
        %1519 = vmatprep.mubr.f32.mxu0 0.0
        %1520 = vmatmul.mubr.f32.gmra.mrb[0].mxu0 %v868
        %v1521 = vpop.f32.mrb[0].mxu0
        %v1522 = vadd.f32 0.0, %v1521
        %v1523 = vpop.f32.mrb[0].mxu0
        %1524 = vmatprep.mubr.f32.mxu0 0.0
        %1525 = vmatmul.mubr.f32.gmra.mrb[0].mxu0 %v871
        %v1526 = vpop.f32.mrb[0].mxu0
        %v1527 = vadd.f32 0.0, %v1526
        %v1528 = vpop.f32.mrb[0].mxu0
        %1529 = vmatprep.mubr.f32.mxu0 0.0
        %1530 = vmatmul.mubr.f32.gmra.mrb[0].mxu0 %v874
        %v1531 = vpop.f32.mrb[0].mxu0
        %v1532 = vadd.f32 0.0, %v1531
        %v1533 = vpop.f32.mrb[0].mxu0
        %1534 = vmatprep.mubr.f32.mxu0 0.0
        %1535 = vmatmul.mubr.f32.gmra.mrb[0].mxu0 %v877
        %v1536 = vpop.f32.mrb[0].mxu0
        %v1537 = vadd.f32 0.0, %v1536
        %v1538 = vpop.f32.mrb[0].mxu0
        %1539 = vmatprep.mubr.f32.mxu0 0.0
        %1540 = vmatmul.mubr.f32.gmra.mrb[0].mxu0 %v880
        %v1541 = vpop.f32.mrb[0].mxu0
        %v1542 = vadd.f32 0.0, %v1541
        %v1543 = vpop.f32.mrb[0].mxu0
        %1544 = vmatprep.mubr.f32.mxu0 0.0
        %1545 = vmatmul.mubr.f32.gmra.mrb[0].mxu0 %v883
        %v1546 = vpop.f32.mrb[0].mxu0
        %v1547 = vadd.f32 0.0, %v1546
        %v1548 = vpop.f32.mrb[0].mxu0
        %1549 = vmatprep.mubr.f32.mxu0 0.0
        %1550 = vmatmul.mubr.f32.gmra.mrb[0].mxu0 %v886
        %v1551 = vpop.f32.mrb[0].mxu0
        %v1552 = vadd.f32 0.0, %v1551
        %v1553 = vpop.f32.mrb[0].mxu0
        %1554 = vmatprep.mubr.f32.mxu0 0.0
        %1555 = vmatmul.mubr.f32.gmra.mrb[0].mxu0 %v889
        %v1556 = vpop.f32.mrb[0].mxu0
        %v1557 = vadd.f32 0.0, %v1556
        %v1558 = vpop.f32.mrb[0].mxu0
        %1559 = vmatprep.mubr.f32.mxu0 0.0
        %1560 = vmatmul.mubr.f32.gmra.mrb[0].mxu0 %v892
        %v1561 = vpop.f32.mrb[0].mxu0
        %v1562 = vadd.f32 0.0, %v1561
        %v1563 = vpop.f32.mrb[0].mxu0
        %1564 = vmatprep.mubr.f32.mxu0 0.0
        %1565 = vmatmul.mubr.f32.gmra.mrb[0].mxu0 %v895
        %v1566 = vpop.f32.mrb[0].mxu0
        %v1567 = vadd.f32 0.0, %v1566
        %v1568 = vpop.f32.mrb[0].mxu0
        %1569 = vmatprep.mubr.f32.mxu0 0.0
        %1570 = vmatmul.mubr.f32.gmra.mrb[0].mxu0 %v898
        %v1571 = vpop.f32.mrb[0].mxu0
        %v1572 = vadd.f32 0.0, %v1571
        %v1573 = vpop.f32.mrb[0].mxu0
        %1574 = vmatprep.mubr.f32.mxu0 0.0
        %1575 = vmatmul.mubr.f32.gmra.mrb[0].mxu0 %v901
        %v1576 = vpop.f32.mrb[0].mxu0
        %v1577 = vadd.f32 0.0, %v1576
        %v1578 = vpop.f32.mrb[0].mxu0
        %1579 = vmatprep.mubr.f32.mxu0 0.0
        %1580 = vmatmul.mubr.f32.gmra.mrb[0].mxu0 %v904
        %v1581 = vpop.f32.mrb[0].mxu0
        %v1582 = vadd.f32 0.0, %v1581
        %v1583 = vpop.f32.mrb[0].mxu0
        %1584 = vmatprep.mubr.f32.mxu0 0.0
        %1585 = vmatmul.mubr.f32.gmra.mrb[0].mxu0 %v907
        %v1586 = vpop.f32.mrb[0].mxu0
        %v1587 = vadd.f32 0.0, %v1586
        %v1588 = vpop.f32.mrb[0].mxu0
        %1589 = vmatprep.mubr.f32.mxu0 0.0
        %1590 = vmatmul.mubr.f32.gmra.mrb[0].mxu0 %v910
        %v1591 = vpop.f32.mrb[0].mxu0
        %v1592 = vadd.f32 0.0, %v1591
        %v1593 = vpop.f32.mrb[0].mxu0
        %1594 = vmatprep.mubr.f32.mxu0 0.0
        %1595 = vmatmul.mubr.f32.gmra.mrb[0].mxu0 %v913
        %v1596 = vpop.f32.mrb[0].mxu0
        %v1597 = vadd.f32 0.0, %v1596
        %v1598 = vpop.f32.mrb[0].mxu0
        %1599 = vmatprep.mubr.f32.mxu0 0.0
        %1600 = vmatmul.mubr.f32.gmra.mrb[0].mxu0 %v916
        %v1601 = vpop.f32.mrb[0].mxu0
        %v1602 = vadd.f32 0.0, %v1601
        %v1603 = vpop.f32.mrb[0].mxu0
        %1604 = vmatprep.mubr.f32.mxu0 0.0
        %1605 = vmatmul.mubr.f32.gmra.mrb[0].mxu0 %v919
        %v1606 = vpop.f32.mrb[0].mxu0
        %v1607 = vadd.f32 0.0, %v1606
        %v1608 = vpop.f32.mrb[0].mxu0
        %1609 = vmatprep.mubr.f32.mxu0 0.0
        %1610 = vmatmul.mubr.f32.gmra.mrb[0].mxu0 %v922
        %v1611 = vpop.f32.mrb[0].mxu0
        %v1612 = vadd.f32 0.0, %v1611
        %v1613 = vpop.f32.mrb[0].mxu0
        %1614 = vmatprep.mubr.f32.mxu0 0.0
        %1615 = vmatmul.mubr.f32.gmra.mrb[0].mxu0 %v925
        %v1616 = vpop.f32.mrb[0].mxu0
        %v1617 = vadd.f32 0.0, %v1616
        %v1618 = vpop.f32.mrb[0].mxu0
        %1619 = vmatprep.mubr.f32.mxu0 0.0
        %1620 = vmatmul.mubr.f32.gmra.mrb[0].mxu0 %v928
        %v1621 = vpop.f32.mrb[0].mxu0
        %v1622 = vadd.f32 0.0, %v1621
        %v1623 = vpop.f32.mrb[0].mxu0
        %1624 = vmatprep.mubr.f32.mxu0 0.0
        %1625 = vmatmul.mubr.f32.gmra.mrb[0].mxu0 %v931
        %v1626 = vpop.f32.mrb[0].mxu0
        %v1627 = vadd.f32 0.0, %v1626
        %v1628 = vpop.f32.mrb[0].mxu0
        %1629 = vmatprep.mubr.f32.mxu0 0.0
        %1630 = vmatmul.mubr.f32.gmra.mrb[0].mxu0 %v934
        %v1631 = vpop.f32.mrb[0].mxu0
        %v1632 = vadd.f32 0.0, %v1631
        %v1633 = vpop.f32.mrb[0].mxu0
        %1634 = vmatprep.mubr.f32.mxu0 0.0
        %1635 = vmatmul.mubr.f32.gmra.mrb[0].mxu0 %v937
        %v1636 = vpop.f32.mrb[0].mxu0
        %v1637 = vadd.f32 0.0, %v1636
        %v1638 = vpop.f32.mrb[0].mxu0
        %1639 = vmatprep.mubr.f32.mxu0 0.0
        %1640 = vmatmul.mubr.f32.gmra.mrb[0].mxu0 %v940
        %v1641 = vpop.f32.mrb[0].mxu0
        %v1642 = vadd.f32 0.0, %v1641
        %v1643 = vpop.f32.mrb[0].mxu0
        %1644 = vmatprep.mubr.f32.mxu0 0.0
        %1645 = vmatmul.mubr.f32.gmra.mrb[0].mxu0 %v943
        %v1646 = vpop.f32.mrb[0].mxu0
        %v1647 = vadd.f32 0.0, %v1646
        %v1648 = vpop.f32.mrb[0].mxu0
        %1649 = vdwg.mxu0
        %v1650 = vld [vmem:[#allocation2] sm:$0xff]
        %v1651 = vld [vmem:[#allocation2 + $0x8] sm:$0xff]
        %v1652 = vld [vmem:[#allocation2 + $0x10] sm:$0xff]
        %v1653 = vld [vmem:[#allocation2 + $0x18] sm:$0xff]
        %v1654 = vld [vmem:[#allocation2 + $0x20] sm:$0xff]
        %v1655 = vld [vmem:[#allocation2 + $0x28] sm:$0xff]
        %v1656 = vld [vmem:[#allocation2 + $0x30] sm:$0xff]
        %v1657 = vld [vmem:[#allocation2 + $0x38] sm:$0xff]
        %v1658 = vld [vmem:[#allocation2 + $0x40] sm:$0xff]
        %v1659 = vld [vmem:[#allocation2 + $0x48] sm:$0xff]
        %v1660 = vld [vmem:[#allocation2 + $0x50] sm:$0xff]
        %v1661 = vld [vmem:[#allocation2 + $0x58] sm:$0xff]
        %v1662 = vld [vmem:[#allocation2 + $0x60] sm:$0xff]
        %v1663 = vld [vmem:[#allocation2 + $0x68] sm:$0xff]
        %v1664 = vld [vmem:[#allocation2 + $0x70] sm:$0xff]
        %v1665 = vld [vmem:[#allocation2 + $0x78] sm:$0xff]
        %1666 = vmax.xlane.f32.xlu0 %v1012
        %v1667 = vpop.xlane.xlu0 %1666
        %1668 = vmax.xlane.f32.xlu0 %v1017
        %v1669 = vpop.xlane.xlu0 %1668
        %1670 = vmax.xlane.f32.xlu0 %v1022
        %v1671 = vpop.xlane.xlu0 %1670
        %1672 = vmax.xlane.f32.xlu0 %v1027
        %v1673 = vpop.xlane.xlu0 %1672
        %1674 = vmax.xlane.f32.xlu0 %v1032
        %v1675 = vpop.xlane.xlu0 %1674
        %1676 = vmax.xlane.f32.xlu0 %v1037
        %v1677 = vpop.xlane.xlu0 %1676
        %1678 = vmax.xlane.f32.xlu0 %v1042
        %v1679 = vpop.xlane.xlu0 %1678
        %1680 = vmax.xlane.f32.xlu0 %v1047
        %v1681 = vpop.xlane.xlu0 %1680
        %1682 = vmax.xlane.f32.xlu0 %v1052
        %v1683 = vpop.xlane.xlu0 %1682
        %1684 = vmax.xlane.f32.xlu0 %v1057
        %v1685 = vpop.xlane.xlu0 %1684
        %1686 = vmax.xlane.f32.xlu0 %v1062
        %v1687 = vpop.xlane.xlu0 %1686
        %1688 = vmax.xlane.f32.xlu0 %v1067
        %v1689 = vpop.xlane.xlu0 %1688
        %1690 = vmax.xlane.f32.xlu0 %v1072
        %v1691 = vpop.xlane.xlu0 %1690
        %1692 = vmax.xlane.f32.xlu0 %v1077
        %v1693 = vpop.xlane.xlu0 %1692
        %1694 = vmax.xlane.f32.xlu0 %v1082
        %v1695 = vpop.xlane.xlu0 %1694
        %1696 = vmax.xlane.f32.xlu0 %v1087
        %v1697 = vpop.xlane.xlu0 %1696
        %v1698 = vmax.f32 %v1650, %v1667
        %v1699 = vmax.f32 %v1651, %v1669
        %v1700 = vmax.f32 %v1652, %v1671
        %v1701 = vmax.f32 %v1653, %v1673
        %v1702 = vmax.f32 %v1654, %v1675
        %v1703 = vmax.f32 %v1655, %v1677
        %v1704 = vmax.f32 %v1656, %v1679
        %v1705 = vmax.f32 %v1657, %v1681
        %v1706 = vmax.f32 %v1658, %v1683
        %v1707 = vmax.f32 %v1659, %v1685
        %v1708 = vmax.f32 %v1660, %v1687
        %v1709 = vmax.f32 %v1661, %v1689
        %v1710 = vmax.f32 %v1662, %v1691
        %v1711 = vmax.f32 %v1663, %v1693
        %v1712 = vmax.f32 %v1664, %v1695
        %v1713 = vmax.f32 %v1665, %v1697
        %v1714 = vsub.f32 %v1650, %v1698
        %v1715 = vsub.f32 %v1651, %v1699
        %v1716 = vsub.f32 %v1652, %v1700
        %v1717 = vsub.f32 %v1653, %v1701
        %v1718 = vsub.f32 %v1654, %v1702
        %v1719 = vsub.f32 %v1655, %v1703
        %v1720 = vsub.f32 %v1656, %v1704
        %v1721 = vsub.f32 %v1657, %v1705
        %v1722 = vsub.f32 %v1658, %v1706
        %v1723 = vsub.f32 %v1659, %v1707
        %v1724 = vsub.f32 %v1660, %v1708
        %v1725 = vsub.f32 %v1661, %v1709
        %v1726 = vsub.f32 %v1662, %v1710
        %v1727 = vsub.f32 %v1663, %v1711
        %v1728 = vsub.f32 %v1664, %v1712
        %v1729 = vsub.f32 %v1665, %v1713
        %v1730 = vmul.f32 %v1714, 1.442695
        %v1731 = vpow.pop %v1730
        %v1732 = vmul.f32 %v1715, 1.442695
        %v1733 = vpow.pop %v1732
        %v1734 = vmul.f32 %v1716, 1.442695
        %v1735 = vpow.pop %v1734
        %v1736 = vmul.f32 %v1717, 1.442695
        %v1737 = vpow.pop %v1736
        %v1738 = vmul.f32 %v1718, 1.442695
        %v1739 = vpow.pop %v1738
        %v1740 = vmul.f32 %v1719, 1.442695
        %v1741 = vpow.pop %v1740
        %v1742 = vmul.f32 %v1720, 1.442695
        %v1743 = vpow.pop %v1742
        %v1744 = vmul.f32 %v1721, 1.442695
        %v1745 = vpow.pop %v1744
        %v1746 = vmul.f32 %v1722, 1.442695
        %v1747 = vpow.pop %v1746
        %v1748 = vmul.f32 %v1723, 1.442695
        %v1749 = vpow.pop %v1748
        %v1750 = vmul.f32 %v1724, 1.442695
        %v1751 = vpow.pop %v1750
        %v1752 = vmul.f32 %v1725, 1.442695
        %v1753 = vpow.pop %v1752
        %v1754 = vmul.f32 %v1726, 1.442695
        %v1755 = vpow.pop %v1754
        %v1756 = vmul.f32 %v1727, 1.442695
        %v1757 = vpow.pop %v1756
        %v1758 = vmul.f32 %v1728, 1.442695
        %v1759 = vpow.pop %v1758
        %v1760 = vmul.f32 %v1729, 1.442695
        %v1761 = vpow.pop %v1760
        %1763 = vset.pattern.permute.xlu0 0
        %1764 = vperm.xlu0 %1763, %v1698
        %v1765 = vpop.permute.xlu0 %1764
        %1768 = vset.pattern.permute.xlu0 0
        %1769 = vperm.xlu0 %1768, %v1699
        %v1770 = vpop.permute.xlu0 %1769
        %1773 = vset.pattern.permute.xlu0 0
        %1774 = vperm.xlu0 %1773, %v1700
        %v1775 = vpop.permute.xlu0 %1774
        %1778 = vset.pattern.permute.xlu0 0
        %1779 = vperm.xlu0 %1778, %v1701
        %v1780 = vpop.permute.xlu0 %1779
        %1783 = vset.pattern.permute.xlu0 0
        %1784 = vperm.xlu0 %1783, %v1702
        %v1785 = vpop.permute.xlu0 %1784
        %1788 = vset.pattern.permute.xlu0 0
        %1789 = vperm.xlu0 %1788, %v1703
        %v1790 = vpop.permute.xlu0 %1789
        %1793 = vset.pattern.permute.xlu0 0
        %1794 = vperm.xlu0 %1793, %v1704
        %v1795 = vpop.permute.xlu0 %1794
        %1798 = vset.pattern.permute.xlu0 0
        %1799 = vperm.xlu0 %1798, %v1705
        %v1800 = vpop.permute.xlu0 %1799
        %1803 = vset.pattern.permute.xlu0 0
        %1804 = vperm.xlu0 %1803, %v1706
        %v1805 = vpop.permute.xlu0 %1804
        %1808 = vset.pattern.permute.xlu0 0
        %1809 = vperm.xlu0 %1808, %v1707
        %v1810 = vpop.permute.xlu0 %1809
        %1813 = vset.pattern.permute.xlu0 0
        %1814 = vperm.xlu0 %1813, %v1708
        %v1815 = vpop.permute.xlu0 %1814
        %1818 = vset.pattern.permute.xlu0 0
        %1819 = vperm.xlu0 %1818, %v1709
        %v1820 = vpop.permute.xlu0 %1819
        %1823 = vset.pattern.permute.xlu0 0
        %1824 = vperm.xlu0 %1823, %v1710
        %v1825 = vpop.permute.xlu0 %1824
        %1828 = vset.pattern.permute.xlu0 0
        %1829 = vperm.xlu0 %1828, %v1711
        %v1830 = vpop.permute.xlu0 %1829
        %1833 = vset.pattern.permute.xlu0 0
        %1834 = vperm.xlu0 %1833, %v1712
        %v1835 = vpop.permute.xlu0 %1834
        %1838 = vset.pattern.permute.xlu0 0
        %1839 = vperm.xlu0 %1838, %v1713
        %v1840 = vpop.permute.xlu0 %1839
        %v1842 = vsub.f32 %v1012, %v1765
        %v1843 = vsub.f32 %v1017, %v1770
        %v1844 = vsub.f32 %v1022, %v1775
        %v1845 = vsub.f32 %v1027, %v1780
        %v1846 = vsub.f32 %v1032, %v1785
        %v1847 = vsub.f32 %v1037, %v1790
        %v1848 = vsub.f32 %v1042, %v1795
        %v1849 = vsub.f32 %v1047, %v1800
        %v1850 = vsub.f32 %v1052, %v1805
        %v1851 = vsub.f32 %v1057, %v1810
        %v1852 = vsub.f32 %v1062, %v1815
        %v1853 = vsub.f32 %v1067, %v1820
        %v1854 = vsub.f32 %v1072, %v1825
        %v1855 = vsub.f32 %v1077, %v1830
        %v1856 = vsub.f32 %v1082, %v1835
        %v1857 = vsub.f32 %v1087, %v1840
        %v1858 = vmul.f32 %v1842, 1.442695
        %v1859 = vpow.pop %v1858
        %v1860 = vmul.f32 %v1843, 1.442695
        %v1861 = vpow.pop %v1860
        %v1862 = vmul.f32 %v1844, 1.442695
        %v1863 = vpow.pop %v1862
        %v1864 = vmul.f32 %v1845, 1.442695
        %v1865 = vpow.pop %v1864
        %v1866 = vmul.f32 %v1846, 1.442695
        %v1867 = vpow.pop %v1866
        %v1868 = vmul.f32 %v1847, 1.442695
        %v1869 = vpow.pop %v1868
        %v1870 = vmul.f32 %v1848, 1.442695
        %v1871 = vpow.pop %v1870
        %v1872 = vmul.f32 %v1849, 1.442695
        %v1873 = vpow.pop %v1872
        %v1874 = vmul.f32 %v1850, 1.442695
        %v1875 = vpow.pop %v1874
        %v1876 = vmul.f32 %v1851, 1.442695
        %v1877 = vpow.pop %v1876
        %v1878 = vmul.f32 %v1852, 1.442695
        %v1879 = vpow.pop %v1878
        %v1880 = vmul.f32 %v1853, 1.442695
        %v1881 = vpow.pop %v1880
        %v1882 = vmul.f32 %v1854, 1.442695
        %v1883 = vpow.pop %v1882
        %v1884 = vmul.f32 %v1855, 1.442695
        %v1885 = vpow.pop %v1884
        %v1886 = vmul.f32 %v1856, 1.442695
        %v1887 = vpow.pop %v1886
        %v1888 = vmul.f32 %v1857, 1.442695
        %v1889 = vpow.pop %v1888
        %v1890 = vld [vmem:[#allocation3] sm:$0xff]
        %v1891 = vld [vmem:[#allocation3 + $0x8] sm:$0xff]
        %v1892 = vld [vmem:[#allocation3 + $0x10] sm:$0xff]
        %v1893 = vld [vmem:[#allocation3 + $0x18] sm:$0xff]
        %v1894 = vld [vmem:[#allocation3 + $0x20] sm:$0xff]
        %v1895 = vld [vmem:[#allocation3 + $0x28] sm:$0xff]
        %v1896 = vld [vmem:[#allocation3 + $0x30] sm:$0xff]
        %v1897 = vld [vmem:[#allocation3 + $0x38] sm:$0xff]
        %v1898 = vld [vmem:[#allocation3 + $0x40] sm:$0xff]
        %v1899 = vld [vmem:[#allocation3 + $0x48] sm:$0xff]
        %v1900 = vld [vmem:[#allocation3 + $0x50] sm:$0xff]
        %v1901 = vld [vmem:[#allocation3 + $0x58] sm:$0xff]
        %v1902 = vld [vmem:[#allocation3 + $0x60] sm:$0xff]
        %v1903 = vld [vmem:[#allocation3 + $0x68] sm:$0xff]
        %v1904 = vld [vmem:[#allocation3 + $0x70] sm:$0xff]
        %v1905 = vld [vmem:[#allocation3 + $0x78] sm:$0xff]
        %v1906 = vmul.f32 %v1731, %v1890
        %v1907 = vmul.f32 %v1733, %v1891
        %v1908 = vmul.f32 %v1735, %v1892
        %v1909 = vmul.f32 %v1737, %v1893
        %v1910 = vmul.f32 %v1739, %v1894
        %v1911 = vmul.f32 %v1741, %v1895
        %v1912 = vmul.f32 %v1743, %v1896
        %v1913 = vmul.f32 %v1745, %v1897
        %v1914 = vmul.f32 %v1747, %v1898
        %v1915 = vmul.f32 %v1749, %v1899
        %v1916 = vmul.f32 %v1751, %v1900
        %v1917 = vmul.f32 %v1753, %v1901
        %v1918 = vmul.f32 %v1755, %v1902
        %v1919 = vmul.f32 %v1757, %v1903
        %v1920 = vmul.f32 %v1759, %v1904
        %v1921 = vmul.f32 %v1761, %v1905
        %1922 = vadd.xlane.f32.xlu0 %v1859
        %v1923 = vpop.xlane.xlu0 %1922
        %1924 = vadd.xlane.f32.xlu0 %v1861
        %v1925 = vpop.xlane.xlu0 %1924
        %1926 = vadd.xlane.f32.xlu0 %v1863
        %v1927 = vpop.xlane.xlu0 %1926
        %1928 = vadd.xlane.f32.xlu0 %v1865
        %v1929 = vpop.xlane.xlu0 %1928
        %1930 = vadd.xlane.f32.xlu0 %v1867
        %v1931 = vpop.xlane.xlu0 %1930
        %1932 = vadd.xlane.f32.xlu0 %v1869
        %v1933 = vpop.xlane.xlu0 %1932
        %1934 = vadd.xlane.f32.xlu0 %v1871
        %v1935 = vpop.xlane.xlu0 %1934
        %1936 = vadd.xlane.f32.xlu0 %v1873
        %v1937 = vpop.xlane.xlu0 %1936
        %1938 = vadd.xlane.f32.xlu0 %v1875
        %v1939 = vpop.xlane.xlu0 %1938
        %1940 = vadd.xlane.f32.xlu0 %v1877
        %v1941 = vpop.xlane.xlu0 %1940
        %1942 = vadd.xlane.f32.xlu0 %v1879
        %v1943 = vpop.xlane.xlu0 %1942
        %1944 = vadd.xlane.f32.xlu0 %v1881
        %v1945 = vpop.xlane.xlu0 %1944
        %1946 = vadd.xlane.f32.xlu0 %v1883
        %v1947 = vpop.xlane.xlu0 %1946
        %1948 = vadd.xlane.f32.xlu0 %v1885
        %v1949 = vpop.xlane.xlu0 %1948
        %1950 = vadd.xlane.f32.xlu0 %v1887
        %v1951 = vpop.xlane.xlu0 %1950
        %1952 = vadd.xlane.f32.xlu0 %v1889
        %v1953 = vpop.xlane.xlu0 %1952
        %v1954 = vadd.f32 %v1906, %v1923
        %v1955 = vadd.f32 %v1907, %v1925
        %v1956 = vadd.f32 %v1908, %v1927
        %v1957 = vadd.f32 %v1909, %v1929
        %v1958 = vadd.f32 %v1910, %v1931
        %v1959 = vadd.f32 %v1911, %v1933
        %v1960 = vadd.f32 %v1912, %v1935
        %v1961 = vadd.f32 %v1913, %v1937
        %v1962 = vadd.f32 %v1914, %v1939
        %v1963 = vadd.f32 %v1915, %v1941
        %v1964 = vadd.f32 %v1916, %v1943
        %v1965 = vadd.f32 %v1917, %v1945
        %v1966 = vadd.f32 %v1918, %v1947
        %v1967 = vadd.f32 %v1919, %v1949
        %v1968 = vadd.f32 %v1920, %v1951
        %v1969 = vadd.f32 %v1921, %v1953
        %vm1970 = vcmask 7168
        %1971 = vst.msk [vmem:[#allocation3] sm:$0xff] %vm1970, %v1954
        %1972 = vst.msk [vmem:[#allocation3 + $0x8] sm:$0xff] %vm1970, %v1955
        %1973 = vst.msk [vmem:[#allocation3 + $0x10] sm:$0xff] %vm1970, %v1956
        %1974 = vst.msk [vmem:[#allocation3 + $0x18] sm:$0xff] %vm1970, %v1957
        %1975 = vst.msk [vmem:[#allocation3 + $0x20] sm:$0xff] %vm1970, %v1958
        %1976 = vst.msk [vmem:[#allocation3 + $0x28] sm:$0xff] %vm1970, %v1959
        %1977 = vst.msk [vmem:[#allocation3 + $0x30] sm:$0xff] %vm1970, %v1960
        %1978 = vst.msk [vmem:[#allocation3 + $0x38] sm:$0xff] %vm1970, %v1961
        %1979 = vst.msk [vmem:[#allocation3 + $0x40] sm:$0xff] %vm1970, %v1962
        %1980 = vst.msk [vmem:[#allocation3 + $0x48] sm:$0xff] %vm1970, %v1963
        %1981 = vst.msk [vmem:[#allocation3 + $0x50] sm:$0xff] %vm1970, %v1964
        %1982 = vst.msk [vmem:[#allocation3 + $0x58] sm:$0xff] %vm1970, %v1965
        %1983 = vst.msk [vmem:[#allocation3 + $0x60] sm:$0xff] %vm1970, %v1966
        %1984 = vst.msk [vmem:[#allocation3 + $0x68] sm:$0xff] %vm1970, %v1967
        %1985 = vst.msk [vmem:[#allocation3 + $0x70] sm:$0xff] %vm1970, %v1968
        %1986 = vst.msk [vmem:[#allocation3 + $0x78] sm:$0xff] %vm1970, %v1969
        %1987 = vmatprep.subr.mxu0 0.0
        %1988 = vmatpush1.xpose.msra.mxu0 %v1332
        %1989 = vmatprep.subr.mxu0 0.0
        %1990 = vmatpush1.xpose.msra.mxu0 %v1337
        %1991 = vmatprep.subr.mxu0 0.0
        %1992 = vmatpush1.xpose.msra.mxu0 %v1342
        %1993 = vmatprep.subr.mxu0 0.0
        %1994 = vmatpush1.xpose.msra.mxu0 %v1347
        %1995 = vmatprep.subr.mxu0 0.0
        %1996 = vmatpush1.xpose.msra.mxu0 %v1352
        %1997 = vmatprep.subr.mxu0 0.0
        %1998 = vmatpush1.xpose.msra.mxu0 %v1357
        %1999 = vmatprep.subr.mxu0 0.0
        %2000 = vmatpush1.xpose.msra.mxu0 %v1362
        %2001 = vmatprep.subr.mxu0 0.0
        %2002 = vmatpush1.xpose.msra.mxu0 %v1367
        %2003 = vmatprep.subr.mxu0 0.0
        %2004 = vmatpush1.xpose.msra.mxu0 %v1372
        %2005 = vmatprep.subr.mxu0 0.0
        %2006 = vmatpush1.xpose.msra.mxu0 %v1377
        %2007 = vmatprep.subr.mxu0 0.0
        %2008 = vmatpush1.xpose.msra.mxu0 %v1382
        %2009 = vmatprep.subr.mxu0 0.0
        %2010 = vmatpush1.xpose.msra.mxu0 %v1387
        %2011 = vmatprep.subr.mxu0 0.0
        %2012 = vmatpush1.xpose.msra.mxu0 %v1392
        %2013 = vmatprep.subr.mxu0 0.0
        %2014 = vmatpush1.xpose.msra.mxu0 %v1397
        %2015 = vmatprep.subr.mxu0 0.0
        %2016 = vmatpush1.xpose.msra.mxu0 %v1402
        %2017 = vmatprep.subr.mxu0 0.0
        %2018 = vmatpush1.xpose.msra.mxu0 %v1407
        %2019 = vmatprep.subr.mxu0 0.0
        %2020 = vmatpush1.xpose.msra.mxu0 0.0
        %2021 = vmatprep.subr.mxu0 0.0
        %2022 = vmatpush1.xpose.msra.mxu0 0.0
        %2023 = vmatprep.subr.mxu0 0.0
        %2024 = vmatpush1.xpose.msra.mxu0 0.0
        %2025 = vmatprep.subr.mxu0 0.0
        %2026 = vmatpush1.xpose.msra.mxu0 0.0
        %2027 = vmatprep.subr.mxu0 0.0
        %2028 = vmatpush1.xpose.msra.mxu0 0.0
        %2029 = vmatprep.subr.mxu0 0.0
        %2030 = vmatpush1.xpose.msra.mxu0 0.0
        %2031 = vmatprep.subr.mxu0 0.0
        %2032 = vmatpush1.xpose.msra.mxu0 0.0
        %2033 = vmatprep.subr.mxu0 0.0
        %2034 = vmatpush1.xpose.msra.mxu0 0.0
        %2035 = vmatprep.subr.mxu0 0.0
        %2036 = vmatpush1.xpose.msra.mxu0 0.0
        %2037 = vmatprep.subr.mxu0 0.0
        %2038 = vmatpush1.xpose.msra.mxu0 0.0
        %2039 = vmatprep.subr.mxu0 0.0
        %2040 = vmatpush1.xpose.msra.mxu0 0.0
        %2041 = vmatprep.subr.mxu0 0.0
        %2042 = vmatpush1.xpose.msra.mxu0 0.0
        %2043 = vmatprep.subr.mxu0 0.0
        %2044 = vmatpush1.xpose.msra.mxu0 0.0
        %2045 = vmatprep.subr.mxu0 0.0
        %2046 = vmatpush1.xpose.msra.mxu0 0.0
        %2047 = vmatprep.subr.mxu0 0.0
        %2048 = vmatpush1.xpose.msra.mxu0 0.0
        %2049 = vmatprep.subr.mxu0 0.0
        %2050 = vmatpush1.xpose.msra.mxu0 0.0
        %2051 = vmatprep.mubr.f32.mxu0 0.0
        %2052 = vmatmul.mubr.f32.gmra.mrb[0].mxu0 %v1859
        %v2053 = vpop.f32.mrb[0].mxu0
        %v2054 = vadd.f32 0.0, %v2053
        %v2055 = vpop.f32.mrb[0].mxu0
        %2056 = vmatprep.mubr.f32.mxu0 0.0
        %2057 = vmatmul.mubr.f32.gmra.mrb[0].mxu0 %v1861
        %v2058 = vpop.f32.mrb[0].mxu0
        %v2059 = vadd.f32 0.0, %v2058
        %v2060 = vpop.f32.mrb[0].mxu0
        %2061 = vmatprep.mubr.f32.mxu0 0.0
        %2062 = vmatmul.mubr.f32.gmra.mrb[0].mxu0 %v1863
        %v2063 = vpop.f32.mrb[0].mxu0
        %v2064 = vadd.f32 0.0, %v2063
        %v2065 = vpop.f32.mrb[0].mxu0
        %2066 = vmatprep.mubr.f32.mxu0 0.0
        %2067 = vmatmul.mubr.f32.gmra.mrb[0].mxu0 %v1865
        %v2068 = vpop.f32.mrb[0].mxu0
        %v2069 = vadd.f32 0.0, %v2068
        %v2070 = vpop.f32.mrb[0].mxu0
        %2071 = vmatprep.mubr.f32.mxu0 0.0
        %2072 = vmatmul.mubr.f32.gmra.mrb[0].mxu0 %v1867
        %v2073 = vpop.f32.mrb[0].mxu0
        %v2074 = vadd.f32 0.0, %v2073
        %v2075 = vpop.f32.mrb[0].mxu0
        %2076 = vmatprep.mubr.f32.mxu0 0.0
        %2077 = vmatmul.mubr.f32.gmra.mrb[0].mxu0 %v1869
        %v2078 = vpop.f32.mrb[0].mxu0
        %v2079 = vadd.f32 0.0, %v2078
        %v2080 = vpop.f32.mrb[0].mxu0
        %2081 = vmatprep.mubr.f32.mxu0 0.0
        %2082 = vmatmul.mubr.f32.gmra.mrb[0].mxu0 %v1871
        %v2083 = vpop.f32.mrb[0].mxu0
        %v2084 = vadd.f32 0.0, %v2083
        %v2085 = vpop.f32.mrb[0].mxu0
        %2086 = vmatprep.mubr.f32.mxu0 0.0
        %2087 = vmatmul.mubr.f32.gmra.mrb[0].mxu0 %v1873
        %v2088 = vpop.f32.mrb[0].mxu0
        %v2089 = vadd.f32 0.0, %v2088
        %v2090 = vpop.f32.mrb[0].mxu0
        %2091 = vmatprep.mubr.f32.mxu0 0.0
        %2092 = vmatmul.mubr.f32.gmra.mrb[0].mxu0 %v1875
        %v2093 = vpop.f32.mrb[0].mxu0
        %v2094 = vadd.f32 0.0, %v2093
        %v2095 = vpop.f32.mrb[0].mxu0
        %2096 = vmatprep.mubr.f32.mxu0 0.0
        %2097 = vmatmul.mubr.f32.gmra.mrb[0].mxu0 %v1877
        %v2098 = vpop.f32.mrb[0].mxu0
        %v2099 = vadd.f32 0.0, %v2098
        %v2100 = vpop.f32.mrb[0].mxu0
        %2101 = vmatprep.mubr.f32.mxu0 0.0
        %2102 = vmatmul.mubr.f32.gmra.mrb[0].mxu0 %v1879
        %v2103 = vpop.f32.mrb[0].mxu0
        %v2104 = vadd.f32 0.0, %v2103
        %v2105 = vpop.f32.mrb[0].mxu0
        %2106 = vmatprep.mubr.f32.mxu0 0.0
        %2107 = vmatmul.mubr.f32.gmra.mrb[0].mxu0 %v1881
        %v2108 = vpop.f32.mrb[0].mxu0
        %v2109 = vadd.f32 0.0, %v2108
        %v2110 = vpop.f32.mrb[0].mxu0
        %2111 = vmatprep.mubr.f32.mxu0 0.0
        %2112 = vmatmul.mubr.f32.gmra.mrb[0].mxu0 %v1883
        %v2113 = vpop.f32.mrb[0].mxu0
        %v2114 = vadd.f32 0.0, %v2113
        %v2115 = vpop.f32.mrb[0].mxu0
        %2116 = vmatprep.mubr.f32.mxu0 0.0
        %2117 = vmatmul.mubr.f32.gmra.mrb[0].mxu0 %v1885
        %v2118 = vpop.f32.mrb[0].mxu0
        %v2119 = vadd.f32 0.0, %v2118
        %v2120 = vpop.f32.mrb[0].mxu0
        %2121 = vmatprep.mubr.f32.mxu0 0.0
        %2122 = vmatmul.mubr.f32.gmra.mrb[0].mxu0 %v1887
        %v2123 = vpop.f32.mrb[0].mxu0
        %v2124 = vadd.f32 0.0, %v2123
        %v2125 = vpop.f32.mrb[0].mxu0
        %2126 = vmatprep.mubr.f32.mxu0 0.0
        %2127 = vmatmul.mubr.f32.gmra.mrb[0].mxu0 %v1889
        %v2128 = vpop.f32.mrb[0].mxu0
        %v2129 = vadd.f32 0.0, %v2128
        %v2130 = vpop.f32.mrb[0].mxu0
        %2131 = vdwg.mxu0
        %v2132 = vld [vmem:[#allocation4] sm:$0xff]
        %v2133 = vld [vmem:[#allocation4 + $0x8] sm:$0xff]
        %v2134 = vld [vmem:[#allocation4 + $0x10] sm:$0xff]
        %v2135 = vld [vmem:[#allocation4 + $0x18] sm:$0xff]
        %v2136 = vld [vmem:[#allocation4 + $0x20] sm:$0xff]
        %v2137 = vld [vmem:[#allocation4 + $0x28] sm:$0xff]
        %v2138 = vld [vmem:[#allocation4 + $0x30] sm:$0xff]
        %v2139 = vld [vmem:[#allocation4 + $0x38] sm:$0xff]
        %v2140 = vld [vmem:[#allocation4 + $0x40] sm:$0xff]
        %v2141 = vld [vmem:[#allocation4 + $0x48] sm:$0xff]
        %v2142 = vld [vmem:[#allocation4 + $0x50] sm:$0xff]
        %v2143 = vld [vmem:[#allocation4 + $0x58] sm:$0xff]
        %v2144 = vld [vmem:[#allocation4 + $0x60] sm:$0xff]
        %v2145 = vld [vmem:[#allocation4 + $0x68] sm:$0xff]
        %v2146 = vld [vmem:[#allocation4 + $0x70] sm:$0xff]
        %v2147 = vld [vmem:[#allocation4 + $0x78] sm:$0xff]
        %2149 = vset.pattern.permute.xlu0 0
        %2150 = vperm.xlu0 %2149, %v1731
        %v2151 = vpop.permute.xlu0 %2150
        %2154 = vset.pattern.permute.xlu0 0
        %2155 = vperm.xlu0 %2154, %v1733
        %v2156 = vpop.permute.xlu0 %2155
        %2159 = vset.pattern.permute.xlu0 0
        %2160 = vperm.xlu0 %2159, %v1735
        %v2161 = vpop.permute.xlu0 %2160
        %2164 = vset.pattern.permute.xlu0 0
        %2165 = vperm.xlu0 %2164, %v1737
        %v2166 = vpop.permute.xlu0 %2165
        %2169 = vset.pattern.permute.xlu0 0
        %2170 = vperm.xlu0 %2169, %v1739
        %v2171 = vpop.permute.xlu0 %2170
        %2174 = vset.pattern.permute.xlu0 0
        %2175 = vperm.xlu0 %2174, %v1741
        %v2176 = vpop.permute.xlu0 %2175
        %2179 = vset.pattern.permute.xlu0 0
        %2180 = vperm.xlu0 %2179, %v1743
        %v2181 = vpop.permute.xlu0 %2180
        %2184 = vset.pattern.permute.xlu0 0
        %2185 = vperm.xlu0 %2184, %v1745
        %v2186 = vpop.permute.xlu0 %2185
        %2189 = vset.pattern.permute.xlu0 0
        %2190 = vperm.xlu0 %2189, %v1747
        %v2191 = vpop.permute.xlu0 %2190
        %2194 = vset.pattern.permute.xlu0 0
        %2195 = vperm.xlu0 %2194, %v1749
        %v2196 = vpop.permute.xlu0 %2195
        %2199 = vset.pattern.permute.xlu0 0
        %2200 = vperm.xlu0 %2199, %v1751
        %v2201 = vpop.permute.xlu0 %2200
        %2204 = vset.pattern.permute.xlu0 0
        %2205 = vperm.xlu0 %2204, %v1753
        %v2206 = vpop.permute.xlu0 %2205
        %2209 = vset.pattern.permute.xlu0 0
        %2210 = vperm.xlu0 %2209, %v1755
        %v2211 = vpop.permute.xlu0 %2210
        %2214 = vset.pattern.permute.xlu0 0
        %2215 = vperm.xlu0 %2214, %v1757
        %v2216 = vpop.permute.xlu0 %2215
        %2219 = vset.pattern.permute.xlu0 0
        %2220 = vperm.xlu0 %2219, %v1759
        %v2221 = vpop.permute.xlu0 %2220
        %2224 = vset.pattern.permute.xlu0 0
        %2225 = vperm.xlu0 %2224, %v1761
        %v2226 = vpop.permute.xlu0 %2225
        %v2228 = vmul.f32 %v2151, %v2132
        %v2229 = vmul.f32 %v2156, %v2133
        %v2230 = vmul.f32 %v2161, %v2134
        %v2231 = vmul.f32 %v2166, %v2135
        %v2232 = vmul.f32 %v2171, %v2136
        %v2233 = vmul.f32 %v2176, %v2137
        %v2234 = vmul.f32 %v2181, %v2138
        %v2235 = vmul.f32 %v2186, %v2139
        %v2236 = vmul.f32 %v2191, %v2140
        %v2237 = vmul.f32 %v2196, %v2141
        %v2238 = vmul.f32 %v2201, %v2142
        %v2239 = vmul.f32 %v2206, %v2143
        %v2240 = vmul.f32 %v2211, %v2144
        %v2241 = vmul.f32 %v2216, %v2145
        %v2242 = vmul.f32 %v2221, %v2146
        %v2243 = vmul.f32 %v2226, %v2147
        %v2244 = vadd.f32 %v2228, %v2054
        %v2245 = vadd.f32 %v2229, %v2059
        %v2246 = vadd.f32 %v2230, %v2064
        %v2247 = vadd.f32 %v2231, %v2069
        %v2248 = vadd.f32 %v2232, %v2074
        %v2249 = vadd.f32 %v2233, %v2079
        %v2250 = vadd.f32 %v2234, %v2084
        %v2251 = vadd.f32 %v2235, %v2089
        %v2252 = vadd.f32 %v2236, %v2094
        %v2253 = vadd.f32 %v2237, %v2099
        %v2254 = vadd.f32 %v2238, %v2104
        %v2255 = vadd.f32 %v2239, %v2109
        %v2256 = vadd.f32 %v2240, %v2114
        %v2257 = vadd.f32 %v2241, %v2119
        %v2258 = vadd.f32 %v2242, %v2124
        %v2259 = vadd.f32 %v2243, %v2129
        %2260 = vst [vmem:[#allocation4] sm:$0xff] %v2244
        %2261 = vst [vmem:[#allocation4 + $0x8] sm:$0xff] %v2245
        %2262 = vst [vmem:[#allocation4 + $0x10] sm:$0xff] %v2246
        %2263 = vst [vmem:[#allocation4 + $0x18] sm:$0xff] %v2247
        %2264 = vst [vmem:[#allocation4 + $0x20] sm:$0xff] %v2248
        %2265 = vst [vmem:[#allocation4 + $0x28] sm:$0xff] %v2249
        %2266 = vst [vmem:[#allocation4 + $0x30] sm:$0xff] %v2250
        %2267 = vst [vmem:[#allocation4 + $0x38] sm:$0xff] %v2251
        %2268 = vst [vmem:[#allocation4 + $0x40] sm:$0xff] %v2252
        %2269 = vst [vmem:[#allocation4 + $0x48] sm:$0xff] %v2253
        %2270 = vst [vmem:[#allocation4 + $0x50] sm:$0xff] %v2254
        %2271 = vst [vmem:[#allocation4 + $0x58] sm:$0xff] %v2255
        %2272 = vst [vmem:[#allocation4 + $0x60] sm:$0xff] %v2256
        %2273 = vst [vmem:[#allocation4 + $0x68] sm:$0xff] %v2257
        %2274 = vst [vmem:[#allocation4 + $0x70] sm:$0xff] %v2258
        %2275 = vst [vmem:[#allocation4 + $0x78] sm:$0xff] %v2259
        %2276 = vst.msk [vmem:[#allocation2] sm:$0xff] %vm1970, %v1698
        %2277 = vst.msk [vmem:[#allocation2 + $0x8] sm:$0xff] %vm1970, %v1699
        %2278 = vst.msk [vmem:[#allocation2 + $0x10] sm:$0xff] %vm1970, %v1700
        %2279 = vst.msk [vmem:[#allocation2 + $0x18] sm:$0xff] %vm1970, %v1701
        %2280 = vst.msk [vmem:[#allocation2 + $0x20] sm:$0xff] %vm1970, %v1702
        %2281 = vst.msk [vmem:[#allocation2 + $0x28] sm:$0xff] %vm1970, %v1703
        %2282 = vst.msk [vmem:[#allocation2 + $0x30] sm:$0xff] %vm1970, %v1704
        %2283 = vst.msk [vmem:[#allocation2 + $0x38] sm:$0xff] %vm1970, %v1705
        %2284 = vst.msk [vmem:[#allocation2 + $0x40] sm:$0xff] %vm1970, %v1706
        %2285 = vst.msk [vmem:[#allocation2 + $0x48] sm:$0xff] %vm1970, %v1707
        %2286 = vst.msk [vmem:[#allocation2 + $0x50] sm:$0xff] %vm1970, %v1708
        %2287 = vst.msk [vmem:[#allocation2 + $0x58] sm:$0xff] %vm1970, %v1709
        %2288 = vst.msk [vmem:[#allocation2 + $0x60] sm:$0xff] %vm1970, %v1710
        %2289 = vst.msk [vmem:[#allocation2 + $0x68] sm:$0xff] %vm1970, %v1711
        %2290 = vst.msk [vmem:[#allocation2 + $0x70] sm:$0xff] %vm1970, %v1712
        %2291 = vst.msk [vmem:[#allocation2 + $0x78] sm:$0xff] %vm1970, %v1713
        %v2292 = vld [vmem:[#allocation2 + $0x80] sm:$0xff]
        %v2293 = vld [vmem:[#allocation2 + $0x88] sm:$0xff]
        %v2294 = vld [vmem:[#allocation2 + $0x90] sm:$0xff]
        %v2295 = vld [vmem:[#allocation2 + $0x98] sm:$0xff]
        %v2296 = vld [vmem:[#allocation2 + $0xa0] sm:$0xff]
        %v2297 = vld [vmem:[#allocation2 + $0xa8] sm:$0xff]
        %v2298 = vld [vmem:[#allocation2 + $0xb0] sm:$0xff]
        %v2299 = vld [vmem:[#allocation2 + $0xb8] sm:$0xff]
        %v2300 = vld [vmem:[#allocation2 + $0xc0] sm:$0xff]
        %v2301 = vld [vmem:[#allocation2 + $0xc8] sm:$0xff]
        %v2302 = vld [vmem:[#allocation2 + $0xd0] sm:$0xff]
        %v2303 = vld [vmem:[#allocation2 + $0xd8] sm:$0xff]
        %v2304 = vld [vmem:[#allocation2 + $0xe0] sm:$0xff]
        %v2305 = vld [vmem:[#allocation2 + $0xe8] sm:$0xff]
        %v2306 = vld [vmem:[#allocation2 + $0xf0] sm:$0xff]
        %v2307 = vld [vmem:[#allocation2 + $0xf8] sm:$0xff]
        %2308 = vmax.xlane.f32.xlu0 %v1092
        %v2309 = vpop.xlane.xlu0 %2308
        %2310 = vmax.xlane.f32.xlu0 %v1097
        %v2311 = vpop.xlane.xlu0 %2310
        %2312 = vmax.xlane.f32.xlu0 %v1102
        %v2313 = vpop.xlane.xlu0 %2312
        %2314 = vmax.xlane.f32.xlu0 %v1107
        %v2315 = vpop.xlane.xlu0 %2314
        %2316 = vmax.xlane.f32.xlu0 %v1112
        %v2317 = vpop.xlane.xlu0 %2316
        %2318 = vmax.xlane.f32.xlu0 %v1117
        %v2319 = vpop.xlane.xlu0 %2318
        %2320 = vmax.xlane.f32.xlu0 %v1122
        %v2321 = vpop.xlane.xlu0 %2320
        %2322 = vmax.xlane.f32.xlu0 %v1127
        %v2323 = vpop.xlane.xlu0 %2322
        %2324 = vmax.xlane.f32.xlu0 %v1132
        %v2325 = vpop.xlane.xlu0 %2324
        %2326 = vmax.xlane.f32.xlu0 %v1137
        %v2327 = vpop.xlane.xlu0 %2326
        %2328 = vmax.xlane.f32.xlu0 %v1142
        %v2329 = vpop.xlane.xlu0 %2328
        %2330 = vmax.xlane.f32.xlu0 %v1147
        %v2331 = vpop.xlane.xlu0 %2330
        %2332 = vmax.xlane.f32.xlu0 %v1152
        %v2333 = vpop.xlane.xlu0 %2332
        %2334 = vmax.xlane.f32.xlu0 %v1157
        %v2335 = vpop.xlane.xlu0 %2334
        %2336 = vmax.xlane.f32.xlu0 %v1162
        %v2337 = vpop.xlane.xlu0 %2336
        %2338 = vmax.xlane.f32.xlu0 %v1167
        %v2339 = vpop.xlane.xlu0 %2338
        %v2340 = vmax.f32 %v2292, %v2309
        %v2341 = vmax.f32 %v2293, %v2311
        %v2342 = vmax.f32 %v2294, %v2313
        %v2343 = vmax.f32 %v2295, %v2315
        %v2344 = vmax.f32 %v2296, %v2317
        %v2345 = vmax.f32 %v2297, %v2319
        %v2346 = vmax.f32 %v2298, %v2321
        %v2347 = vmax.f32 %v2299, %v2323
        %v2348 = vmax.f32 %v2300, %v2325
        %v2349 = vmax.f32 %v2301, %v2327
        %v2350 = vmax.f32 %v2302, %v2329
        %v2351 = vmax.f32 %v2303, %v2331
        %v2352 = vmax.f32 %v2304, %v2333
        %v2353 = vmax.f32 %v2305, %v2335
        %v2354 = vmax.f32 %v2306, %v2337
        %v2355 = vmax.f32 %v2307, %v2339
        %v2356 = vsub.f32 %v2292, %v2340
        %v2357 = vsub.f32 %v2293, %v2341
        %v2358 = vsub.f32 %v2294, %v2342
        %v2359 = vsub.f32 %v2295, %v2343
        %v2360 = vsub.f32 %v2296, %v2344
        %v2361 = vsub.f32 %v2297, %v2345
        %v2362 = vsub.f32 %v2298, %v2346
        %v2363 = vsub.f32 %v2299, %v2347
        %v2364 = vsub.f32 %v2300, %v2348
        %v2365 = vsub.f32 %v2301, %v2349
        %v2366 = vsub.f32 %v2302, %v2350
        %v2367 = vsub.f32 %v2303, %v2351
        %v2368 = vsub.f32 %v2304, %v2352
        %v2369 = vsub.f32 %v2305, %v2353
        %v2370 = vsub.f32 %v2306, %v2354
        %v2371 = vsub.f32 %v2307, %v2355
        %v2372 = vmul.f32 %v2356, 1.442695
        %v2373 = vpow.pop %v2372
        %v2374 = vmul.f32 %v2357, 1.442695
        %v2375 = vpow.pop %v2374
        %v2376 = vmul.f32 %v2358, 1.442695
        %v2377 = vpow.pop %v2376
        %v2378 = vmul.f32 %v2359, 1.442695
        %v2379 = vpow.pop %v2378
        %v2380 = vmul.f32 %v2360, 1.442695
        %v2381 = vpow.pop %v2380
        %v2382 = vmul.f32 %v2361, 1.442695
        %v2383 = vpow.pop %v2382
        %v2384 = vmul.f32 %v2362, 1.442695
        %v2385 = vpow.pop %v2384
        %v2386 = vmul.f32 %v2363, 1.442695
        %v2387 = vpow.pop %v2386
        %v2388 = vmul.f32 %v2364, 1.442695
        %v2389 = vpow.pop %v2388
        %v2390 = vmul.f32 %v2365, 1.442695
        %v2391 = vpow.pop %v2390
        %v2392 = vmul.f32 %v2366, 1.442695
        %v2393 = vpow.pop %v2392
        %v2394 = vmul.f32 %v2367, 1.442695
        %v2395 = vpow.pop %v2394
        %v2396 = vmul.f32 %v2368, 1.442695
        %v2397 = vpow.pop %v2396
        %v2398 = vmul.f32 %v2369, 1.442695
        %v2399 = vpow.pop %v2398
        %v2400 = vmul.f32 %v2370, 1.442695
        %v2401 = vpow.pop %v2400
        %v2402 = vmul.f32 %v2371, 1.442695
        %v2403 = vpow.pop %v2402
        %2405 = vset.pattern.permute.xlu0 0
        %2406 = vperm.xlu0 %2405, %v2340
        %v2407 = vpop.permute.xlu0 %2406
        %2410 = vset.pattern.permute.xlu0 0
        %2411 = vperm.xlu0 %2410, %v2341
        %v2412 = vpop.permute.xlu0 %2411
        %2415 = vset.pattern.permute.xlu0 0
        %2416 = vperm.xlu0 %2415, %v2342
        %v2417 = vpop.permute.xlu0 %2416
        %2420 = vset.pattern.permute.xlu0 0
        %2421 = vperm.xlu0 %2420, %v2343
        %v2422 = vpop.permute.xlu0 %2421
        %2425 = vset.pattern.permute.xlu0 0
        %2426 = vperm.xlu0 %2425, %v2344
        %v2427 = vpop.permute.xlu0 %2426
        %2430 = vset.pattern.permute.xlu0 0
        %2431 = vperm.xlu0 %2430, %v2345
        %v2432 = vpop.permute.xlu0 %2431
        %2435 = vset.pattern.permute.xlu0 0
        %2436 = vperm.xlu0 %2435, %v2346
        %v2437 = vpop.permute.xlu0 %2436
        %2440 = vset.pattern.permute.xlu0 0
        %2441 = vperm.xlu0 %2440, %v2347
        %v2442 = vpop.permute.xlu0 %2441
        %2445 = vset.pattern.permute.xlu0 0
        %2446 = vperm.xlu0 %2445, %v2348
        %v2447 = vpop.permute.xlu0 %2446
        %2450 = vset.pattern.permute.xlu0 0
        %2451 = vperm.xlu0 %2450, %v2349
        %v2452 = vpop.permute.xlu0 %2451
        %2455 = vset.pattern.permute.xlu0 0
        %2456 = vperm.xlu0 %2455, %v2350
        %v2457 = vpop.permute.xlu0 %2456
        %2460 = vset.pattern.permute.xlu0 0
        %2461 = vperm.xlu0 %2460, %v2351
        %v2462 = vpop.permute.xlu0 %2461
        %2465 = vset.pattern.permute.xlu0 0
        %2466 = vperm.xlu0 %2465, %v2352
        %v2467 = vpop.permute.xlu0 %2466
        %2470 = vset.pattern.permute.xlu0 0
        %2471 = vperm.xlu0 %2470, %v2353
        %v2472 = vpop.permute.xlu0 %2471
        %2475 = vset.pattern.permute.xlu0 0
        %2476 = vperm.xlu0 %2475, %v2354
        %v2477 = vpop.permute.xlu0 %2476
        %2480 = vset.pattern.permute.xlu0 0
        %2481 = vperm.xlu0 %2480, %v2355
        %v2482 = vpop.permute.xlu0 %2481
        %v2484 = vsub.f32 %v1092, %v2407
        %v2485 = vsub.f32 %v1097, %v2412
        %v2486 = vsub.f32 %v1102, %v2417
        %v2487 = vsub.f32 %v1107, %v2422
        %v2488 = vsub.f32 %v1112, %v2427
        %v2489 = vsub.f32 %v1117, %v2432
        %v2490 = vsub.f32 %v1122, %v2437
        %v2491 = vsub.f32 %v1127, %v2442
        %v2492 = vsub.f32 %v1132, %v2447
        %v2493 = vsub.f32 %v1137, %v2452
        %v2494 = vsub.f32 %v1142, %v2457
        %v2495 = vsub.f32 %v1147, %v2462
        %v2496 = vsub.f32 %v1152, %v2467
        %v2497 = vsub.f32 %v1157, %v2472
        %v2498 = vsub.f32 %v1162, %v2477
        %v2499 = vsub.f32 %v1167, %v2482
        %v2500 = vmul.f32 %v2484, 1.442695
        %v2501 = vpow.pop %v2500
        %v2502 = vmul.f32 %v2485, 1.442695
        %v2503 = vpow.pop %v2502
        %v2504 = vmul.f32 %v2486, 1.442695
        %v2505 = vpow.pop %v2504
        %v2506 = vmul.f32 %v2487, 1.442695
        %v2507 = vpow.pop %v2506
        %v2508 = vmul.f32 %v2488, 1.442695
        %v2509 = vpow.pop %v2508
        %v2510 = vmul.f32 %v2489, 1.442695
        %v2511 = vpow.pop %v2510
        %v2512 = vmul.f32 %v2490, 1.442695
        %v2513 = vpow.pop %v2512
        %v2514 = vmul.f32 %v2491, 1.442695
        %v2515 = vpow.pop %v2514
        %v2516 = vmul.f32 %v2492, 1.442695
        %v2517 = vpow.pop %v2516
        %v2518 = vmul.f32 %v2493, 1.442695
        %v2519 = vpow.pop %v2518
        %v2520 = vmul.f32 %v2494, 1.442695
        %v2521 = vpow.pop %v2520
        %v2522 = vmul.f32 %v2495, 1.442695
        %v2523 = vpow.pop %v2522
        %v2524 = vmul.f32 %v2496, 1.442695
        %v2525 = vpow.pop %v2524
        %v2526 = vmul.f32 %v2497, 1.442695
        %v2527 = vpow.pop %v2526
        %v2528 = vmul.f32 %v2498, 1.442695
        %v2529 = vpow.pop %v2528
        %v2530 = vmul.f32 %v2499, 1.442695
        %v2531 = vpow.pop %v2530
        %v2532 = vld [vmem:[#allocation3 + $0x80] sm:$0xff]
        %v2533 = vld [vmem:[#allocation3 + $0x88] sm:$0xff]
        %v2534 = vld [vmem:[#allocation3 + $0x90] sm:$0xff]
        %v2535 = vld [vmem:[#allocation3 + $0x98] sm:$0xff]
        %v2536 = vld [vmem:[#allocation3 + $0xa0] sm:$0xff]
        %v2537 = vld [vmem:[#allocation3 + $0xa8] sm:$0xff]
        %v2538 = vld [vmem:[#allocation3 + $0xb0] sm:$0xff]
        %v2539 = vld [vmem:[#allocation3 + $0xb8] sm:$0xff]
        %v2540 = vld [vmem:[#allocation3 + $0xc0] sm:$0xff]
        %v2541 = vld [vmem:[#allocation3 + $0xc8] sm:$0xff]
        %v2542 = vld [vmem:[#allocation3 + $0xd0] sm:$0xff]
        %v2543 = vld [vmem:[#allocation3 + $0xd8] sm:$0xff]
        %v2544 = vld [vmem:[#allocation3 + $0xe0] sm:$0xff]
        %v2545 = vld [vmem:[#allocation3 + $0xe8] sm:$0xff]
        %v2546 = vld [vmem:[#allocation3 + $0xf0] sm:$0xff]
        %v2547 = vld [vmem:[#allocation3 + $0xf8] sm:$0xff]
        %v2548 = vmul.f32 %v2373, %v2532
        %v2549 = vmul.f32 %v2375, %v2533
        %v2550 = vmul.f32 %v2377, %v2534
        %v2551 = vmul.f32 %v2379, %v2535
        %v2552 = vmul.f32 %v2381, %v2536
        %v2553 = vmul.f32 %v2383, %v2537
        %v2554 = vmul.f32 %v2385, %v2538
        %v2555 = vmul.f32 %v2387, %v2539
        %v2556 = vmul.f32 %v2389, %v2540
        %v2557 = vmul.f32 %v2391, %v2541
        %v2558 = vmul.f32 %v2393, %v2542
        %v2559 = vmul.f32 %v2395, %v2543
        %v2560 = vmul.f32 %v2397, %v2544
        %v2561 = vmul.f32 %v2399, %v2545
        %v2562 = vmul.f32 %v2401, %v2546
        %v2563 = vmul.f32 %v2403, %v2547
        %2564 = vadd.xlane.f32.xlu0 %v2501
        %v2565 = vpop.xlane.xlu0 %2564
        %2566 = vadd.xlane.f32.xlu0 %v2503
        %v2567 = vpop.xlane.xlu0 %2566
        %2568 = vadd.xlane.f32.xlu0 %v2505
        %v2569 = vpop.xlane.xlu0 %2568
        %2570 = vadd.xlane.f32.xlu0 %v2507
        %v2571 = vpop.xlane.xlu0 %2570
        %2572 = vadd.xlane.f32.xlu0 %v2509
        %v2573 = vpop.xlane.xlu0 %2572
        %2574 = vadd.xlane.f32.xlu0 %v2511
        %v2575 = vpop.xlane.xlu0 %2574
        %2576 = vadd.xlane.f32.xlu0 %v2513
        %v2577 = vpop.xlane.xlu0 %2576
        %2578 = vadd.xlane.f32.xlu0 %v2515
        %v2579 = vpop.xlane.xlu0 %2578
        %2580 = vadd.xlane.f32.xlu0 %v2517
        %v2581 = vpop.xlane.xlu0 %2580
        %2582 = vadd.xlane.f32.xlu0 %v2519
        %v2583 = vpop.xlane.xlu0 %2582
        %2584 = vadd.xlane.f32.xlu0 %v2521
        %v2585 = vpop.xlane.xlu0 %2584
        %2586 = vadd.xlane.f32.xlu0 %v2523
        %v2587 = vpop.xlane.xlu0 %2586
        %2588 = vadd.xlane.f32.xlu0 %v2525
        %v2589 = vpop.xlane.xlu0 %2588
        %2590 = vadd.xlane.f32.xlu0 %v2527
        %v2591 = vpop.xlane.xlu0 %2590
        %2592 = vadd.xlane.f32.xlu0 %v2529
        %v2593 = vpop.xlane.xlu0 %2592
        %2594 = vadd.xlane.f32.xlu0 %v2531
        %v2595 = vpop.xlane.xlu0 %2594
        %v2596 = vadd.f32 %v2548, %v2565
        %v2597 = vadd.f32 %v2549, %v2567
        %v2598 = vadd.f32 %v2550, %v2569
        %v2599 = vadd.f32 %v2551, %v2571
        %v2600 = vadd.f32 %v2552, %v2573
        %v2601 = vadd.f32 %v2553, %v2575
        %v2602 = vadd.f32 %v2554, %v2577
        %v2603 = vadd.f32 %v2555, %v2579
        %v2604 = vadd.f32 %v2556, %v2581
        %v2605 = vadd.f32 %v2557, %v2583
        %v2606 = vadd.f32 %v2558, %v2585
        %v2607 = vadd.f32 %v2559, %v2587
        %v2608 = vadd.f32 %v2560, %v2589
        %v2609 = vadd.f32 %v2561, %v2591
        %v2610 = vadd.f32 %v2562, %v2593
        %v2611 = vadd.f32 %v2563, %v2595
        %2612 = vst.msk [vmem:[#allocation3 + $0x80] sm:$0xff] %vm1970, %v2596
        %2613 = vst.msk [vmem:[#allocation3 + $0x88] sm:$0xff] %vm1970, %v2597
        %2614 = vst.msk [vmem:[#allocation3 + $0x90] sm:$0xff] %vm1970, %v2598
        %2615 = vst.msk [vmem:[#allocation3 + $0x98] sm:$0xff] %vm1970, %v2599
        %2616 = vst.msk [vmem:[#allocation3 + $0xa0] sm:$0xff] %vm1970, %v2600
        %2617 = vst.msk [vmem:[#allocation3 + $0xa8] sm:$0xff] %vm1970, %v2601
        %2618 = vst.msk [vmem:[#allocation3 + $0xb0] sm:$0xff] %vm1970, %v2602
        %2619 = vst.msk [vmem:[#allocation3 + $0xb8] sm:$0xff] %vm1970, %v2603
        %2620 = vst.msk [vmem:[#allocation3 + $0xc0] sm:$0xff] %vm1970, %v2604
        %2621 = vst.msk [vmem:[#allocation3 + $0xc8] sm:$0xff] %vm1970, %v2605
        %2622 = vst.msk [vmem:[#allocation3 + $0xd0] sm:$0xff] %vm1970, %v2606
        %2623 = vst.msk [vmem:[#allocation3 + $0xd8] sm:$0xff] %vm1970, %v2607
        %2624 = vst.msk [vmem:[#allocation3 + $0xe0] sm:$0xff] %vm1970, %v2608
        %2625 = vst.msk [vmem:[#allocation3 + $0xe8] sm:$0xff] %vm1970, %v2609
        %2626 = vst.msk [vmem:[#allocation3 + $0xf0] sm:$0xff] %vm1970, %v2610
        %2627 = vst.msk [vmem:[#allocation3 + $0xf8] sm:$0xff] %vm1970, %v2611
        %2628 = vmatprep.subr.mxu0 0.0
        %2629 = vmatpush1.xpose.msra.mxu0 %v1412
        %2630 = vmatprep.subr.mxu0 0.0
        %2631 = vmatpush1.xpose.msra.mxu0 %v1417
        %2632 = vmatprep.subr.mxu0 0.0
        %2633 = vmatpush1.xpose.msra.mxu0 %v1422
        %2634 = vmatprep.subr.mxu0 0.0
        %2635 = vmatpush1.xpose.msra.mxu0 %v1427
        %2636 = vmatprep.subr.mxu0 0.0
        %2637 = vmatpush1.xpose.msra.mxu0 %v1432
        %2638 = vmatprep.subr.mxu0 0.0
        %2639 = vmatpush1.xpose.msra.mxu0 %v1437
        %2640 = vmatprep.subr.mxu0 0.0
        %2641 = vmatpush1.xpose.msra.mxu0 %v1442
        %2642 = vmatprep.subr.mxu0 0.0
        %2643 = vmatpush1.xpose.msra.mxu0 %v1447
        %2644 = vmatprep.subr.mxu0 0.0
        %2645 = vmatpush1.xpose.msra.mxu0 %v1452
        %2646 = vmatprep.subr.mxu0 0.0
        %2647 = vmatpush1.xpose.msra.mxu0 %v1457
        %2648 = vmatprep.subr.mxu0 0.0
        %2649 = vmatpush1.xpose.msra.mxu0 %v1462
        %2650 = vmatprep.subr.mxu0 0.0
        %2651 = vmatpush1.xpose.msra.mxu0 %v1467
        %2652 = vmatprep.subr.mxu0 0.0
        %2653 = vmatpush1.xpose.msra.mxu0 %v1472
        %2654 = vmatprep.subr.mxu0 0.0
        %2655 = vmatpush1.xpose.msra.mxu0 %v1477
        %2656 = vmatprep.subr.mxu0 0.0
        %2657 = vmatpush1.xpose.msra.mxu0 %v1482
        %2658 = vmatprep.subr.mxu0 0.0
        %2659 = vmatpush1.xpose.msra.mxu0 %v1487
        %2660 = vmatprep.subr.mxu0 0.0
        %2661 = vmatpush1.xpose.msra.mxu0 0.0
        %2662 = vmatprep.subr.mxu0 0.0
        %2663 = vmatpush1.xpose.msra.mxu0 0.0
        %2664 = vmatprep.subr.mxu0 0.0
        %2665 = vmatpush1.xpose.msra.mxu0 0.0
        %2666 = vmatprep.subr.mxu0 0.0
        %2667 = vmatpush1.xpose.msra.mxu0 0.0
        %2668 = vmatprep.subr.mxu0 0.0
        %2669 = vmatpush1.xpose.msra.mxu0 0.0
        %2670 = vmatprep.subr.mxu0 0.0
        %2671 = vmatpush1.xpose.msra.mxu0 0.0
        %2672 = vmatprep.subr.mxu0 0.0
        %2673 = vmatpush1.xpose.msra.mxu0 0.0
        %2674 = vmatprep.subr.mxu0 0.0
        %2675 = vmatpush1.xpose.msra.mxu0 0.0
        %2676 = vmatprep.subr.mxu0 0.0
        %2677 = vmatpush1.xpose.msra.mxu0 0.0
        %2678 = vmatprep.subr.mxu0 0.0
        %2679 = vmatpush1.xpose.msra.mxu0 0.0
        %2680 = vmatprep.subr.mxu0 0.0
        %2681 = vmatpush1.xpose.msra.mxu0 0.0
        %2682 = vmatprep.subr.mxu0 0.0
        %2683 = vmatpush1.xpose.msra.mxu0 0.0
        %2684 = vmatprep.subr.mxu0 0.0
        %2685 = vmatpush1.xpose.msra.mxu0 0.0
        %2686 = vmatprep.subr.mxu0 0.0
        %2687 = vmatpush1.xpose.msra.mxu0 0.0
        %2688 = vmatprep.subr.mxu0 0.0
        %2689 = vmatpush1.xpose.msra.mxu0 0.0
        %2690 = vmatprep.subr.mxu0 0.0
        %2691 = vmatpush1.xpose.msra.mxu0 0.0
        %2692 = vmatprep.mubr.f32.mxu0 0.0
        %2693 = vmatmul.mubr.f32.gmra.mrb[0].mxu0 %v2501
        %v2694 = vpop.f32.mrb[0].mxu0
        %v2695 = vadd.f32 0.0, %v2694
        %v2696 = vpop.f32.mrb[0].mxu0
        %2697 = vmatprep.mubr.f32.mxu0 0.0
        %2698 = vmatmul.mubr.f32.gmra.mrb[0].mxu0 %v2503
        %v2699 = vpop.f32.mrb[0].mxu0
        %v2700 = vadd.f32 0.0, %v2699
        %v2701 = vpop.f32.mrb[0].mxu0
        %2702 = vmatprep.mubr.f32.mxu0 0.0
        %2703 = vmatmul.mubr.f32.gmra.mrb[0].mxu0 %v2505
        %v2704 = vpop.f32.mrb[0].mxu0
        %v2705 = vadd.f32 0.0, %v2704
        %v2706 = vpop.f32.mrb[0].mxu0
        %2707 = vmatprep.mubr.f32.mxu0 0.0
        %2708 = vmatmul.mubr.f32.gmra.mrb[0].mxu0 %v2507
        %v2709 = vpop.f32.mrb[0].mxu0
        %v2710 = vadd.f32 0.0, %v2709
        %v2711 = vpop.f32.mrb[0].mxu0
        %2712 = vmatprep.mubr.f32.mxu0 0.0
        %2713 = vmatmul.mubr.f32.gmra.mrb[0].mxu0 %v2509
        %v2714 = vpop.f32.mrb[0].mxu0
        %v2715 = vadd.f32 0.0, %v2714
        %v2716 = vpop.f32.mrb[0].mxu0
        %2717 = vmatprep.mubr.f32.mxu0 0.0
        %2718 = vmatmul.mubr.f32.gmra.mrb[0].mxu0 %v2511
        %v2719 = vpop.f32.mrb[0].mxu0
        %v2720 = vadd.f32 0.0, %v2719
        %v2721 = vpop.f32.mrb[0].mxu0
        %2722 = vmatprep.mubr.f32.mxu0 0.0
        %2723 = vmatmul.mubr.f32.gmra.mrb[0].mxu0 %v2513
        %v2724 = vpop.f32.mrb[0].mxu0
        %v2725 = vadd.f32 0.0, %v2724
        %v2726 = vpop.f32.mrb[0].mxu0
        %2727 = vmatprep.mubr.f32.mxu0 0.0
        %2728 = vmatmul.mubr.f32.gmra.mrb[0].mxu0 %v2515
        %v2729 = vpop.f32.mrb[0].mxu0
        %v2730 = vadd.f32 0.0, %v2729
        %v2731 = vpop.f32.mrb[0].mxu0
        %2732 = vmatprep.mubr.f32.mxu0 0.0
        %2733 = vmatmul.mubr.f32.gmra.mrb[0].mxu0 %v2517
        %v2734 = vpop.f32.mrb[0].mxu0
        %v2735 = vadd.f32 0.0, %v2734
        %v2736 = vpop.f32.mrb[0].mxu0
        %2737 = vmatprep.mubr.f32.mxu0 0.0
        %2738 = vmatmul.mubr.f32.gmra.mrb[0].mxu0 %v2519
        %v2739 = vpop.f32.mrb[0].mxu0
        %v2740 = vadd.f32 0.0, %v2739
        %v2741 = vpop.f32.mrb[0].mxu0
        %2742 = vmatprep.mubr.f32.mxu0 0.0
        %2743 = vmatmul.mubr.f32.gmra.mrb[0].mxu0 %v2521
        %v2744 = vpop.f32.mrb[0].mxu0
        %v2745 = vadd.f32 0.0, %v2744
        %v2746 = vpop.f32.mrb[0].mxu0
        %2747 = vmatprep.mubr.f32.mxu0 0.0
        %2748 = vmatmul.mubr.f32.gmra.mrb[0].mxu0 %v2523
        %v2749 = vpop.f32.mrb[0].mxu0
        %v2750 = vadd.f32 0.0, %v2749
        %v2751 = vpop.f32.mrb[0].mxu0
        %2752 = vmatprep.mubr.f32.mxu0 0.0
        %2753 = vmatmul.mubr.f32.gmra.mrb[0].mxu0 %v2525
        %v2754 = vpop.f32.mrb[0].mxu0
        %v2755 = vadd.f32 0.0, %v2754
        %v2756 = vpop.f32.mrb[0].mxu0
        %2757 = vmatprep.mubr.f32.mxu0 0.0
        %2758 = vmatmul.mubr.f32.gmra.mrb[0].mxu0 %v2527
        %v2759 = vpop.f32.mrb[0].mxu0
        %v2760 = vadd.f32 0.0, %v2759
        %v2761 = vpop.f32.mrb[0].mxu0
        %2762 = vmatprep.mubr.f32.mxu0 0.0
        %2763 = vmatmul.mubr.f32.gmra.mrb[0].mxu0 %v2529
        %v2764 = vpop.f32.mrb[0].mxu0
        %v2765 = vadd.f32 0.0, %v2764
        %v2766 = vpop.f32.mrb[0].mxu0
        %2767 = vmatprep.mubr.f32.mxu0 0.0
        %2768 = vmatmul.mubr.f32.gmra.mrb[0].mxu0 %v2531
        %v2769 = vpop.f32.mrb[0].mxu0
        %v2770 = vadd.f32 0.0, %v2769
        %v2771 = vpop.f32.mrb[0].mxu0
        %2772 = vdwg.mxu0
        %v2773 = vld [vmem:[#allocation4 + $0x80] sm:$0xff]
        %v2774 = vld [vmem:[#allocation4 + $0x88] sm:$0xff]
        %v2775 = vld [vmem:[#allocation4 + $0x90] sm:$0xff]
        %v2776 = vld [vmem:[#allocation4 + $0x98] sm:$0xff]
        %v2777 = vld [vmem:[#allocation4 + $0xa0] sm:$0xff]
        %v2778 = vld [vmem:[#allocation4 + $0xa8] sm:$0xff]
        %v2779 = vld [vmem:[#allocation4 + $0xb0] sm:$0xff]
        %v2780 = vld [vmem:[#allocation4 + $0xb8] sm:$0xff]
        %v2781 = vld [vmem:[#allocation4 + $0xc0] sm:$0xff]
        %v2782 = vld [vmem:[#allocation4 + $0xc8] sm:$0xff]
        %v2783 = vld [vmem:[#allocation4 + $0xd0] sm:$0xff]
        %v2784 = vld [vmem:[#allocation4 + $0xd8] sm:$0xff]
        %v2785 = vld [vmem:[#allocation4 + $0xe0] sm:$0xff]
        %v2786 = vld [vmem:[#allocation4 + $0xe8] sm:$0xff]
        %v2787 = vld [vmem:[#allocation4 + $0xf0] sm:$0xff]
        %v2788 = vld [vmem:[#allocation4 + $0xf8] sm:$0xff]
        %2790 = vset.pattern.permute.xlu0 0
        %2791 = vperm.xlu0 %2790, %v2373
        %v2792 = vpop.permute.xlu0 %2791
        %2795 = vset.pattern.permute.xlu0 0
        %2796 = vperm.xlu0 %2795, %v2375
        %v2797 = vpop.permute.xlu0 %2796
        %2800 = vset.pattern.permute.xlu0 0
        %2801 = vperm.xlu0 %2800, %v2377
        %v2802 = vpop.permute.xlu0 %2801
        %2805 = vset.pattern.permute.xlu0 0
        %2806 = vperm.xlu0 %2805, %v2379
        %v2807 = vpop.permute.xlu0 %2806
        %2810 = vset.pattern.permute.xlu0 0
        %2811 = vperm.xlu0 %2810, %v2381
        %v2812 = vpop.permute.xlu0 %2811
        %2815 = vset.pattern.permute.xlu0 0
        %2816 = vperm.xlu0 %2815, %v2383
        %v2817 = vpop.permute.xlu0 %2816
        %2820 = vset.pattern.permute.xlu0 0
        %2821 = vperm.xlu0 %2820, %v2385
        %v2822 = vpop.permute.xlu0 %2821
        %2825 = vset.pattern.permute.xlu0 0
        %2826 = vperm.xlu0 %2825, %v2387
        %v2827 = vpop.permute.xlu0 %2826
        %2830 = vset.pattern.permute.xlu0 0
        %2831 = vperm.xlu0 %2830, %v2389
        %v2832 = vpop.permute.xlu0 %2831
        %2835 = vset.pattern.permute.xlu0 0
        %2836 = vperm.xlu0 %2835, %v2391
        %v2837 = vpop.permute.xlu0 %2836
        %2840 = vset.pattern.permute.xlu0 0
        %2841 = vperm.xlu0 %2840, %v2393
        %v2842 = vpop.permute.xlu0 %2841
        %2845 = vset.pattern.permute.xlu0 0
        %2846 = vperm.xlu0 %2845, %v2395
        %v2847 = vpop.permute.xlu0 %2846
        %2850 = vset.pattern.permute.xlu0 0
        %2851 = vperm.xlu0 %2850, %v2397
        %v2852 = vpop.permute.xlu0 %2851
        %2855 = vset.pattern.permute.xlu0 0
        %2856 = vperm.xlu0 %2855, %v2399
        %v2857 = vpop.permute.xlu0 %2856
        %2860 = vset.pattern.permute.xlu0 0
        %2861 = vperm.xlu0 %2860, %v2401
        %v2862 = vpop.permute.xlu0 %2861
        %2865 = vset.pattern.permute.xlu0 0
        %2866 = vperm.xlu0 %2865, %v2403
        %v2867 = vpop.permute.xlu0 %2866
        %v2869 = vmul.f32 %v2792, %v2773
        %v2870 = vmul.f32 %v2797, %v2774
        %v2871 = vmul.f32 %v2802, %v2775
        %v2872 = vmul.f32 %v2807, %v2776
        %v2873 = vmul.f32 %v2812, %v2777
        %v2874 = vmul.f32 %v2817, %v2778
        %v2875 = vmul.f32 %v2822, %v2779
        %v2876 = vmul.f32 %v2827, %v2780
        %v2877 = vmul.f32 %v2832, %v2781
        %v2878 = vmul.f32 %v2837, %v2782
        %v2879 = vmul.f32 %v2842, %v2783
        %v2880 = vmul.f32 %v2847, %v2784
        %v2881 = vmul.f32 %v2852, %v2785
        %v2882 = vmul.f32 %v2857, %v2786
        %v2883 = vmul.f32 %v2862, %v2787
        %v2884 = vmul.f32 %v2867, %v2788
        %v2885 = vadd.f32 %v2869, %v2695
        %v2886 = vadd.f32 %v2870, %v2700
        %v2887 = vadd.f32 %v2871, %v2705
        %v2888 = vadd.f32 %v2872, %v2710
        %v2889 = vadd.f32 %v2873, %v2715
        %v2890 = vadd.f32 %v2874, %v2720
        %v2891 = vadd.f32 %v2875, %v2725
        %v2892 = vadd.f32 %v2876, %v2730
        %v2893 = vadd.f32 %v2877, %v2735
        %v2894 = vadd.f32 %v2878, %v2740
        %v2895 = vadd.f32 %v2879, %v2745
        %v2896 = vadd.f32 %v2880, %v2750
        %v2897 = vadd.f32 %v2881, %v2755
        %v2898 = vadd.f32 %v2882, %v2760
        %v2899 = vadd.f32 %v2883, %v2765
        %v2900 = vadd.f32 %v2884, %v2770
        %2901 = vst [vmem:[#allocation4 + $0x80] sm:$0xff] %v2885
        %2902 = vst [vmem:[#allocation4 + $0x88] sm:$0xff] %v2886
        %2903 = vst [vmem:[#allocation4 + $0x90] sm:$0xff] %v2887
        %2904 = vst [vmem:[#allocation4 + $0x98] sm:$0xff] %v2888
        %2905 = vst [vmem:[#allocation4 + $0xa0] sm:$0xff] %v2889
        %2906 = vst [vmem:[#allocation4 + $0xa8] sm:$0xff] %v2890
        %2907 = vst [vmem:[#allocation4 + $0xb0] sm:$0xff] %v2891
        %2908 = vst [vmem:[#allocation4 + $0xb8] sm:$0xff] %v2892
        %2909 = vst [vmem:[#allocation4 + $0xc0] sm:$0xff] %v2893
        %2910 = vst [vmem:[#allocation4 + $0xc8] sm:$0xff] %v2894
        %2911 = vst [vmem:[#allocation4 + $0xd0] sm:$0xff] %v2895
        %2912 = vst [vmem:[#allocation4 + $0xd8] sm:$0xff] %v2896
        %2913 = vst [vmem:[#allocation4 + $0xe0] sm:$0xff] %v2897
        %2914 = vst [vmem:[#allocation4 + $0xe8] sm:$0xff] %v2898
        %2915 = vst [vmem:[#allocation4 + $0xf0] sm:$0xff] %v2899
        %2916 = vst [vmem:[#allocation4 + $0xf8] sm:$0xff] %v2900
        %2917 = vst.msk [vmem:[#allocation2 + $0x80] sm:$0xff] %vm1970, %v2340
        %2918 = vst.msk [vmem:[#allocation2 + $0x88] sm:$0xff] %vm1970, %v2341
        %2919 = vst.msk [vmem:[#allocation2 + $0x90] sm:$0xff] %vm1970, %v2342
        %2920 = vst.msk [vmem:[#allocation2 + $0x98] sm:$0xff] %vm1970, %v2343
        %2921 = vst.msk [vmem:[#allocation2 + $0xa0] sm:$0xff] %vm1970, %v2344
        %2922 = vst.msk [vmem:[#allocation2 + $0xa8] sm:$0xff] %vm1970, %v2345
        %2923 = vst.msk [vmem:[#allocation2 + $0xb0] sm:$0xff] %vm1970, %v2346
        %2924 = vst.msk [vmem:[#allocation2 + $0xb8] sm:$0xff] %vm1970, %v2347
        %2925 = vst.msk [vmem:[#allocation2 + $0xc0] sm:$0xff] %vm1970, %v2348
        %2926 = vst.msk [vmem:[#allocation2 + $0xc8] sm:$0xff] %vm1970, %v2349
        %2927 = vst.msk [vmem:[#allocation2 + $0xd0] sm:$0xff] %vm1970, %v2350
        %2928 = vst.msk [vmem:[#allocation2 + $0xd8] sm:$0xff] %vm1970, %v2351
        %2929 = vst.msk [vmem:[#allocation2 + $0xe0] sm:$0xff] %vm1970, %v2352
        %2930 = vst.msk [vmem:[#allocation2 + $0xe8] sm:$0xff] %vm1970, %v2353
        %2931 = vst.msk [vmem:[#allocation2 + $0xf0] sm:$0xff] %vm1970, %v2354
        %2932 = vst.msk [vmem:[#allocation2 + $0xf8] sm:$0xff] %vm1970, %v2355
        %v2933 = vld [vmem:[#allocation2 + $0x100] sm:$0xff]
        %v2934 = vld [vmem:[#allocation2 + $0x108] sm:$0xff]
        %v2935 = vld [vmem:[#allocation2 + $0x110] sm:$0xff]
        %v2936 = vld [vmem:[#allocation2 + $0x118] sm:$0xff]
        %v2937 = vld [vmem:[#allocation2 + $0x120] sm:$0xff]
        %v2938 = vld [vmem:[#allocation2 + $0x128] sm:$0xff]
        %v2939 = vld [vmem:[#allocation2 + $0x130] sm:$0xff]
        %v2940 = vld [vmem:[#allocation2 + $0x138] sm:$0xff]
        %v2941 = vld [vmem:[#allocation2 + $0x140] sm:$0xff]
        %v2942 = vld [vmem:[#allocation2 + $0x148] sm:$0xff]
        %v2943 = vld [vmem:[#allocation2 + $0x150] sm:$0xff]
        %v2944 = vld [vmem:[#allocation2 + $0x158] sm:$0xff]
        %v2945 = vld [vmem:[#allocation2 + $0x160] sm:$0xff]
        %v2946 = vld [vmem:[#allocation2 + $0x168] sm:$0xff]
        %v2947 = vld [vmem:[#allocation2 + $0x170] sm:$0xff]
        %v2948 = vld [vmem:[#allocation2 + $0x178] sm:$0xff]
        %2949 = vmax.xlane.f32.xlu0 %v1172
        %v2950 = vpop.xlane.xlu0 %2949
        %2951 = vmax.xlane.f32.xlu0 %v1177
        %v2952 = vpop.xlane.xlu0 %2951
        %2953 = vmax.xlane.f32.xlu0 %v1182
        %v2954 = vpop.xlane.xlu0 %2953
        %2955 = vmax.xlane.f32.xlu0 %v1187
        %v2956 = vpop.xlane.xlu0 %2955
        %2957 = vmax.xlane.f32.xlu0 %v1192
        %v2958 = vpop.xlane.xlu0 %2957
        %2959 = vmax.xlane.f32.xlu0 %v1197
        %v2960 = vpop.xlane.xlu0 %2959
        %2961 = vmax.xlane.f32.xlu0 %v1202
        %v2962 = vpop.xlane.xlu0 %2961
        %2963 = vmax.xlane.f32.xlu0 %v1207
        %v2964 = vpop.xlane.xlu0 %2963
        %2965 = vmax.xlane.f32.xlu0 %v1212
        %v2966 = vpop.xlane.xlu0 %2965
        %2967 = vmax.xlane.f32.xlu0 %v1217
        %v2968 = vpop.xlane.xlu0 %2967
        %2969 = vmax.xlane.f32.xlu0 %v1222
        %v2970 = vpop.xlane.xlu0 %2969
        %2971 = vmax.xlane.f32.xlu0 %v1227
        %v2972 = vpop.xlane.xlu0 %2971
        %2973 = vmax.xlane.f32.xlu0 %v1232
        %v2974 = vpop.xlane.xlu0 %2973
        %2975 = vmax.xlane.f32.xlu0 %v1237
        %v2976 = vpop.xlane.xlu0 %2975
        %2977 = vmax.xlane.f32.xlu0 %v1242
        %v2978 = vpop.xlane.xlu0 %2977
        %2979 = vmax.xlane.f32.xlu0 %v1247
        %v2980 = vpop.xlane.xlu0 %2979
        %v2981 = vmax.f32 %v2933, %v2950
        %v2982 = vmax.f32 %v2934, %v2952
        %v2983 = vmax.f32 %v2935, %v2954
        %v2984 = vmax.f32 %v2936, %v2956
        %v2985 = vmax.f32 %v2937, %v2958
        %v2986 = vmax.f32 %v2938, %v2960
        %v2987 = vmax.f32 %v2939, %v2962
        %v2988 = vmax.f32 %v2940, %v2964
        %v2989 = vmax.f32 %v2941, %v2966
        %v2990 = vmax.f32 %v2942, %v2968
        %v2991 = vmax.f32 %v2943, %v2970
        %v2992 = vmax.f32 %v2944, %v2972
        %v2993 = vmax.f32 %v2945, %v2974
        %v2994 = vmax.f32 %v2946, %v2976
        %v2995 = vmax.f32 %v2947, %v2978
        %v2996 = vmax.f32 %v2948, %v2980
        %v2997 = vsub.f32 %v2933, %v2981
        %v2998 = vsub.f32 %v2934, %v2982
        %v2999 = vsub.f32 %v2935, %v2983
        %v3000 = vsub.f32 %v2936, %v2984
        %v3001 = vsub.f32 %v2937, %v2985
        %v3002 = vsub.f32 %v2938, %v2986
        %v3003 = vsub.f32 %v2939, %v2987
        %v3004 = vsub.f32 %v2940, %v2988
        %v3005 = vsub.f32 %v2941, %v2989
        %v3006 = vsub.f32 %v2942, %v2990
        %v3007 = vsub.f32 %v2943, %v2991
        %v3008 = vsub.f32 %v2944, %v2992
        %v3009 = vsub.f32 %v2945, %v2993
        %v3010 = vsub.f32 %v2946, %v2994
        %v3011 = vsub.f32 %v2947, %v2995
        %v3012 = vsub.f32 %v2948, %v2996
        %v3013 = vmul.f32 %v2997, 1.442695
        %v3014 = vpow.pop %v3013
        %v3015 = vmul.f32 %v2998, 1.442695
        %v3016 = vpow.pop %v3015
        %v3017 = vmul.f32 %v2999, 1.442695
        %v3018 = vpow.pop %v3017
        %v3019 = vmul.f32 %v3000, 1.442695
        %v3020 = vpow.pop %v3019
        %v3021 = vmul.f32 %v3001, 1.442695
        %v3022 = vpow.pop %v3021
        %v3023 = vmul.f32 %v3002, 1.442695
        %v3024 = vpow.pop %v3023
        %v3025 = vmul.f32 %v3003, 1.442695
        %v3026 = vpow.pop %v3025
        %v3027 = vmul.f32 %v3004, 1.442695
        %v3028 = vpow.pop %v3027
        %v3029 = vmul.f32 %v3005, 1.442695
        %v3030 = vpow.pop %v3029
        %v3031 = vmul.f32 %v3006, 1.442695
        %v3032 = vpow.pop %v3031
        %v3033 = vmul.f32 %v3007, 1.442695
        %v3034 = vpow.pop %v3033
        %v3035 = vmul.f32 %v3008, 1.442695
        %v3036 = vpow.pop %v3035
        %v3037 = vmul.f32 %v3009, 1.442695
        %v3038 = vpow.pop %v3037
        %v3039 = vmul.f32 %v3010, 1.442695
        %v3040 = vpow.pop %v3039
        %v3041 = vmul.f32 %v3011, 1.442695
        %v3042 = vpow.pop %v3041
        %v3043 = vmul.f32 %v3012, 1.442695
        %v3044 = vpow.pop %v3043
        %3046 = vset.pattern.permute.xlu0 0
        %3047 = vperm.xlu0 %3046, %v2981
        %v3048 = vpop.permute.xlu0 %3047
        %3051 = vset.pattern.permute.xlu0 0
        %3052 = vperm.xlu0 %3051, %v2982
        %v3053 = vpop.permute.xlu0 %3052
        %3056 = vset.pattern.permute.xlu0 0
        %3057 = vperm.xlu0 %3056, %v2983
        %v3058 = vpop.permute.xlu0 %3057
        %3061 = vset.pattern.permute.xlu0 0
        %3062 = vperm.xlu0 %3061, %v2984
        %v3063 = vpop.permute.xlu0 %3062
        %3066 = vset.pattern.permute.xlu0 0
        %3067 = vperm.xlu0 %3066, %v2985
        %v3068 = vpop.permute.xlu0 %3067
        %3071 = vset.pattern.permute.xlu0 0
        %3072 = vperm.xlu0 %3071, %v2986
        %v3073 = vpop.permute.xlu0 %3072
        %3076 = vset.pattern.permute.xlu0 0
        %3077 = vperm.xlu0 %3076, %v2987
        %v3078 = vpop.permute.xlu0 %3077
        %3081 = vset.pattern.permute.xlu0 0
        %3082 = vperm.xlu0 %3081, %v2988
        %v3083 = vpop.permute.xlu0 %3082
        %3086 = vset.pattern.permute.xlu0 0
        %3087 = vperm.xlu0 %3086, %v2989
        %v3088 = vpop.permute.xlu0 %3087
        %3091 = vset.pattern.permute.xlu0 0
        %3092 = vperm.xlu0 %3091, %v2990
        %v3093 = vpop.permute.xlu0 %3092
        %3096 = vset.pattern.permute.xlu0 0
        %3097 = vperm.xlu0 %3096, %v2991
        %v3098 = vpop.permute.xlu0 %3097
        %3101 = vset.pattern.permute.xlu0 0
        %3102 = vperm.xlu0 %3101, %v2992
        %v3103 = vpop.permute.xlu0 %3102
        %3106 = vset.pattern.permute.xlu0 0
        %3107 = vperm.xlu0 %3106, %v2993
        %v3108 = vpop.permute.xlu0 %3107
        %3111 = vset.pattern.permute.xlu0 0
        %3112 = vperm.xlu0 %3111, %v2994
        %v3113 = vpop.permute.xlu0 %3112
        %3116 = vset.pattern.permute.xlu0 0
        %3117 = vperm.xlu0 %3116, %v2995
        %v3118 = vpop.permute.xlu0 %3117
        %3121 = vset.pattern.permute.xlu0 0
        %3122 = vperm.xlu0 %3121, %v2996
        %v3123 = vpop.permute.xlu0 %3122
        %v3125 = vsub.f32 %v1172, %v3048
        %v3126 = vsub.f32 %v1177, %v3053
        %v3127 = vsub.f32 %v1182, %v3058
        %v3128 = vsub.f32 %v1187, %v3063
        %v3129 = vsub.f32 %v1192, %v3068
        %v3130 = vsub.f32 %v1197, %v3073
        %v3131 = vsub.f32 %v1202, %v3078
        %v3132 = vsub.f32 %v1207, %v3083
        %v3133 = vsub.f32 %v1212, %v3088
        %v3134 = vsub.f32 %v1217, %v3093
        %v3135 = vsub.f32 %v1222, %v3098
        %v3136 = vsub.f32 %v1227, %v3103
        %v3137 = vsub.f32 %v1232, %v3108
        %v3138 = vsub.f32 %v1237, %v3113
        %v3139 = vsub.f32 %v1242, %v3118
        %v3140 = vsub.f32 %v1247, %v3123
        %v3141 = vmul.f32 %v3125, 1.442695
        %v3142 = vpow.pop %v3141
        %v3143 = vmul.f32 %v3126, 1.442695
        %v3144 = vpow.pop %v3143
        %v3145 = vmul.f32 %v3127, 1.442695
        %v3146 = vpow.pop %v3145
        %v3147 = vmul.f32 %v3128, 1.442695
        %v3148 = vpow.pop %v3147
        %v3149 = vmul.f32 %v3129, 1.442695
        %v3150 = vpow.pop %v3149
        %v3151 = vmul.f32 %v3130, 1.442695
        %v3152 = vpow.pop %v3151
        %v3153 = vmul.f32 %v3131, 1.442695
        %v3154 = vpow.pop %v3153
        %v3155 = vmul.f32 %v3132, 1.442695
        %v3156 = vpow.pop %v3155
        %v3157 = vmul.f32 %v3133, 1.442695
        %v3158 = vpow.pop %v3157
        %v3159 = vmul.f32 %v3134, 1.442695
        %v3160 = vpow.pop %v3159
        %v3161 = vmul.f32 %v3135, 1.442695
        %v3162 = vpow.pop %v3161
        %v3163 = vmul.f32 %v3136, 1.442695
        %v3164 = vpow.pop %v3163
        %v3165 = vmul.f32 %v3137, 1.442695
        %v3166 = vpow.pop %v3165
        %v3167 = vmul.f32 %v3138, 1.442695
        %v3168 = vpow.pop %v3167
        %v3169 = vmul.f32 %v3139, 1.442695
        %v3170 = vpow.pop %v3169
        %v3171 = vmul.f32 %v3140, 1.442695
        %v3172 = vpow.pop %v3171
        %v3173 = vld [vmem:[#allocation3 + $0x100] sm:$0xff]
        %v3174 = vld [vmem:[#allocation3 + $0x108] sm:$0xff]
        %v3175 = vld [vmem:[#allocation3 + $0x110] sm:$0xff]
        %v3176 = vld [vmem:[#allocation3 + $0x118] sm:$0xff]
        %v3177 = vld [vmem:[#allocation3 + $0x120] sm:$0xff]
        %v3178 = vld [vmem:[#allocation3 + $0x128] sm:$0xff]
        %v3179 = vld [vmem:[#allocation3 + $0x130] sm:$0xff]
        %v3180 = vld [vmem:[#allocation3 + $0x138] sm:$0xff]
        %v3181 = vld [vmem:[#allocation3 + $0x140] sm:$0xff]
        %v3182 = vld [vmem:[#allocation3 + $0x148] sm:$0xff]
        %v3183 = vld [vmem:[#allocation3 + $0x150] sm:$0xff]
        %v3184 = vld [vmem:[#allocation3 + $0x158] sm:$0xff]
        %v3185 = vld [vmem:[#allocation3 + $0x160] sm:$0xff]
        %v3186 = vld [vmem:[#allocation3 + $0x168] sm:$0xff]
        %v3187 = vld [vmem:[#allocation3 + $0x170] sm:$0xff]
        %v3188 = vld [vmem:[#allocation3 + $0x178] sm:$0xff]
        %v3189 = vmul.f32 %v3014, %v3173
        %v3190 = vmul.f32 %v3016, %v3174
        %v3191 = vmul.f32 %v3018, %v3175
        %v3192 = vmul.f32 %v3020, %v3176
        %v3193 = vmul.f32 %v3022, %v3177
        %v3194 = vmul.f32 %v3024, %v3178
        %v3195 = vmul.f32 %v3026, %v3179
        %v3196 = vmul.f32 %v3028, %v3180
        %v3197 = vmul.f32 %v3030, %v3181
        %v3198 = vmul.f32 %v3032, %v3182
        %v3199 = vmul.f32 %v3034, %v3183
        %v3200 = vmul.f32 %v3036, %v3184
        %v3201 = vmul.f32 %v3038, %v3185
        %v3202 = vmul.f32 %v3040, %v3186
        %v3203 = vmul.f32 %v3042, %v3187
        %v3204 = vmul.f32 %v3044, %v3188
        %3205 = vadd.xlane.f32.xlu0 %v3142
        %v3206 = vpop.xlane.xlu0 %3205
        %3207 = vadd.xlane.f32.xlu0 %v3144
        %v3208 = vpop.xlane.xlu0 %3207
        %3209 = vadd.xlane.f32.xlu0 %v3146
        %v3210 = vpop.xlane.xlu0 %3209
        %3211 = vadd.xlane.f32.xlu0 %v3148
        %v3212 = vpop.xlane.xlu0 %3211
        %3213 = vadd.xlane.f32.xlu0 %v3150
        %v3214 = vpop.xlane.xlu0 %3213
        %3215 = vadd.xlane.f32.xlu0 %v3152
        %v3216 = vpop.xlane.xlu0 %3215
        %3217 = vadd.xlane.f32.xlu0 %v3154
        %v3218 = vpop.xlane.xlu0 %3217
        %3219 = vadd.xlane.f32.xlu0 %v3156
        %v3220 = vpop.xlane.xlu0 %3219
        %3221 = vadd.xlane.f32.xlu0 %v3158
        %v3222 = vpop.xlane.xlu0 %3221
        %3223 = vadd.xlane.f32.xlu0 %v3160
        %v3224 = vpop.xlane.xlu0 %3223
        %3225 = vadd.xlane.f32.xlu0 %v3162
        %v3226 = vpop.xlane.xlu0 %3225
        %3227 = vadd.xlane.f32.xlu0 %v3164
        %v3228 = vpop.xlane.xlu0 %3227
        %3229 = vadd.xlane.f32.xlu0 %v3166
        %v3230 = vpop.xlane.xlu0 %3229
        %3231 = vadd.xlane.f32.xlu0 %v3168
        %v3232 = vpop.xlane.xlu0 %3231
        %3233 = vadd.xlane.f32.xlu0 %v3170
        %v3234 = vpop.xlane.xlu0 %3233
        %3235 = vadd.xlane.f32.xlu0 %v3172
        %v3236 = vpop.xlane.xlu0 %3235
        %v3237 = vadd.f32 %v3189, %v3206
        %v3238 = vadd.f32 %v3190, %v3208
        %v3239 = vadd.f32 %v3191, %v3210
        %v3240 = vadd.f32 %v3192, %v3212
        %v3241 = vadd.f32 %v3193, %v3214
        %v3242 = vadd.f32 %v3194, %v3216
        %v3243 = vadd.f32 %v3195, %v3218
        %v3244 = vadd.f32 %v3196, %v3220
        %v3245 = vadd.f32 %v3197, %v3222
        %v3246 = vadd.f32 %v3198, %v3224
        %v3247 = vadd.f32 %v3199, %v3226
        %v3248 = vadd.f32 %v3200, %v3228
        %v3249 = vadd.f32 %v3201, %v3230
        %v3250 = vadd.f32 %v3202, %v3232
        %v3251 = vadd.f32 %v3203, %v3234
        %v3252 = vadd.f32 %v3204, %v3236
        %3253 = vst.msk [vmem:[#allocation3 + $0x100] sm:$0xff] %vm1970, %v3237
        %3254 = vst.msk [vmem:[#allocation3 + $0x108] sm:$0xff] %vm1970, %v3238
        %3255 = vst.msk [vmem:[#allocation3 + $0x110] sm:$0xff] %vm1970, %v3239
        %3256 = vst.msk [vmem:[#allocation3 + $0x118] sm:$0xff] %vm1970, %v3240
        %3257 = vst.msk [vmem:[#allocation3 + $0x120] sm:$0xff] %vm1970, %v3241
        %3258 = vst.msk [vmem:[#allocation3 + $0x128] sm:$0xff] %vm1970, %v3242
        %3259 = vst.msk [vmem:[#allocation3 + $0x130] sm:$0xff] %vm1970, %v3243
        %3260 = vst.msk [vmem:[#allocation3 + $0x138] sm:$0xff] %vm1970, %v3244
        %3261 = vst.msk [vmem:[#allocation3 + $0x140] sm:$0xff] %vm1970, %v3245
        %3262 = vst.msk [vmem:[#allocation3 + $0x148] sm:$0xff] %vm1970, %v3246
        %3263 = vst.msk [vmem:[#allocation3 + $0x150] sm:$0xff] %vm1970, %v3247
        %3264 = vst.msk [vmem:[#allocation3 + $0x158] sm:$0xff] %vm1970, %v3248
        %3265 = vst.msk [vmem:[#allocation3 + $0x160] sm:$0xff] %vm1970, %v3249
        %3266 = vst.msk [vmem:[#allocation3 + $0x168] sm:$0xff] %vm1970, %v3250
        %3267 = vst.msk [vmem:[#allocation3 + $0x170] sm:$0xff] %vm1970, %v3251
        %3268 = vst.msk [vmem:[#allocation3 + $0x178] sm:$0xff] %vm1970, %v3252
        %3269 = vmatprep.subr.mxu0 0.0
        %3270 = vmatpush1.xpose.msra.mxu0 %v1492
        %3271 = vmatprep.subr.mxu0 0.0
        %3272 = vmatpush1.xpose.msra.mxu0 %v1497
        %3273 = vmatprep.subr.mxu0 0.0
        %3274 = vmatpush1.xpose.msra.mxu0 %v1502
        %3275 = vmatprep.subr.mxu0 0.0
        %3276 = vmatpush1.xpose.msra.mxu0 %v1507
        %3277 = vmatprep.subr.mxu0 0.0
        %3278 = vmatpush1.xpose.msra.mxu0 %v1512
        %3279 = vmatprep.subr.mxu0 0.0
        %3280 = vmatpush1.xpose.msra.mxu0 %v1517
        %3281 = vmatprep.subr.mxu0 0.0
        %3282 = vmatpush1.xpose.msra.mxu0 %v1522
        %3283 = vmatprep.subr.mxu0 0.0
        %3284 = vmatpush1.xpose.msra.mxu0 %v1527
        %3285 = vmatprep.subr.mxu0 0.0
        %3286 = vmatpush1.xpose.msra.mxu0 %v1532
        %3287 = vmatprep.subr.mxu0 0.0
        %3288 = vmatpush1.xpose.msra.mxu0 %v1537
        %3289 = vmatprep.subr.mxu0 0.0
        %3290 = vmatpush1.xpose.msra.mxu0 %v1542
        %3291 = vmatprep.subr.mxu0 0.0
        %3292 = vmatpush1.xpose.msra.mxu0 %v1547
        %3293 = vmatprep.subr.mxu0 0.0
        %3294 = vmatpush1.xpose.msra.mxu0 %v1552
        %3295 = vmatprep.subr.mxu0 0.0
        %3296 = vmatpush1.xpose.msra.mxu0 %v1557
        %3297 = vmatprep.subr.mxu0 0.0
        %3298 = vmatpush1.xpose.msra.mxu0 %v1562
        %3299 = vmatprep.subr.mxu0 0.0
        %3300 = vmatpush1.xpose.msra.mxu0 %v1567
        %3301 = vmatprep.subr.mxu0 0.0
        %3302 = vmatpush1.xpose.msra.mxu0 0.0
        %3303 = vmatprep.subr.mxu0 0.0
        %3304 = vmatpush1.xpose.msra.mxu0 0.0
        %3305 = vmatprep.subr.mxu0 0.0
        %3306 = vmatpush1.xpose.msra.mxu0 0.0
        %3307 = vmatprep.subr.mxu0 0.0
        %3308 = vmatpush1.xpose.msra.mxu0 0.0
        %3309 = vmatprep.subr.mxu0 0.0
        %3310 = vmatpush1.xpose.msra.mxu0 0.0
        %3311 = vmatprep.subr.mxu0 0.0
        %3312 = vmatpush1.xpose.msra.mxu0 0.0
        %3313 = vmatprep.subr.mxu0 0.0
        %3314 = vmatpush1.xpose.msra.mxu0 0.0
        %3315 = vmatprep.subr.mxu0 0.0
        %3316 = vmatpush1.xpose.msra.mxu0 0.0
        %3317 = vmatprep.subr.mxu0 0.0
        %3318 = vmatpush1.xpose.msra.mxu0 0.0
        %3319 = vmatprep.subr.mxu0 0.0
        %3320 = vmatpush1.xpose.msra.mxu0 0.0
        %3321 = vmatprep.subr.mxu0 0.0
        %3322 = vmatpush1.xpose.msra.mxu0 0.0
        %3323 = vmatprep.subr.mxu0 0.0
        %3324 = vmatpush1.xpose.msra.mxu0 0.0
        %3325 = vmatprep.subr.mxu0 0.0
        %3326 = vmatpush1.xpose.msra.mxu0 0.0
        %3327 = vmatprep.subr.mxu0 0.0
        %3328 = vmatpush1.xpose.msra.mxu0 0.0
        %3329 = vmatprep.subr.mxu0 0.0
        %3330 = vmatpush1.xpose.msra.mxu0 0.0
        %3331 = vmatprep.subr.mxu0 0.0
        %3332 = vmatpush1.xpose.msra.mxu0 0.0
        %3333 = vmatprep.mubr.f32.mxu0 0.0
        %3334 = vmatmul.mubr.f32.gmra.mrb[0].mxu0 %v3142
        %v3335 = vpop.f32.mrb[0].mxu0
        %v3336 = vadd.f32 0.0, %v3335
        %v3337 = vpop.f32.mrb[0].mxu0
        %3338 = vmatprep.mubr.f32.mxu0 0.0
        %3339 = vmatmul.mubr.f32.gmra.mrb[0].mxu0 %v3144
        %v3340 = vpop.f32.mrb[0].mxu0
        %v3341 = vadd.f32 0.0, %v3340
        %v3342 = vpop.f32.mrb[0].mxu0
        %3343 = vmatprep.mubr.f32.mxu0 0.0
        %3344 = vmatmul.mubr.f32.gmra.mrb[0].mxu0 %v3146
        %v3345 = vpop.f32.mrb[0].mxu0
        %v3346 = vadd.f32 0.0, %v3345
        %v3347 = vpop.f32.mrb[0].mxu0
        %3348 = vmatprep.mubr.f32.mxu0 0.0
        %3349 = vmatmul.mubr.f32.gmra.mrb[0].mxu0 %v3148
        %v3350 = vpop.f32.mrb[0].mxu0
        %v3351 = vadd.f32 0.0, %v3350
        %v3352 = vpop.f32.mrb[0].mxu0
        %3353 = vmatprep.mubr.f32.mxu0 0.0
        %3354 = vmatmul.mubr.f32.gmra.mrb[0].mxu0 %v3150
        %v3355 = vpop.f32.mrb[0].mxu0
        %v3356 = vadd.f32 0.0, %v3355
        %v3357 = vpop.f32.mrb[0].mxu0
        %3358 = vmatprep.mubr.f32.mxu0 0.0
        %3359 = vmatmul.mubr.f32.gmra.mrb[0].mxu0 %v3152
        %v3360 = vpop.f32.mrb[0].mxu0
        %v3361 = vadd.f32 0.0, %v3360
        %v3362 = vpop.f32.mrb[0].mxu0
        %3363 = vmatprep.mubr.f32.mxu0 0.0
        %3364 = vmatmul.mubr.f32.gmra.mrb[0].mxu0 %v3154
        %v3365 = vpop.f32.mrb[0].mxu0
        %v3366 = vadd.f32 0.0, %v3365
        %v3367 = vpop.f32.mrb[0].mxu0
        %3368 = vmatprep.mubr.f32.mxu0 0.0
        %3369 = vmatmul.mubr.f32.gmra.mrb[0].mxu0 %v3156
        %v3370 = vpop.f32.mrb[0].mxu0
        %v3371 = vadd.f32 0.0, %v3370
        %v3372 = vpop.f32.mrb[0].mxu0
        %3373 = vmatprep.mubr.f32.mxu0 0.0
        %3374 = vmatmul.mubr.f32.gmra.mrb[0].mxu0 %v3158
        %v3375 = vpop.f32.mrb[0].mxu0
        %v3376 = vadd.f32 0.0, %v3375
        %v3377 = vpop.f32.mrb[0].mxu0
        %3378 = vmatprep.mubr.f32.mxu0 0.0
        %3379 = vmatmul.mubr.f32.gmra.mrb[0].mxu0 %v3160
        %v3380 = vpop.f32.mrb[0].mxu0
        %v3381 = vadd.f32 0.0, %v3380
        %v3382 = vpop.f32.mrb[0].mxu0
        %3383 = vmatprep.mubr.f32.mxu0 0.0
        %3384 = vmatmul.mubr.f32.gmra.mrb[0].mxu0 %v3162
        %v3385 = vpop.f32.mrb[0].mxu0
        %v3386 = vadd.f32 0.0, %v3385
        %v3387 = vpop.f32.mrb[0].mxu0
        %3388 = vmatprep.mubr.f32.mxu0 0.0
        %3389 = vmatmul.mubr.f32.gmra.mrb[0].mxu0 %v3164
        %v3390 = vpop.f32.mrb[0].mxu0
        %v3391 = vadd.f32 0.0, %v3390
        %v3392 = vpop.f32.mrb[0].mxu0
        %3393 = vmatprep.mubr.f32.mxu0 0.0
        %3394 = vmatmul.mubr.f32.gmra.mrb[0].mxu0 %v3166
        %v3395 = vpop.f32.mrb[0].mxu0
        %v3396 = vadd.f32 0.0, %v3395
        %v3397 = vpop.f32.mrb[0].mxu0
        %3398 = vmatprep.mubr.f32.mxu0 0.0
        %3399 = vmatmul.mubr.f32.gmra.mrb[0].mxu0 %v3168
        %v3400 = vpop.f32.mrb[0].mxu0
        %v3401 = vadd.f32 0.0, %v3400
        %v3402 = vpop.f32.mrb[0].mxu0
        %3403 = vmatprep.mubr.f32.mxu0 0.0
        %3404 = vmatmul.mubr.f32.gmra.mrb[0].mxu0 %v3170
        %v3405 = vpop.f32.mrb[0].mxu0
        %v3406 = vadd.f32 0.0, %v3405
        %v3407 = vpop.f32.mrb[0].mxu0
        %3408 = vmatprep.mubr.f32.mxu0 0.0
        %3409 = vmatmul.mubr.f32.gmra.mrb[0].mxu0 %v3172
        %v3410 = vpop.f32.mrb[0].mxu0
        %v3411 = vadd.f32 0.0, %v3410
        %v3412 = vpop.f32.mrb[0].mxu0
        %3413 = vdwg.mxu0
        %v3414 = vld [vmem:[#allocation4 + $0x100] sm:$0xff]
        %v3415 = vld [vmem:[#allocation4 + $0x108] sm:$0xff]
        %v3416 = vld [vmem:[#allocation4 + $0x110] sm:$0xff]
        %v3417 = vld [vmem:[#allocation4 + $0x118] sm:$0xff]
        %v3418 = vld [vmem:[#allocation4 + $0x120] sm:$0xff]
        %v3419 = vld [vmem:[#allocation4 + $0x128] sm:$0xff]
        %v3420 = vld [vmem:[#allocation4 + $0x130] sm:$0xff]
        %v3421 = vld [vmem:[#allocation4 + $0x138] sm:$0xff]
        %v3422 = vld [vmem:[#allocation4 + $0x140] sm:$0xff]
        %v3423 = vld [vmem:[#allocation4 + $0x148] sm:$0xff]
        %v3424 = vld [vmem:[#allocation4 + $0x150] sm:$0xff]
        %v3425 = vld [vmem:[#allocation4 + $0x158] sm:$0xff]
        %v3426 = vld [vmem:[#allocation4 + $0x160] sm:$0xff]
        %v3427 = vld [vmem:[#allocation4 + $0x168] sm:$0xff]
        %v3428 = vld [vmem:[#allocation4 + $0x170] sm:$0xff]
        %v3429 = vld [vmem:[#allocation4 + $0x178] sm:$0xff]
        %3431 = vset.pattern.permute.xlu0 0
        %3432 = vperm.xlu0 %3431, %v3014
        %v3433 = vpop.permute.xlu0 %3432
        %3436 = vset.pattern.permute.xlu0 0
        %3437 = vperm.xlu0 %3436, %v3016
        %v3438 = vpop.permute.xlu0 %3437
        %3441 = vset.pattern.permute.xlu0 0
        %3442 = vperm.xlu0 %3441, %v3018
        %v3443 = vpop.permute.xlu0 %3442
        %3446 = vset.pattern.permute.xlu0 0
        %3447 = vperm.xlu0 %3446, %v3020
        %v3448 = vpop.permute.xlu0 %3447
        %3451 = vset.pattern.permute.xlu0 0
        %3452 = vperm.xlu0 %3451, %v3022
        %v3453 = vpop.permute.xlu0 %3452
        %3456 = vset.pattern.permute.xlu0 0
        %3457 = vperm.xlu0 %3456, %v3024
        %v3458 = vpop.permute.xlu0 %3457
        %3461 = vset.pattern.permute.xlu0 0
        %3462 = vperm.xlu0 %3461, %v3026
        %v3463 = vpop.permute.xlu0 %3462
        %3466 = vset.pattern.permute.xlu0 0
        %3467 = vperm.xlu0 %3466, %v3028
        %v3468 = vpop.permute.xlu0 %3467
        %3471 = vset.pattern.permute.xlu0 0
        %3472 = vperm.xlu0 %3471, %v3030
        %v3473 = vpop.permute.xlu0 %3472
        %3476 = vset.pattern.permute.xlu0 0
        %3477 = vperm.xlu0 %3476, %v3032
        %v3478 = vpop.permute.xlu0 %3477
        %3481 = vset.pattern.permute.xlu0 0
        %3482 = vperm.xlu0 %3481, %v3034
        %v3483 = vpop.permute.xlu0 %3482
        %3486 = vset.pattern.permute.xlu0 0
        %3487 = vperm.xlu0 %3486, %v3036
        %v3488 = vpop.permute.xlu0 %3487
        %3491 = vset.pattern.permute.xlu0 0
        %3492 = vperm.xlu0 %3491, %v3038
        %v3493 = vpop.permute.xlu0 %3492
        %3496 = vset.pattern.permute.xlu0 0
        %3497 = vperm.xlu0 %3496, %v3040
        %v3498 = vpop.permute.xlu0 %3497
        %3501 = vset.pattern.permute.xlu0 0
        %3502 = vperm.xlu0 %3501, %v3042
        %v3503 = vpop.permute.xlu0 %3502
        %3506 = vset.pattern.permute.xlu0 0
        %3507 = vperm.xlu0 %3506, %v3044
        %v3508 = vpop.permute.xlu0 %3507
        %v3510 = vmul.f32 %v3433, %v3414
        %v3511 = vmul.f32 %v3438, %v3415
        %v3512 = vmul.f32 %v3443, %v3416
        %v3513 = vmul.f32 %v3448, %v3417
        %v3514 = vmul.f32 %v3453, %v3418
        %v3515 = vmul.f32 %v3458, %v3419
        %v3516 = vmul.f32 %v3463, %v3420
        %v3517 = vmul.f32 %v3468, %v3421
        %v3518 = vmul.f32 %v3473, %v3422
        %v3519 = vmul.f32 %v3478, %v3423
        %v3520 = vmul.f32 %v3483, %v3424
        %v3521 = vmul.f32 %v3488, %v3425
        %v3522 = vmul.f32 %v3493, %v3426
        %v3523 = vmul.f32 %v3498, %v3427
        %v3524 = vmul.f32 %v3503, %v3428
        %v3525 = vmul.f32 %v3508, %v3429
        %v3526 = vadd.f32 %v3510, %v3336
        %v3527 = vadd.f32 %v3511, %v3341
        %v3528 = vadd.f32 %v3512, %v3346
        %v3529 = vadd.f32 %v3513, %v3351
        %v3530 = vadd.f32 %v3514, %v3356
        %v3531 = vadd.f32 %v3515, %v3361
        %v3532 = vadd.f32 %v3516, %v3366
        %v3533 = vadd.f32 %v3517, %v3371
        %v3534 = vadd.f32 %v3518, %v3376
        %v3535 = vadd.f32 %v3519, %v3381
        %v3536 = vadd.f32 %v3520, %v3386
        %v3537 = vadd.f32 %v3521, %v3391
        %v3538 = vadd.f32 %v3522, %v3396
        %v3539 = vadd.f32 %v3523, %v3401
        %v3540 = vadd.f32 %v3524, %v3406
        %v3541 = vadd.f32 %v3525, %v3411
        %3542 = vst [vmem:[#allocation4 + $0x100] sm:$0xff] %v3526
        %3543 = vst [vmem:[#allocation4 + $0x108] sm:$0xff] %v3527
        %3544 = vst [vmem:[#allocation4 + $0x110] sm:$0xff] %v3528
        %3545 = vst [vmem:[#allocation4 + $0x118] sm:$0xff] %v3529
        %3546 = vst [vmem:[#allocation4 + $0x120] sm:$0xff] %v3530
        %3547 = vst [vmem:[#allocation4 + $0x128] sm:$0xff] %v3531
        %3548 = vst [vmem:[#allocation4 + $0x130] sm:$0xff] %v3532
        %3549 = vst [vmem:[#allocation4 + $0x138] sm:$0xff] %v3533
        %3550 = vst [vmem:[#allocation4 + $0x140] sm:$0xff] %v3534
        %3551 = vst [vmem:[#allocation4 + $0x148] sm:$0xff] %v3535
        %3552 = vst [vmem:[#allocation4 + $0x150] sm:$0xff] %v3536
        %3553 = vst [vmem:[#allocation4 + $0x158] sm:$0xff] %v3537
        %3554 = vst [vmem:[#allocation4 + $0x160] sm:$0xff] %v3538
        %3555 = vst [vmem:[#allocation4 + $0x168] sm:$0xff] %v3539
        %3556 = vst [vmem:[#allocation4 + $0x170] sm:$0xff] %v3540
        %3557 = vst [vmem:[#allocation4 + $0x178] sm:$0xff] %v3541
        %3558 = vst.msk [vmem:[#allocation2 + $0x100] sm:$0xff] %vm1970, %v2981
        %3559 = vst.msk [vmem:[#allocation2 + $0x108] sm:$0xff] %vm1970, %v2982
        %3560 = vst.msk [vmem:[#allocation2 + $0x110] sm:$0xff] %vm1970, %v2983
        %3561 = vst.msk [vmem:[#allocation2 + $0x118] sm:$0xff] %vm1970, %v2984
        %3562 = vst.msk [vmem:[#allocation2 + $0x120] sm:$0xff] %vm1970, %v2985
        %3563 = vst.msk [vmem:[#allocation2 + $0x128] sm:$0xff] %vm1970, %v2986
        %3564 = vst.msk [vmem:[#allocation2 + $0x130] sm:$0xff] %vm1970, %v2987
        %3565 = vst.msk [vmem:[#allocation2 + $0x138] sm:$0xff] %vm1970, %v2988
        %3566 = vst.msk [vmem:[#allocation2 + $0x140] sm:$0xff] %vm1970, %v2989
        %3567 = vst.msk [vmem:[#allocation2 + $0x148] sm:$0xff] %vm1970, %v2990
        %3568 = vst.msk [vmem:[#allocation2 + $0x150] sm:$0xff] %vm1970, %v2991
        %3569 = vst.msk [vmem:[#allocation2 + $0x158] sm:$0xff] %vm1970, %v2992
        %3570 = vst.msk [vmem:[#allocation2 + $0x160] sm:$0xff] %vm1970, %v2993
        %3571 = vst.msk [vmem:[#allocation2 + $0x168] sm:$0xff] %vm1970, %v2994
        %3572 = vst.msk [vmem:[#allocation2 + $0x170] sm:$0xff] %vm1970, %v2995
        %3573 = vst.msk [vmem:[#allocation2 + $0x178] sm:$0xff] %vm1970, %v2996
        %v3574 = vld [vmem:[#allocation2 + $0x180] sm:$0xff]
        %v3575 = vld [vmem:[#allocation2 + $0x188] sm:$0xff]
        %v3576 = vld [vmem:[#allocation2 + $0x190] sm:$0xff]
        %v3577 = vld [vmem:[#allocation2 + $0x198] sm:$0xff]
        %v3578 = vld [vmem:[#allocation2 + $0x1a0] sm:$0xff]
        %v3579 = vld [vmem:[#allocation2 + $0x1a8] sm:$0xff]
        %v3580 = vld [vmem:[#allocation2 + $0x1b0] sm:$0xff]
        %v3581 = vld [vmem:[#allocation2 + $0x1b8] sm:$0xff]
        %v3582 = vld [vmem:[#allocation2 + $0x1c0] sm:$0xff]
        %v3583 = vld [vmem:[#allocation2 + $0x1c8] sm:$0xff]
        %v3584 = vld [vmem:[#allocation2 + $0x1d0] sm:$0xff]
        %v3585 = vld [vmem:[#allocation2 + $0x1d8] sm:$0xff]
        %v3586 = vld [vmem:[#allocation2 + $0x1e0] sm:$0xff]
        %v3587 = vld [vmem:[#allocation2 + $0x1e8] sm:$0xff]
        %v3588 = vld [vmem:[#allocation2 + $0x1f0] sm:$0xff]
        %v3589 = vld [vmem:[#allocation2 + $0x1f8] sm:$0xff]
        %3590 = vmax.xlane.f32.xlu0 %v1252
        %v3591 = vpop.xlane.xlu0 %3590
        %3592 = vmax.xlane.f32.xlu0 %v1257
        %v3593 = vpop.xlane.xlu0 %3592
        %3594 = vmax.xlane.f32.xlu0 %v1262
        %v3595 = vpop.xlane.xlu0 %3594
        %3596 = vmax.xlane.f32.xlu0 %v1267
        %v3597 = vpop.xlane.xlu0 %3596
        %3598 = vmax.xlane.f32.xlu0 %v1272
        %v3599 = vpop.xlane.xlu0 %3598
        %3600 = vmax.xlane.f32.xlu0 %v1277
        %v3601 = vpop.xlane.xlu0 %3600
        %3602 = vmax.xlane.f32.xlu0 %v1282
        %v3603 = vpop.xlane.xlu0 %3602
        %3604 = vmax.xlane.f32.xlu0 %v1287
        %v3605 = vpop.xlane.xlu0 %3604
        %3606 = vmax.xlane.f32.xlu0 %v1292
        %v3607 = vpop.xlane.xlu0 %3606
        %3608 = vmax.xlane.f32.xlu0 %v1297
        %v3609 = vpop.xlane.xlu0 %3608
        %3610 = vmax.xlane.f32.xlu0 %v1302
        %v3611 = vpop.xlane.xlu0 %3610
        %3612 = vmax.xlane.f32.xlu0 %v1307
        %v3613 = vpop.xlane.xlu0 %3612
        %3614 = vmax.xlane.f32.xlu0 %v1312
        %v3615 = vpop.xlane.xlu0 %3614
        %3616 = vmax.xlane.f32.xlu0 %v1317
        %v3617 = vpop.xlane.xlu0 %3616
        %3618 = vmax.xlane.f32.xlu0 %v1322
        %v3619 = vpop.xlane.xlu0 %3618
        %3620 = vmax.xlane.f32.xlu0 %v1327
        %v3621 = vpop.xlane.xlu0 %3620
        %v3622 = vmax.f32 %v3574, %v3591
        %v3623 = vmax.f32 %v3575, %v3593
        %v3624 = vmax.f32 %v3576, %v3595
        %v3625 = vmax.f32 %v3577, %v3597
        %v3626 = vmax.f32 %v3578, %v3599
        %v3627 = vmax.f32 %v3579, %v3601
        %v3628 = vmax.f32 %v3580, %v3603
        %v3629 = vmax.f32 %v3581, %v3605
        %v3630 = vmax.f32 %v3582, %v3607
        %v3631 = vmax.f32 %v3583, %v3609
        %v3632 = vmax.f32 %v3584, %v3611
        %v3633 = vmax.f32 %v3585, %v3613
        %v3634 = vmax.f32 %v3586, %v3615
        %v3635 = vmax.f32 %v3587, %v3617
        %v3636 = vmax.f32 %v3588, %v3619
        %v3637 = vmax.f32 %v3589, %v3621
        %v3638 = vsub.f32 %v3574, %v3622
        %v3639 = vsub.f32 %v3575, %v3623
        %v3640 = vsub.f32 %v3576, %v3624
        %v3641 = vsub.f32 %v3577, %v3625
        %v3642 = vsub.f32 %v3578, %v3626
        %v3643 = vsub.f32 %v3579, %v3627
        %v3644 = vsub.f32 %v3580, %v3628
        %v3645 = vsub.f32 %v3581, %v3629
        %v3646 = vsub.f32 %v3582, %v3630
        %v3647 = vsub.f32 %v3583, %v3631
        %v3648 = vsub.f32 %v3584, %v3632
        %v3649 = vsub.f32 %v3585, %v3633
        %v3650 = vsub.f32 %v3586, %v3634
        %v3651 = vsub.f32 %v3587, %v3635
        %v3652 = vsub.f32 %v3588, %v3636
        %v3653 = vsub.f32 %v3589, %v3637
        %v3654 = vmul.f32 %v3638, 1.442695
        %v3655 = vpow.pop %v3654
        %v3656 = vmul.f32 %v3639, 1.442695
        %v3657 = vpow.pop %v3656
        %v3658 = vmul.f32 %v3640, 1.442695
        %v3659 = vpow.pop %v3658
        %v3660 = vmul.f32 %v3641, 1.442695
        %v3661 = vpow.pop %v3660
        %v3662 = vmul.f32 %v3642, 1.442695
        %v3663 = vpow.pop %v3662
        %v3664 = vmul.f32 %v3643, 1.442695
        %v3665 = vpow.pop %v3664
        %v3666 = vmul.f32 %v3644, 1.442695
        %v3667 = vpow.pop %v3666
        %v3668 = vmul.f32 %v3645, 1.442695
        %v3669 = vpow.pop %v3668
        %v3670 = vmul.f32 %v3646, 1.442695
        %v3671 = vpow.pop %v3670
        %v3672 = vmul.f32 %v3647, 1.442695
        %v3673 = vpow.pop %v3672
        %v3674 = vmul.f32 %v3648, 1.442695
        %v3675 = vpow.pop %v3674
        %v3676 = vmul.f32 %v3649, 1.442695
        %v3677 = vpow.pop %v3676
        %v3678 = vmul.f32 %v3650, 1.442695
        %v3679 = vpow.pop %v3678
        %v3680 = vmul.f32 %v3651, 1.442695
        %v3681 = vpow.pop %v3680
        %v3682 = vmul.f32 %v3652, 1.442695
        %v3683 = vpow.pop %v3682
        %v3684 = vmul.f32 %v3653, 1.442695
        %v3685 = vpow.pop %v3684
        %3687 = vset.pattern.permute.xlu0 0
        %3688 = vperm.xlu0 %3687, %v3622
        %v3689 = vpop.permute.xlu0 %3688
        %3692 = vset.pattern.permute.xlu0 0
        %3693 = vperm.xlu0 %3692, %v3623
        %v3694 = vpop.permute.xlu0 %3693
        %3697 = vset.pattern.permute.xlu0 0
        %3698 = vperm.xlu0 %3697, %v3624
        %v3699 = vpop.permute.xlu0 %3698
        %3702 = vset.pattern.permute.xlu0 0
        %3703 = vperm.xlu0 %3702, %v3625
        %v3704 = vpop.permute.xlu0 %3703
        %3707 = vset.pattern.permute.xlu0 0
        %3708 = vperm.xlu0 %3707, %v3626
        %v3709 = vpop.permute.xlu0 %3708
        %3712 = vset.pattern.permute.xlu0 0
        %3713 = vperm.xlu0 %3712, %v3627
        %v3714 = vpop.permute.xlu0 %3713
        %3717 = vset.pattern.permute.xlu0 0
        %3718 = vperm.xlu0 %3717, %v3628
        %v3719 = vpop.permute.xlu0 %3718
        %3722 = vset.pattern.permute.xlu0 0
        %3723 = vperm.xlu0 %3722, %v3629
        %v3724 = vpop.permute.xlu0 %3723
        %3727 = vset.pattern.permute.xlu0 0
        %3728 = vperm.xlu0 %3727, %v3630
        %v3729 = vpop.permute.xlu0 %3728
        %3732 = vset.pattern.permute.xlu0 0
        %3733 = vperm.xlu0 %3732, %v3631
        %v3734 = vpop.permute.xlu0 %3733
        %3737 = vset.pattern.permute.xlu0 0
        %3738 = vperm.xlu0 %3737, %v3632
        %v3739 = vpop.permute.xlu0 %3738
        %3742 = vset.pattern.permute.xlu0 0
        %3743 = vperm.xlu0 %3742, %v3633
        %v3744 = vpop.permute.xlu0 %3743
        %3747 = vset.pattern.permute.xlu0 0
        %3748 = vperm.xlu0 %3747, %v3634
        %v3749 = vpop.permute.xlu0 %3748
        %3752 = vset.pattern.permute.xlu0 0
        %3753 = vperm.xlu0 %3752, %v3635
        %v3754 = vpop.permute.xlu0 %3753
        %3757 = vset.pattern.permute.xlu0 0
        %3758 = vperm.xlu0 %3757, %v3636
        %v3759 = vpop.permute.xlu0 %3758
        %3762 = vset.pattern.permute.xlu0 0
        %3763 = vperm.xlu0 %3762, %v3637
        %v3764 = vpop.permute.xlu0 %3763
        %v3766 = vsub.f32 %v1252, %v3689
        %v3767 = vsub.f32 %v1257, %v3694
        %v3768 = vsub.f32 %v1262, %v3699
        %v3769 = vsub.f32 %v1267, %v3704
        %v3770 = vsub.f32 %v1272, %v3709
        %v3771 = vsub.f32 %v1277, %v3714
        %v3772 = vsub.f32 %v1282, %v3719
        %v3773 = vsub.f32 %v1287, %v3724
        %v3774 = vsub.f32 %v1292, %v3729
        %v3775 = vsub.f32 %v1297, %v3734
        %v3776 = vsub.f32 %v1302, %v3739
        %v3777 = vsub.f32 %v1307, %v3744
        %v3778 = vsub.f32 %v1312, %v3749
        %v3779 = vsub.f32 %v1317, %v3754
        %v3780 = vsub.f32 %v1322, %v3759
        %v3781 = vsub.f32 %v1327, %v3764
        %v3782 = vmul.f32 %v3766, 1.442695
        %v3783 = vpow.pop %v3782
        %v3784 = vmul.f32 %v3767, 1.442695
        %v3785 = vpow.pop %v3784
        %v3786 = vmul.f32 %v3768, 1.442695
        %v3787 = vpow.pop %v3786
        %v3788 = vmul.f32 %v3769, 1.442695
        %v3789 = vpow.pop %v3788
        %v3790 = vmul.f32 %v3770, 1.442695
        %v3791 = vpow.pop %v3790
        %v3792 = vmul.f32 %v3771, 1.442695
        %v3793 = vpow.pop %v3792
        %v3794 = vmul.f32 %v3772, 1.442695
        %v3795 = vpow.pop %v3794
        %v3796 = vmul.f32 %v3773, 1.442695
        %v3797 = vpow.pop %v3796
        %v3798 = vmul.f32 %v3774, 1.442695
        %v3799 = vpow.pop %v3798
        %v3800 = vmul.f32 %v3775, 1.442695
        %v3801 = vpow.pop %v3800
        %v3802 = vmul.f32 %v3776, 1.442695
        %v3803 = vpow.pop %v3802
        %v3804 = vmul.f32 %v3777, 1.442695
        %v3805 = vpow.pop %v3804
        %v3806 = vmul.f32 %v3778, 1.442695
        %v3807 = vpow.pop %v3806
        %v3808 = vmul.f32 %v3779, 1.442695
        %v3809 = vpow.pop %v3808
        %v3810 = vmul.f32 %v3780, 1.442695
        %v3811 = vpow.pop %v3810
        %v3812 = vmul.f32 %v3781, 1.442695
        %v3813 = vpow.pop %v3812
        %v3814 = vld [vmem:[#allocation3 + $0x180] sm:$0xff]
        %v3815 = vld [vmem:[#allocation3 + $0x188] sm:$0xff]
        %v3816 = vld [vmem:[#allocation3 + $0x190] sm:$0xff]
        %v3817 = vld [vmem:[#allocation3 + $0x198] sm:$0xff]
        %v3818 = vld [vmem:[#allocation3 + $0x1a0] sm:$0xff]
        %v3819 = vld [vmem:[#allocation3 + $0x1a8] sm:$0xff]
        %v3820 = vld [vmem:[#allocation3 + $0x1b0] sm:$0xff]
        %v3821 = vld [vmem:[#allocation3 + $0x1b8] sm:$0xff]
        %v3822 = vld [vmem:[#allocation3 + $0x1c0] sm:$0xff]
        %v3823 = vld [vmem:[#allocation3 + $0x1c8] sm:$0xff]
        %v3824 = vld [vmem:[#allocation3 + $0x1d0] sm:$0xff]
        %v3825 = vld [vmem:[#allocation3 + $0x1d8] sm:$0xff]
        %v3826 = vld [vmem:[#allocation3 + $0x1e0] sm:$0xff]
        %v3827 = vld [vmem:[#allocation3 + $0x1e8] sm:$0xff]
        %v3828 = vld [vmem:[#allocation3 + $0x1f0] sm:$0xff]
        %v3829 = vld [vmem:[#allocation3 + $0x1f8] sm:$0xff]
        %v3830 = vmul.f32 %v3655, %v3814
        %v3831 = vmul.f32 %v3657, %v3815
        %v3832 = vmul.f32 %v3659, %v3816
        %v3833 = vmul.f32 %v3661, %v3817
        %v3834 = vmul.f32 %v3663, %v3818
        %v3835 = vmul.f32 %v3665, %v3819
        %v3836 = vmul.f32 %v3667, %v3820
        %v3837 = vmul.f32 %v3669, %v3821
        %v3838 = vmul.f32 %v3671, %v3822
        %v3839 = vmul.f32 %v3673, %v3823
        %v3840 = vmul.f32 %v3675, %v3824
        %v3841 = vmul.f32 %v3677, %v3825
        %v3842 = vmul.f32 %v3679, %v3826
        %v3843 = vmul.f32 %v3681, %v3827
        %v3844 = vmul.f32 %v3683, %v3828
        %v3845 = vmul.f32 %v3685, %v3829
        %3846 = vadd.xlane.f32.xlu0 %v3783
        %v3847 = vpop.xlane.xlu0 %3846
        %3848 = vadd.xlane.f32.xlu0 %v3785
        %v3849 = vpop.xlane.xlu0 %3848
        %3850 = vadd.xlane.f32.xlu0 %v3787
        %v3851 = vpop.xlane.xlu0 %3850
        %3852 = vadd.xlane.f32.xlu0 %v3789
        %v3853 = vpop.xlane.xlu0 %3852
        %3854 = vadd.xlane.f32.xlu0 %v3791
        %v3855 = vpop.xlane.xlu0 %3854
        %3856 = vadd.xlane.f32.xlu0 %v3793
        %v3857 = vpop.xlane.xlu0 %3856
        %3858 = vadd.xlane.f32.xlu0 %v3795
        %v3859 = vpop.xlane.xlu0 %3858
        %3860 = vadd.xlane.f32.xlu0 %v3797
        %v3861 = vpop.xlane.xlu0 %3860
        %3862 = vadd.xlane.f32.xlu0 %v3799
        %v3863 = vpop.xlane.xlu0 %3862
        %3864 = vadd.xlane.f32.xlu0 %v3801
        %v3865 = vpop.xlane.xlu0 %3864
        %3866 = vadd.xlane.f32.xlu0 %v3803
        %v3867 = vpop.xlane.xlu0 %3866
        %3868 = vadd.xlane.f32.xlu0 %v3805
        %v3869 = vpop.xlane.xlu0 %3868
        %3870 = vadd.xlane.f32.xlu0 %v3807
        %v3871 = vpop.xlane.xlu0 %3870
        %3872 = vadd.xlane.f32.xlu0 %v3809
        %v3873 = vpop.xlane.xlu0 %3872
        %3874 = vadd.xlane.f32.xlu0 %v3811
        %v3875 = vpop.xlane.xlu0 %3874
        %3876 = vadd.xlane.f32.xlu0 %v3813
        %v3877 = vpop.xlane.xlu0 %3876
        %v3878 = vadd.f32 %v3830, %v3847
        %v3879 = vadd.f32 %v3831, %v3849
        %v3880 = vadd.f32 %v3832, %v3851
        %v3881 = vadd.f32 %v3833, %v3853
        %v3882 = vadd.f32 %v3834, %v3855
        %v3883 = vadd.f32 %v3835, %v3857
        %v3884 = vadd.f32 %v3836, %v3859
        %v3885 = vadd.f32 %v3837, %v3861
        %v3886 = vadd.f32 %v3838, %v3863
        %v3887 = vadd.f32 %v3839, %v3865
        %v3888 = vadd.f32 %v3840, %v3867
        %v3889 = vadd.f32 %v3841, %v3869
        %v3890 = vadd.f32 %v3842, %v3871
        %v3891 = vadd.f32 %v3843, %v3873
        %v3892 = vadd.f32 %v3844, %v3875
        %v3893 = vadd.f32 %v3845, %v3877
        %3894 = vst.msk [vmem:[#allocation3 + $0x180] sm:$0xff] %vm1970, %v3878
        %3895 = vst.msk [vmem:[#allocation3 + $0x188] sm:$0xff] %vm1970, %v3879
        %3896 = vst.msk [vmem:[#allocation3 + $0x190] sm:$0xff] %vm1970, %v3880
        %3897 = vst.msk [vmem:[#allocation3 + $0x198] sm:$0xff] %vm1970, %v3881
        %3898 = vst.msk [vmem:[#allocation3 + $0x1a0] sm:$0xff] %vm1970, %v3882
        %3899 = vst.msk [vmem:[#allocation3 + $0x1a8] sm:$0xff] %vm1970, %v3883
        %3900 = vst.msk [vmem:[#allocation3 + $0x1b0] sm:$0xff] %vm1970, %v3884
        %3901 = vst.msk [vmem:[#allocation3 + $0x1b8] sm:$0xff] %vm1970, %v3885
        %3902 = vst.msk [vmem:[#allocation3 + $0x1c0] sm:$0xff] %vm1970, %v3886
        %3903 = vst.msk [vmem:[#allocation3 + $0x1c8] sm:$0xff] %vm1970, %v3887
        %3904 = vst.msk [vmem:[#allocation3 + $0x1d0] sm:$0xff] %vm1970, %v3888
        %3905 = vst.msk [vmem:[#allocation3 + $0x1d8] sm:$0xff] %vm1970, %v3889
        %3906 = vst.msk [vmem:[#allocation3 + $0x1e0] sm:$0xff] %vm1970, %v3890
        %3907 = vst.msk [vmem:[#allocation3 + $0x1e8] sm:$0xff] %vm1970, %v3891
        %3908 = vst.msk [vmem:[#allocation3 + $0x1f0] sm:$0xff] %vm1970, %v3892
        %3909 = vst.msk [vmem:[#allocation3 + $0x1f8] sm:$0xff] %vm1970, %v3893
        %3910 = vmatprep.subr.mxu0 0.0
        %3911 = vmatpush1.xpose.msra.mxu0 %v1572
        %3912 = vmatprep.subr.mxu0 0.0
        %3913 = vmatpush1.xpose.msra.mxu0 %v1577
        %3914 = vmatprep.subr.mxu0 0.0
        %3915 = vmatpush1.xpose.msra.mxu0 %v1582
        %3916 = vmatprep.subr.mxu0 0.0
        %3917 = vmatpush1.xpose.msra.mxu0 %v1587
        %3918 = vmatprep.subr.mxu0 0.0
        %3919 = vmatpush1.xpose.msra.mxu0 %v1592
        %3920 = vmatprep.subr.mxu0 0.0
        %3921 = vmatpush1.xpose.msra.mxu0 %v1597
        %3922 = vmatprep.subr.mxu0 0.0
        %3923 = vmatpush1.xpose.msra.mxu0 %v1602
        %3924 = vmatprep.subr.mxu0 0.0
        %3925 = vmatpush1.xpose.msra.mxu0 %v1607
        %3926 = vmatprep.subr.mxu0 0.0
        %3927 = vmatpush1.xpose.msra.mxu0 %v1612
        %3928 = vmatprep.subr.mxu0 0.0
        %3929 = vmatpush1.xpose.msra.mxu0 %v1617
        %3930 = vmatprep.subr.mxu0 0.0
        %3931 = vmatpush1.xpose.msra.mxu0 %v1622
        %3932 = vmatprep.subr.mxu0 0.0
        %3933 = vmatpush1.xpose.msra.mxu0 %v1627
        %3934 = vmatprep.subr.mxu0 0.0
        %3935 = vmatpush1.xpose.msra.mxu0 %v1632
        %3936 = vmatprep.subr.mxu0 0.0
        %3937 = vmatpush1.xpose.msra.mxu0 %v1637
        %3938 = vmatprep.subr.mxu0 0.0
        %3939 = vmatpush1.xpose.msra.mxu0 %v1642
        %3940 = vmatprep.subr.mxu0 0.0
        %3941 = vmatpush1.xpose.msra.mxu0 %v1647
        %3942 = vmatprep.subr.mxu0 0.0
        %3943 = vmatpush1.xpose.msra.mxu0 0.0
        %3944 = vmatprep.subr.mxu0 0.0
        %3945 = vmatpush1.xpose.msra.mxu0 0.0
        %3946 = vmatprep.subr.mxu0 0.0
        %3947 = vmatpush1.xpose.msra.mxu0 0.0
        %3948 = vmatprep.subr.mxu0 0.0
        %3949 = vmatpush1.xpose.msra.mxu0 0.0
        %3950 = vmatprep.subr.mxu0 0.0
        %3951 = vmatpush1.xpose.msra.mxu0 0.0
        %3952 = vmatprep.subr.mxu0 0.0
        %3953 = vmatpush1.xpose.msra.mxu0 0.0
        %3954 = vmatprep.subr.mxu0 0.0
        %3955 = vmatpush1.xpose.msra.mxu0 0.0
        %3956 = vmatprep.subr.mxu0 0.0
        %3957 = vmatpush1.xpose.msra.mxu0 0.0
        %3958 = vmatprep.subr.mxu0 0.0
        %3959 = vmatpush1.xpose.msra.mxu0 0.0
        %3960 = vmatprep.subr.mxu0 0.0
        %3961 = vmatpush1.xpose.msra.mxu0 0.0
        %3962 = vmatprep.subr.mxu0 0.0
        %3963 = vmatpush1.xpose.msra.mxu0 0.0
        %3964 = vmatprep.subr.mxu0 0.0
        %3965 = vmatpush1.xpose.msra.mxu0 0.0
        %3966 = vmatprep.subr.mxu0 0.0
        %3967 = vmatpush1.xpose.msra.mxu0 0.0
        %3968 = vmatprep.subr.mxu0 0.0
        %3969 = vmatpush1.xpose.msra.mxu0 0.0
        %3970 = vmatprep.subr.mxu0 0.0
        %3971 = vmatpush1.xpose.msra.mxu0 0.0
        %3972 = vmatprep.subr.mxu0 0.0
        %3973 = vmatpush1.xpose.msra.mxu0 0.0
        %3974 = vmatprep.mubr.f32.mxu0 0.0
        %3975 = vmatmul.mubr.f32.gmra.mrb[0].mxu0 %v3783
        %v3976 = vpop.f32.mrb[0].mxu0
        %v3977 = vadd.f32 0.0, %v3976
        %v3978 = vpop.f32.mrb[0].mxu0
        %3979 = vmatprep.mubr.f32.mxu0 0.0
        %3980 = vmatmul.mubr.f32.gmra.mrb[0].mxu0 %v3785
        %v3981 = vpop.f32.mrb[0].mxu0
        %v3982 = vadd.f32 0.0, %v3981
        %v3983 = vpop.f32.mrb[0].mxu0
        %3984 = vmatprep.mubr.f32.mxu0 0.0
        %3985 = vmatmul.mubr.f32.gmra.mrb[0].mxu0 %v3787
        %v3986 = vpop.f32.mrb[0].mxu0
        %v3987 = vadd.f32 0.0, %v3986
        %v3988 = vpop.f32.mrb[0].mxu0
        %3989 = vmatprep.mubr.f32.mxu0 0.0
        %3990 = vmatmul.mubr.f32.gmra.mrb[0].mxu0 %v3789
        %v3991 = vpop.f32.mrb[0].mxu0
        %v3992 = vadd.f32 0.0, %v3991
        %v3993 = vpop.f32.mrb[0].mxu0
        %3994 = vmatprep.mubr.f32.mxu0 0.0
        %3995 = vmatmul.mubr.f32.gmra.mrb[0].mxu0 %v3791
        %v3996 = vpop.f32.mrb[0].mxu0
        %v3997 = vadd.f32 0.0, %v3996
        %v3998 = vpop.f32.mrb[0].mxu0
        %3999 = vmatprep.mubr.f32.mxu0 0.0
        %4000 = vmatmul.mubr.f32.gmra.mrb[0].mxu0 %v3793
        %v4001 = vpop.f32.mrb[0].mxu0
        %v4002 = vadd.f32 0.0, %v4001
        %v4003 = vpop.f32.mrb[0].mxu0
        %4004 = vmatprep.mubr.f32.mxu0 0.0
        %4005 = vmatmul.mubr.f32.gmra.mrb[0].mxu0 %v3795
        %v4006 = vpop.f32.mrb[0].mxu0
        %v4007 = vadd.f32 0.0, %v4006
        %v4008 = vpop.f32.mrb[0].mxu0
        %4009 = vmatprep.mubr.f32.mxu0 0.0
        %4010 = vmatmul.mubr.f32.gmra.mrb[0].mxu0 %v3797
        %v4011 = vpop.f32.mrb[0].mxu0
        %v4012 = vadd.f32 0.0, %v4011
        %v4013 = vpop.f32.mrb[0].mxu0
        %4014 = vmatprep.mubr.f32.mxu0 0.0
        %4015 = vmatmul.mubr.f32.gmra.mrb[0].mxu0 %v3799
        %v4016 = vpop.f32.mrb[0].mxu0
        %v4017 = vadd.f32 0.0, %v4016
        %v4018 = vpop.f32.mrb[0].mxu0
        %4019 = vmatprep.mubr.f32.mxu0 0.0
        %4020 = vmatmul.mubr.f32.gmra.mrb[0].mxu0 %v3801
        %v4021 = vpop.f32.mrb[0].mxu0
        %v4022 = vadd.f32 0.0, %v4021
        %v4023 = vpop.f32.mrb[0].mxu0
        %4024 = vmatprep.mubr.f32.mxu0 0.0
        %4025 = vmatmul.mubr.f32.gmra.mrb[0].mxu0 %v3803
        %v4026 = vpop.f32.mrb[0].mxu0
        %v4027 = vadd.f32 0.0, %v4026
        %v4028 = vpop.f32.mrb[0].mxu0
        %4029 = vmatprep.mubr.f32.mxu0 0.0
        %4030 = vmatmul.mubr.f32.gmra.mrb[0].mxu0 %v3805
        %v4031 = vpop.f32.mrb[0].mxu0
        %v4032 = vadd.f32 0.0, %v4031
        %v4033 = vpop.f32.mrb[0].mxu0
        %4034 = vmatprep.mubr.f32.mxu0 0.0
        %4035 = vmatmul.mubr.f32.gmra.mrb[0].mxu0 %v3807
        %v4036 = vpop.f32.mrb[0].mxu0
        %v4037 = vadd.f32 0.0, %v4036
        %v4038 = vpop.f32.mrb[0].mxu0
        %4039 = vmatprep.mubr.f32.mxu0 0.0
        %4040 = vmatmul.mubr.f32.gmra.mrb[0].mxu0 %v3809
        %v4041 = vpop.f32.mrb[0].mxu0
        %v4042 = vadd.f32 0.0, %v4041
        %v4043 = vpop.f32.mrb[0].mxu0
        %4044 = vmatprep.mubr.f32.mxu0 0.0
        %4045 = vmatmul.mubr.f32.gmra.mrb[0].mxu0 %v3811
        %v4046 = vpop.f32.mrb[0].mxu0
        %v4047 = vadd.f32 0.0, %v4046
        %v4048 = vpop.f32.mrb[0].mxu0
        %4049 = vmatprep.mubr.f32.mxu0 0.0
        %4050 = vmatmul.mubr.f32.gmra.mrb[0].mxu0 %v3813
        %v4051 = vpop.f32.mrb[0].mxu0
        %v4052 = vadd.f32 0.0, %v4051
        %v4053 = vpop.f32.mrb[0].mxu0
        %4054 = vdwg.mxu0
        %v4055 = vld [vmem:[#allocation4 + $0x180] sm:$0xff]
        %v4056 = vld [vmem:[#allocation4 + $0x188] sm:$0xff]
        %v4057 = vld [vmem:[#allocation4 + $0x190] sm:$0xff]
        %v4058 = vld [vmem:[#allocation4 + $0x198] sm:$0xff]
        %v4059 = vld [vmem:[#allocation4 + $0x1a0] sm:$0xff]
        %v4060 = vld [vmem:[#allocation4 + $0x1a8] sm:$0xff]
        %v4061 = vld [vmem:[#allocation4 + $0x1b0] sm:$0xff]
        %v4062 = vld [vmem:[#allocation4 + $0x1b8] sm:$0xff]
        %v4063 = vld [vmem:[#allocation4 + $0x1c0] sm:$0xff]
        %v4064 = vld [vmem:[#allocation4 + $0x1c8] sm:$0xff]
        %v4065 = vld [vmem:[#allocation4 + $0x1d0] sm:$0xff]
        %v4066 = vld [vmem:[#allocation4 + $0x1d8] sm:$0xff]
        %v4067 = vld [vmem:[#allocation4 + $0x1e0] sm:$0xff]
        %v4068 = vld [vmem:[#allocation4 + $0x1e8] sm:$0xff]
        %v4069 = vld [vmem:[#allocation4 + $0x1f0] sm:$0xff]
        %v4070 = vld [vmem:[#allocation4 + $0x1f8] sm:$0xff]
        %4072 = vset.pattern.permute.xlu0 0
        %4073 = vperm.xlu0 %4072, %v3655
        %v4074 = vpop.permute.xlu0 %4073
        %4077 = vset.pattern.permute.xlu0 0
        %4078 = vperm.xlu0 %4077, %v3657
        %v4079 = vpop.permute.xlu0 %4078
        %4082 = vset.pattern.permute.xlu0 0
        %4083 = vperm.xlu0 %4082, %v3659
        %v4084 = vpop.permute.xlu0 %4083
        %4087 = vset.pattern.permute.xlu0 0
        %4088 = vperm.xlu0 %4087, %v3661
        %v4089 = vpop.permute.xlu0 %4088
        %4092 = vset.pattern.permute.xlu0 0
        %4093 = vperm.xlu0 %4092, %v3663
        %v4094 = vpop.permute.xlu0 %4093
        %4097 = vset.pattern.permute.xlu0 0
        %4098 = vperm.xlu0 %4097, %v3665
        %v4099 = vpop.permute.xlu0 %4098
        %4102 = vset.pattern.permute.xlu0 0
        %4103 = vperm.xlu0 %4102, %v3667
        %v4104 = vpop.permute.xlu0 %4103
        %4107 = vset.pattern.permute.xlu0 0
        %4108 = vperm.xlu0 %4107, %v3669
        %v4109 = vpop.permute.xlu0 %4108
        %4112 = vset.pattern.permute.xlu0 0
        %4113 = vperm.xlu0 %4112, %v3671
        %v4114 = vpop.permute.xlu0 %4113
        %4117 = vset.pattern.permute.xlu0 0
        %4118 = vperm.xlu0 %4117, %v3673
        %v4119 = vpop.permute.xlu0 %4118
        %4122 = vset.pattern.permute.xlu0 0
        %4123 = vperm.xlu0 %4122, %v3675
        %v4124 = vpop.permute.xlu0 %4123
        %4127 = vset.pattern.permute.xlu0 0
        %4128 = vperm.xlu0 %4127, %v3677
        %v4129 = vpop.permute.xlu0 %4128
        %4132 = vset.pattern.permute.xlu0 0
        %4133 = vperm.xlu0 %4132, %v3679
        %v4134 = vpop.permute.xlu0 %4133
        %4137 = vset.pattern.permute.xlu0 0
        %4138 = vperm.xlu0 %4137, %v3681
        %v4139 = vpop.permute.xlu0 %4138
        %4142 = vset.pattern.permute.xlu0 0
        %4143 = vperm.xlu0 %4142, %v3683
        %v4144 = vpop.permute.xlu0 %4143
        %4147 = vset.pattern.permute.xlu0 0
        %4148 = vperm.xlu0 %4147, %v3685
        %v4149 = vpop.permute.xlu0 %4148
        %v4151 = vmul.f32 %v4074, %v4055
        %v4152 = vmul.f32 %v4079, %v4056
        %v4153 = vmul.f32 %v4084, %v4057
        %v4154 = vmul.f32 %v4089, %v4058
        %v4155 = vmul.f32 %v4094, %v4059
        %v4156 = vmul.f32 %v4099, %v4060
        %v4157 = vmul.f32 %v4104, %v4061
        %v4158 = vmul.f32 %v4109, %v4062
        %v4159 = vmul.f32 %v4114, %v4063
        %v4160 = vmul.f32 %v4119, %v4064
        %v4161 = vmul.f32 %v4124, %v4065
        %v4162 = vmul.f32 %v4129, %v4066
        %v4163 = vmul.f32 %v4134, %v4067
        %v4164 = vmul.f32 %v4139, %v4068
        %v4165 = vmul.f32 %v4144, %v4069
        %v4166 = vmul.f32 %v4149, %v4070
        %v4167 = vadd.f32 %v4151, %v3977
        %v4168 = vadd.f32 %v4152, %v3982
        %v4169 = vadd.f32 %v4153, %v3987
        %v4170 = vadd.f32 %v4154, %v3992
        %v4171 = vadd.f32 %v4155, %v3997
        %v4172 = vadd.f32 %v4156, %v4002
        %v4173 = vadd.f32 %v4157, %v4007
        %v4174 = vadd.f32 %v4158, %v4012
        %v4175 = vadd.f32 %v4159, %v4017
        %v4176 = vadd.f32 %v4160, %v4022
        %v4177 = vadd.f32 %v4161, %v4027
        %v4178 = vadd.f32 %v4162, %v4032
        %v4179 = vadd.f32 %v4163, %v4037
        %v4180 = vadd.f32 %v4164, %v4042
        %v4181 = vadd.f32 %v4165, %v4047
        %v4182 = vadd.f32 %v4166, %v4052
        %4183 = vst [vmem:[#allocation4 + $0x180] sm:$0xff] %v4167
        %4184 = vst [vmem:[#allocation4 + $0x188] sm:$0xff] %v4168
        %4185 = vst [vmem:[#allocation4 + $0x190] sm:$0xff] %v4169
        %4186 = vst [vmem:[#allocation4 + $0x198] sm:$0xff] %v4170
        %4187 = vst [vmem:[#allocation4 + $0x1a0] sm:$0xff] %v4171
        %4188 = vst [vmem:[#allocation4 + $0x1a8] sm:$0xff] %v4172
        %4189 = vst [vmem:[#allocation4 + $0x1b0] sm:$0xff] %v4173
        %4190 = vst [vmem:[#allocation4 + $0x1b8] sm:$0xff] %v4174
        %4191 = vst [vmem:[#allocation4 + $0x1c0] sm:$0xff] %v4175
        %4192 = vst [vmem:[#allocation4 + $0x1c8] sm:$0xff] %v4176
        %4193 = vst [vmem:[#allocation4 + $0x1d0] sm:$0xff] %v4177
        %4194 = vst [vmem:[#allocation4 + $0x1d8] sm:$0xff] %v4178
        %4195 = vst [vmem:[#allocation4 + $0x1e0] sm:$0xff] %v4179
        %4196 = vst [vmem:[#allocation4 + $0x1e8] sm:$0xff] %v4180
        %4197 = vst [vmem:[#allocation4 + $0x1f0] sm:$0xff] %v4181
        %4198 = vst [vmem:[#allocation4 + $0x1f8] sm:$0xff] %v4182
        %4199 = vst.msk [vmem:[#allocation2 + $0x180] sm:$0xff] %vm1970, %v3622
        %4200 = vst.msk [vmem:[#allocation2 + $0x188] sm:$0xff] %vm1970, %v3623
        %4201 = vst.msk [vmem:[#allocation2 + $0x190] sm:$0xff] %vm1970, %v3624
        %4202 = vst.msk [vmem:[#allocation2 + $0x198] sm:$0xff] %vm1970, %v3625
        %4203 = vst.msk [vmem:[#allocation2 + $0x1a0] sm:$0xff] %vm1970, %v3626
        %4204 = vst.msk [vmem:[#allocation2 + $0x1a8] sm:$0xff] %vm1970, %v3627
        %4205 = vst.msk [vmem:[#allocation2 + $0x1b0] sm:$0xff] %vm1970, %v3628
        %4206 = vst.msk [vmem:[#allocation2 + $0x1b8] sm:$0xff] %vm1970, %v3629
        %4207 = vst.msk [vmem:[#allocation2 + $0x1c0] sm:$0xff] %vm1970, %v3630
        %4208 = vst.msk [vmem:[#allocation2 + $0x1c8] sm:$0xff] %vm1970, %v3631
        %4209 = vst.msk [vmem:[#allocation2 + $0x1d0] sm:$0xff] %vm1970, %v3632
        %4210 = vst.msk [vmem:[#allocation2 + $0x1d8] sm:$0xff] %vm1970, %v3633
        %4211 = vst.msk [vmem:[#allocation2 + $0x1e0] sm:$0xff] %vm1970, %v3634
        %4212 = vst.msk [vmem:[#allocation2 + $0x1e8] sm:$0xff] %vm1970, %v3635
        %4213 = vst.msk [vmem:[#allocation2 + $0x1f0] sm:$0xff] %vm1970, %v3636
        %4214 = vst.msk [vmem:[#allocation2 + $0x1f8] sm:$0xff] %vm1970, %v3637
        %p4215 = scmp.eq.s32.totalorder %s22, 1
        // Predicated region
        $region75: #{tpu_custom_call.1} parent=65 // pred_check
          %p4216 = pneg %p4215
        $region76: #{tpu_custom_call.1} parent=65 // pred_check_branch
          %4218 = sbr.rel (%p4216) target = $region78
        $region77: #{tpu_custom_call.1} parent=65 // pred_region
          %v4219 = vld [vmem:[#allocation4] sm:$0xff]
          %v4220 = vld [vmem:[#allocation4 + $0x8] sm:$0xff]
          %v4221 = vld [vmem:[#allocation4 + $0x10] sm:$0xff]
          %v4222 = vld [vmem:[#allocation4 + $0x18] sm:$0xff]
          %v4223 = vld [vmem:[#allocation4 + $0x20] sm:$0xff]
          %v4224 = vld [vmem:[#allocation4 + $0x28] sm:$0xff]
          %v4225 = vld [vmem:[#allocation4 + $0x30] sm:$0xff]
          %v4226 = vld [vmem:[#allocation4 + $0x38] sm:$0xff]
          %v4227 = vld [vmem:[#allocation4 + $0x40] sm:$0xff]
          %v4228 = vld [vmem:[#allocation4 + $0x48] sm:$0xff]
          %v4229 = vld [vmem:[#allocation4 + $0x50] sm:$0xff]
          %v4230 = vld [vmem:[#allocation4 + $0x58] sm:$0xff]
          %v4231 = vld [vmem:[#allocation4 + $0x60] sm:$0xff]
          %v4232 = vld [vmem:[#allocation4 + $0x68] sm:$0xff]
          %v4233 = vld [vmem:[#allocation4 + $0x70] sm:$0xff]
          %v4234 = vld [vmem:[#allocation4 + $0x78] sm:$0xff]
          %v4235 = vld [vmem:[#allocation3] sm:$0xff]
          %v4236 = vld [vmem:[#allocation3 + $0x8] sm:$0xff]
          %v4237 = vld [vmem:[#allocation3 + $0x10] sm:$0xff]
          %v4238 = vld [vmem:[#allocation3 + $0x18] sm:$0xff]
          %v4239 = vld [vmem:[#allocation3 + $0x20] sm:$0xff]
          %v4240 = vld [vmem:[#allocation3 + $0x28] sm:$0xff]
          %v4241 = vld [vmem:[#allocation3 + $0x30] sm:$0xff]
          %v4242 = vld [vmem:[#allocation3 + $0x38] sm:$0xff]
          %v4243 = vld [vmem:[#allocation3 + $0x40] sm:$0xff]
          %v4244 = vld [vmem:[#allocation3 + $0x48] sm:$0xff]
          %v4245 = vld [vmem:[#allocation3 + $0x50] sm:$0xff]
          %v4246 = vld [vmem:[#allocation3 + $0x58] sm:$0xff]
          %v4247 = vld [vmem:[#allocation3 + $0x60] sm:$0xff]
          %v4248 = vld [vmem:[#allocation3 + $0x68] sm:$0xff]
          %v4249 = vld [vmem:[#allocation3 + $0x70] sm:$0xff]
          %v4250 = vld [vmem:[#allocation3 + $0x78] sm:$0xff]
          %v4251 = vrcp.pop %v4235
          %v4252 = vrcp.pop %v4236
          %v4253 = vrcp.pop %v4237
          %v4254 = vrcp.pop %v4238
          %v4255 = vrcp.pop %v4239
          %v4256 = vrcp.pop %v4240
          %v4257 = vrcp.pop %v4241
          %v4258 = vrcp.pop %v4242
          %v4259 = vrcp.pop %v4243
          %v4260 = vrcp.pop %v4244
          %v4261 = vrcp.pop %v4245
          %v4262 = vrcp.pop %v4246
          %v4263 = vrcp.pop %v4247
          %v4264 = vrcp.pop %v4248
          %v4265 = vrcp.pop %v4249
          %v4266 = vrcp.pop %v4250
          %4268 = vset.pattern.permute.xlu0 0
          %4269 = vperm.xlu0 %4268, %v4251
          %v4270 = vpop.permute.xlu0 %4269
          %4273 = vset.pattern.permute.xlu0 0
          %4274 = vperm.xlu0 %4273, %v4252
          %v4275 = vpop.permute.xlu0 %4274
          %4278 = vset.pattern.permute.xlu0 0
          %4279 = vperm.xlu0 %4278, %v4253
          %v4280 = vpop.permute.xlu0 %4279
          %4283 = vset.pattern.permute.xlu0 0
          %4284 = vperm.xlu0 %4283, %v4254
          %v4285 = vpop.permute.xlu0 %4284
          %4288 = vset.pattern.permute.xlu0 0
          %4289 = vperm.xlu0 %4288, %v4255
          %v4290 = vpop.permute.xlu0 %4289
          %4293 = vset.pattern.permute.xlu0 0
          %4294 = vperm.xlu0 %4293, %v4256
          %v4295 = vpop.permute.xlu0 %4294
          %4298 = vset.pattern.permute.xlu0 0
          %4299 = vperm.xlu0 %4298, %v4257
          %v4300 = vpop.permute.xlu0 %4299
          %4303 = vset.pattern.permute.xlu0 0
          %4304 = vperm.xlu0 %4303, %v4258
          %v4305 = vpop.permute.xlu0 %4304
          %4308 = vset.pattern.permute.xlu0 0
          %4309 = vperm.xlu0 %4308, %v4259
          %v4310 = vpop.permute.xlu0 %4309
          %4313 = vset.pattern.permute.xlu0 0
          %4314 = vperm.xlu0 %4313, %v4260
          %v4315 = vpop.permute.xlu0 %4314
          %4318 = vset.pattern.permute.xlu0 0
          %4319 = vperm.xlu0 %4318, %v4261
          %v4320 = vpop.permute.xlu0 %4319
          %4323 = vset.pattern.permute.xlu0 0
          %4324 = vperm.xlu0 %4323, %v4262
          %v4325 = vpop.permute.xlu0 %4324
          %4328 = vset.pattern.permute.xlu0 0
          %4329 = vperm.xlu0 %4328, %v4263
          %v4330 = vpop.permute.xlu0 %4329
          %4333 = vset.pattern.permute.xlu0 0
          %4334 = vperm.xlu0 %4333, %v4264
          %v4335 = vpop.permute.xlu0 %4334
          %4338 = vset.pattern.permute.xlu0 0
          %4339 = vperm.xlu0 %4338, %v4265
          %v4340 = vpop.permute.xlu0 %4339
          %4343 = vset.pattern.permute.xlu0 0
          %4344 = vperm.xlu0 %4343, %v4266
          %v4345 = vpop.permute.xlu0 %4344
          %v4347 = vmul.f32 %v4219, %v4270
          %v4348 = vmul.f32 %v4220, %v4275
          %v4349 = vmul.f32 %v4221, %v4280
          %v4350 = vmul.f32 %v4222, %v4285
          %v4351 = vmul.f32 %v4223, %v4290
          %v4352 = vmul.f32 %v4224, %v4295
          %v4353 = vmul.f32 %v4225, %v4300
          %v4354 = vmul.f32 %v4226, %v4305
          %v4355 = vmul.f32 %v4227, %v4310
          %v4356 = vmul.f32 %v4228, %v4315
          %v4357 = vmul.f32 %v4229, %v4320
          %v4358 = vmul.f32 %v4230, %v4325
          %v4359 = vmul.f32 %v4231, %v4330
          %v4360 = vmul.f32 %v4232, %v4335
          %v4361 = vmul.f32 %v4233, %v4340
          %v4362 = vmul.f32 %v4234, %v4345
          %v4363 = vld [vmem:[%s2] sm:$0xff]
          %v4364 = vld [vmem:[%s2 + $0x20] sm:$0xff]
          %v4365 = vld [vmem:[%s2 + $0x40] sm:$0xff]
          %v4366 = vld [vmem:[%s2 + $0x60] sm:$0xff]
          %4367 = vmatprep.subr.mxu0 0.0
          %4368 = vmatpush1.xpose.msra.mxu0 %v4347
          %4369 = vmatprep.subr.mxu0 0.0
          %4370 = vmatpush1.xpose.msra.mxu0 %v4348
          %4371 = vmatprep.subr.mxu0 0.0
          %4372 = vmatpush1.xpose.msra.mxu0 %v4349
          %4373 = vmatprep.subr.mxu0 0.0
          %4374 = vmatpush1.xpose.msra.mxu0 %v4350
          %4375 = vmatprep.subr.mxu0 0.0
          %4376 = vmatpush1.xpose.msra.mxu0 %v4351
          %4377 = vmatprep.subr.mxu0 0.0
          %4378 = vmatpush1.xpose.msra.mxu0 %v4352
          %4379 = vmatprep.subr.mxu0 0.0
          %4380 = vmatpush1.xpose.msra.mxu0 %v4353
          %4381 = vmatprep.subr.mxu0 0.0
          %4382 = vmatpush1.xpose.msra.mxu0 %v4354
          %4383 = vmatprep.subr.mxu0 0.0
          %4384 = vmatpush1.xpose.msra.mxu0 %v4355
          %4385 = vmatprep.subr.mxu0 0.0
          %4386 = vmatpush1.xpose.msra.mxu0 %v4356
          %4387 = vmatprep.subr.mxu0 0.0
          %4388 = vmatpush1.xpose.msra.mxu0 %v4357
          %4389 = vmatprep.subr.mxu0 0.0
          %4390 = vmatpush1.xpose.msra.mxu0 %v4358
          %4391 = vmatprep.subr.mxu0 0.0
          %4392 = vmatpush1.xpose.msra.mxu0 %v4359
          %4393 = vmatprep.subr.mxu0 0.0
          %4394 = vmatpush1.xpose.msra.mxu0 %v4360
          %4395 = vmatprep.subr.mxu0 0.0
          %4396 = vmatpush1.xpose.msra.mxu0 %v4361
          %4397 = vmatprep.subr.mxu0 0.0
          %4398 = vmatpush1.xpose.msra.mxu0 %v4362
          %4399 = vmatprep.subr.mxu0 0.0
          %4400 = vmatpush1.xpose.msra.mxu0 0.0
          %4401 = vmatprep.subr.mxu0 0.0
          %4402 = vmatpush1.xpose.msra.mxu0 0.0
          %4403 = vmatprep.subr.mxu0 0.0
          %4404 = vmatpush1.xpose.msra.mxu0 0.0
          %4405 = vmatprep.subr.mxu0 0.0
          %4406 = vmatpush1.xpose.msra.mxu0 0.0
          %4407 = vmatprep.subr.mxu0 0.0
          %4408 = vmatpush1.xpose.msra.mxu0 0.0
          %4409 = vmatprep.subr.mxu0 0.0
          %4410 = vmatpush1.xpose.msra.mxu0 0.0
          %4411 = vmatprep.subr.mxu0 0.0
          %4412 = vmatpush1.xpose.msra.mxu0 0.0
          %4413 = vmatprep.subr.mxu0 0.0
          %4414 = vmatpush1.xpose.msra.mxu0 0.0
          %4415 = vmatprep.subr.mxu0 0.0
          %4416 = vmatpush1.xpose.msra.mxu0 0.0
          %4417 = vmatprep.subr.mxu0 0.0
          %4418 = vmatpush1.xpose.msra.mxu0 0.0
          %4419 = vmatprep.subr.mxu0 0.0
          %4420 = vmatpush1.xpose.msra.mxu0 0.0
          %4421 = vmatprep.subr.mxu0 0.0
          %4422 = vmatpush1.xpose.msra.mxu0 0.0
          %4423 = vmatprep.subr.mxu0 0.0
          %4424 = vmatpush1.xpose.msra.mxu0 0.0
          %4425 = vmatprep.subr.mxu0 0.0
          %4426 = vmatpush1.xpose.msra.mxu0 0.0
          %4427 = vmatprep.subr.mxu0 0.0
          %4428 = vmatpush1.xpose.msra.mxu0 0.0
          %4429 = vmatprep.subr.mxu0 0.0
          %4430 = vmatpush1.xpose.msra.mxu0 0.0
          %4431 = vmatprep.mubr.f32.mxu0 0.0
          %4432 = vmatmul.mubr.f32.gmra.mrb[0].mxu0 %v4363
          %v4433 = vpop.f32.mrb[0].mxu0
          %v4434 = vadd.f32 0.0, %v4433
          %v4435 = vpop.f32.mrb[0].mxu0
          %4436 = vmatprep.mubr.f32.mxu0 0.0
          %4437 = vmatmul.mubr.f32.gmra.mrb[0].mxu0 %v4364
          %v4438 = vpop.f32.mrb[0].mxu0
          %v4439 = vadd.f32 0.0, %v4438
          %v4440 = vpop.f32.mrb[0].mxu0
          %4441 = vmatprep.mubr.f32.mxu0 0.0
          %4442 = vmatmul.mubr.f32.gmra.mrb[0].mxu0 %v4365
          %v4443 = vpop.f32.mrb[0].mxu0
          %v4444 = vadd.f32 0.0, %v4443
          %v4445 = vpop.f32.mrb[0].mxu0
          %4446 = vmatprep.mubr.f32.mxu0 0.0
          %4447 = vmatmul.mubr.f32.gmra.mrb[0].mxu0 %v4366
          %v4448 = vpop.f32.mrb[0].mxu0
          %v4449 = vadd.f32 0.0, %v4448
          %v4450 = vpop.f32.mrb[0].mxu0
          %4451 = vdwg.mxu0
          %4452 = vst [vmem:[%s230] sm:$0xff] %v4434
          %4453 = vst [vmem:[%s230 + $0x20] sm:$0xff] %v4439
          %4454 = vst [vmem:[%s230 + $0x40] sm:$0xff] %v4444
          %4455 = vst [vmem:[%s230 + $0x60] sm:$0xff] %v4449
          %v4456 = vld [vmem:[#allocation4 + $0x80] sm:$0xff]
          %v4457 = vld [vmem:[#allocation4 + $0x88] sm:$0xff]
          %v4458 = vld [vmem:[#allocation4 + $0x90] sm:$0xff]
          %v4459 = vld [vmem:[#allocation4 + $0x98] sm:$0xff]
          %v4460 = vld [vmem:[#allocation4 + $0xa0] sm:$0xff]
          %v4461 = vld [vmem:[#allocation4 + $0xa8] sm:$0xff]
          %v4462 = vld [vmem:[#allocation4 + $0xb0] sm:$0xff]
          %v4463 = vld [vmem:[#allocation4 + $0xb8] sm:$0xff]
          %v4464 = vld [vmem:[#allocation4 + $0xc0] sm:$0xff]
          %v4465 = vld [vmem:[#allocation4 + $0xc8] sm:$0xff]
          %v4466 = vld [vmem:[#allocation4 + $0xd0] sm:$0xff]
          %v4467 = vld [vmem:[#allocation4 + $0xd8] sm:$0xff]
          %v4468 = vld [vmem:[#allocation4 + $0xe0] sm:$0xff]
          %v4469 = vld [vmem:[#allocation4 + $0xe8] sm:$0xff]
          %v4470 = vld [vmem:[#allocation4 + $0xf0] sm:$0xff]
          %v4471 = vld [vmem:[#allocation4 + $0xf8] sm:$0xff]
          %v4472 = vld [vmem:[#allocation3 + $0x80] sm:$0xff]
          %v4473 = vld [vmem:[#allocation3 + $0x88] sm:$0xff]
          %v4474 = vld [vmem:[#allocation3 + $0x90] sm:$0xff]
          %v4475 = vld [vmem:[#allocation3 + $0x98] sm:$0xff]
          %v4476 = vld [vmem:[#allocation3 + $0xa0] sm:$0xff]
          %v4477 = vld [vmem:[#allocation3 + $0xa8] sm:$0xff]
          %v4478 = vld [vmem:[#allocation3 + $0xb0] sm:$0xff]
          %v4479 = vld [vmem:[#allocation3 + $0xb8] sm:$0xff]
          %v4480 = vld [vmem:[#allocation3 + $0xc0] sm:$0xff]
          %v4481 = vld [vmem:[#allocation3 + $0xc8] sm:$0xff]
          %v4482 = vld [vmem:[#allocation3 + $0xd0] sm:$0xff]
          %v4483 = vld [vmem:[#allocation3 + $0xd8] sm:$0xff]
          %v4484 = vld [vmem:[#allocation3 + $0xe0] sm:$0xff]
          %v4485 = vld [vmem:[#allocation3 + $0xe8] sm:$0xff]
          %v4486 = vld [vmem:[#allocation3 + $0xf0] sm:$0xff]
          %v4487 = vld [vmem:[#allocation3 + $0xf8] sm:$0xff]
          %v4488 = vrcp.pop %v4472
          %v4489 = vrcp.pop %v4473
          %v4490 = vrcp.pop %v4474
          %v4491 = vrcp.pop %v4475
          %v4492 = vrcp.pop %v4476
          %v4493 = vrcp.pop %v4477
          %v4494 = vrcp.pop %v4478
          %v4495 = vrcp.pop %v4479
          %v4496 = vrcp.pop %v4480
          %v4497 = vrcp.pop %v4481
          %v4498 = vrcp.pop %v4482
          %v4499 = vrcp.pop %v4483
          %v4500 = vrcp.pop %v4484
          %v4501 = vrcp.pop %v4485
          %v4502 = vrcp.pop %v4486
          %v4503 = vrcp.pop %v4487
          %4505 = vset.pattern.permute.xlu0 0
          %4506 = vperm.xlu0 %4505, %v4488
          %v4507 = vpop.permute.xlu0 %4506
          %4510 = vset.pattern.permute.xlu0 0
          %4511 = vperm.xlu0 %4510, %v4489
          %v4512 = vpop.permute.xlu0 %4511
          %4515 = vset.pattern.permute.xlu0 0
          %4516 = vperm.xlu0 %4515, %v4490
          %v4517 = vpop.permute.xlu0 %4516
          %4520 = vset.pattern.permute.xlu0 0
          %4521 = vperm.xlu0 %4520, %v4491
          %v4522 = vpop.permute.xlu0 %4521
          %4525 = vset.pattern.permute.xlu0 0
          %4526 = vperm.xlu0 %4525, %v4492
          %v4527 = vpop.permute.xlu0 %4526
          %4530 = vset.pattern.permute.xlu0 0
          %4531 = vperm.xlu0 %4530, %v4493
          %v4532 = vpop.permute.xlu0 %4531
          %4535 = vset.pattern.permute.xlu0 0
          %4536 = vperm.xlu0 %4535, %v4494
          %v4537 = vpop.permute.xlu0 %4536
          %4540 = vset.pattern.permute.xlu0 0
          %4541 = vperm.xlu0 %4540, %v4495
          %v4542 = vpop.permute.xlu0 %4541
          %4545 = vset.pattern.permute.xlu0 0
          %4546 = vperm.xlu0 %4545, %v4496
          %v4547 = vpop.permute.xlu0 %4546
          %4550 = vset.pattern.permute.xlu0 0
          %4551 = vperm.xlu0 %4550, %v4497
          %v4552 = vpop.permute.xlu0 %4551
          %4555 = vset.pattern.permute.xlu0 0
          %4556 = vperm.xlu0 %4555, %v4498
          %v4557 = vpop.permute.xlu0 %4556
          %4560 = vset.pattern.permute.xlu0 0
          %4561 = vperm.xlu0 %4560, %v4499
          %v4562 = vpop.permute.xlu0 %4561
          %4565 = vset.pattern.permute.xlu0 0
          %4566 = vperm.xlu0 %4565, %v4500
          %v4567 = vpop.permute.xlu0 %4566
          %4570 = vset.pattern.permute.xlu0 0
          %4571 = vperm.xlu0 %4570, %v4501
          %v4572 = vpop.permute.xlu0 %4571
          %4575 = vset.pattern.permute.xlu0 0
          %4576 = vperm.xlu0 %4575, %v4502
          %v4577 = vpop.permute.xlu0 %4576
          %4580 = vset.pattern.permute.xlu0 0
          %4581 = vperm.xlu0 %4580, %v4503
          %v4582 = vpop.permute.xlu0 %4581
          %v4584 = vmul.f32 %v4456, %v4507
          %v4585 = vmul.f32 %v4457, %v4512
          %v4586 = vmul.f32 %v4458, %v4517
          %v4587 = vmul.f32 %v4459, %v4522
          %v4588 = vmul.f32 %v4460, %v4527
          %v4589 = vmul.f32 %v4461, %v4532
          %v4590 = vmul.f32 %v4462, %v4537
          %v4591 = vmul.f32 %v4463, %v4542
          %v4592 = vmul.f32 %v4464, %v4547
          %v4593 = vmul.f32 %v4465, %v4552
          %v4594 = vmul.f32 %v4466, %v4557
          %v4595 = vmul.f32 %v4467, %v4562
          %v4596 = vmul.f32 %v4468, %v4567
          %v4597 = vmul.f32 %v4469, %v4572
          %v4598 = vmul.f32 %v4470, %v4577
          %v4599 = vmul.f32 %v4471, %v4582
          %v4600 = vld [vmem:[%s2 + $0x8] sm:$0xff]
          %v4601 = vld [vmem:[%s2 + $0x28] sm:$0xff]
          %v4602 = vld [vmem:[%s2 + $0x48] sm:$0xff]
          %v4603 = vld [vmem:[%s2 + $0x68] sm:$0xff]
          %4604 = vmatprep.subr.mxu0 0.0
          %4605 = vmatpush1.xpose.msra.mxu0 %v4584
          %4606 = vmatprep.subr.mxu0 0.0
          %4607 = vmatpush1.xpose.msra.mxu0 %v4585
          %4608 = vmatprep.subr.mxu0 0.0
          %4609 = vmatpush1.xpose.msra.mxu0 %v4586
          %4610 = vmatprep.subr.mxu0 0.0
          %4611 = vmatpush1.xpose.msra.mxu0 %v4587
          %4612 = vmatprep.subr.mxu0 0.0
          %4613 = vmatpush1.xpose.msra.mxu0 %v4588
          %4614 = vmatprep.subr.mxu0 0.0
          %4615 = vmatpush1.xpose.msra.mxu0 %v4589
          %4616 = vmatprep.subr.mxu0 0.0
          %4617 = vmatpush1.xpose.msra.mxu0 %v4590
          %4618 = vmatprep.subr.mxu0 0.0
          %4619 = vmatpush1.xpose.msra.mxu0 %v4591
          %4620 = vmatprep.subr.mxu0 0.0
          %4621 = vmatpush1.xpose.msra.mxu0 %v4592
          %4622 = vmatprep.subr.mxu0 0.0
          %4623 = vmatpush1.xpose.msra.mxu0 %v4593
          %4624 = vmatprep.subr.mxu0 0.0
          %4625 = vmatpush1.xpose.msra.mxu0 %v4594
          %4626 = vmatprep.subr.mxu0 0.0
          %4627 = vmatpush1.xpose.msra.mxu0 %v4595
          %4628 = vmatprep.subr.mxu0 0.0
          %4629 = vmatpush1.xpose.msra.mxu0 %v4596
          %4630 = vmatprep.subr.mxu0 0.0
          %4631 = vmatpush1.xpose.msra.mxu0 %v4597
          %4632 = vmatprep.subr.mxu0 0.0
          %4633 = vmatpush1.xpose.msra.mxu0 %v4598
          %4634 = vmatprep.subr.mxu0 0.0
          %4635 = vmatpush1.xpose.msra.mxu0 %v4599
          %4636 = vmatprep.subr.mxu0 0.0
          %4637 = vmatpush1.xpose.msra.mxu0 0.0
          %4638 = vmatprep.subr.mxu0 0.0
          %4639 = vmatpush1.xpose.msra.mxu0 0.0
          %4640 = vmatprep.subr.mxu0 0.0
          %4641 = vmatpush1.xpose.msra.mxu0 0.0
          %4642 = vmatprep.subr.mxu0 0.0
          %4643 = vmatpush1.xpose.msra.mxu0 0.0
          %4644 = vmatprep.subr.mxu0 0.0
          %4645 = vmatpush1.xpose.msra.mxu0 0.0
          %4646 = vmatprep.subr.mxu0 0.0
          %4647 = vmatpush1.xpose.msra.mxu0 0.0
          %4648 = vmatprep.subr.mxu0 0.0
          %4649 = vmatpush1.xpose.msra.mxu0 0.0
          %4650 = vmatprep.subr.mxu0 0.0
          %4651 = vmatpush1.xpose.msra.mxu0 0.0
          %4652 = vmatprep.subr.mxu0 0.0
          %4653 = vmatpush1.xpose.msra.mxu0 0.0
          %4654 = vmatprep.subr.mxu0 0.0
          %4655 = vmatpush1.xpose.msra.mxu0 0.0
          %4656 = vmatprep.subr.mxu0 0.0
          %4657 = vmatpush1.xpose.msra.mxu0 0.0
          %4658 = vmatprep.subr.mxu0 0.0
          %4659 = vmatpush1.xpose.msra.mxu0 0.0
          %4660 = vmatprep.subr.mxu0 0.0
          %4661 = vmatpush1.xpose.msra.mxu0 0.0
          %4662 = vmatprep.subr.mxu0 0.0
          %4663 = vmatpush1.xpose.msra.mxu0 0.0
          %4664 = vmatprep.subr.mxu0 0.0
          %4665 = vmatpush1.xpose.msra.mxu0 0.0
          %4666 = vmatprep.subr.mxu0 0.0
          %4667 = vmatpush1.xpose.msra.mxu0 0.0
          %4668 = vmatprep.mubr.f32.mxu0 0.0
          %4669 = vmatmul.mubr.f32.gmra.mrb[0].mxu0 %v4600
          %v4670 = vpop.f32.mrb[0].mxu0
          %v4671 = vadd.f32 0.0, %v4670
          %v4672 = vpop.f32.mrb[0].mxu0
          %4673 = vmatprep.mubr.f32.mxu0 0.0
          %4674 = vmatmul.mubr.f32.gmra.mrb[0].mxu0 %v4601
          %v4675 = vpop.f32.mrb[0].mxu0
          %v4676 = vadd.f32 0.0, %v4675
          %v4677 = vpop.f32.mrb[0].mxu0
          %4678 = vmatprep.mubr.f32.mxu0 0.0
          %4679 = vmatmul.mubr.f32.gmra.mrb[0].mxu0 %v4602
          %v4680 = vpop.f32.mrb[0].mxu0
          %v4681 = vadd.f32 0.0, %v4680
          %v4682 = vpop.f32.mrb[0].mxu0
          %4683 = vmatprep.mubr.f32.mxu0 0.0
          %4684 = vmatmul.mubr.f32.gmra.mrb[0].mxu0 %v4603
          %v4685 = vpop.f32.mrb[0].mxu0
          %v4686 = vadd.f32 0.0, %v4685
          %v4687 = vpop.f32.mrb[0].mxu0
          %4688 = vdwg.mxu0
          %4689 = vst [vmem:[%s230 + $0x8] sm:$0xff] %v4671
          %4690 = vst [vmem:[%s230 + $0x28] sm:$0xff] %v4676
          %4691 = vst [vmem:[%s230 + $0x48] sm:$0xff] %v4681
          %4692 = vst [vmem:[%s230 + $0x68] sm:$0xff] %v4686
          %v4693 = vld [vmem:[#allocation4 + $0x100] sm:$0xff]
          %v4694 = vld [vmem:[#allocation4 + $0x108] sm:$0xff]
          %v4695 = vld [vmem:[#allocation4 + $0x110] sm:$0xff]
          %v4696 = vld [vmem:[#allocation4 + $0x118] sm:$0xff]
          %v4697 = vld [vmem:[#allocation4 + $0x120] sm:$0xff]
          %v4698 = vld [vmem:[#allocation4 + $0x128] sm:$0xff]
          %v4699 = vld [vmem:[#allocation4 + $0x130] sm:$0xff]
          %v4700 = vld [vmem:[#allocation4 + $0x138] sm:$0xff]
          %v4701 = vld [vmem:[#allocation4 + $0x140] sm:$0xff]
          %v4702 = vld [vmem:[#allocation4 + $0x148] sm:$0xff]
          %v4703 = vld [vmem:[#allocation4 + $0x150] sm:$0xff]
          %v4704 = vld [vmem:[#allocation4 + $0x158] sm:$0xff]
          %v4705 = vld [vmem:[#allocation4 + $0x160] sm:$0xff]
          %v4706 = vld [vmem:[#allocation4 + $0x168] sm:$0xff]
          %v4707 = vld [vmem:[#allocation4 + $0x170] sm:$0xff]
          %v4708 = vld [vmem:[#allocation4 + $0x178] sm:$0xff]
          %v4709 = vld [vmem:[#allocation3 + $0x100] sm:$0xff]
          %v4710 = vld [vmem:[#allocation3 + $0x108] sm:$0xff]
          %v4711 = vld [vmem:[#allocation3 + $0x110] sm:$0xff]
          %v4712 = vld [vmem:[#allocation3 + $0x118] sm:$0xff]
          %v4713 = vld [vmem:[#allocation3 + $0x120] sm:$0xff]
          %v4714 = vld [vmem:[#allocation3 + $0x128] sm:$0xff]
          %v4715 = vld [vmem:[#allocation3 + $0x130] sm:$0xff]
          %v4716 = vld [vmem:[#allocation3 + $0x138] sm:$0xff]
          %v4717 = vld [vmem:[#allocation3 + $0x140] sm:$0xff]
          %v4718 = vld [vmem:[#allocation3 + $0x148] sm:$0xff]
          %v4719 = vld [vmem:[#allocation3 + $0x150] sm:$0xff]
          %v4720 = vld [vmem:[#allocation3 + $0x158] sm:$0xff]
          %v4721 = vld [vmem:[#allocation3 + $0x160] sm:$0xff]
          %v4722 = vld [vmem:[#allocation3 + $0x168] sm:$0xff]
          %v4723 = vld [vmem:[#allocation3 + $0x170] sm:$0xff]
          %v4724 = vld [vmem:[#allocation3 + $0x178] sm:$0xff]
          %v4725 = vrcp.pop %v4709
          %v4726 = vrcp.pop %v4710
          %v4727 = vrcp.pop %v4711
          %v4728 = vrcp.pop %v4712
          %v4729 = vrcp.pop %v4713
          %v4730 = vrcp.pop %v4714
          %v4731 = vrcp.pop %v4715
          %v4732 = vrcp.pop %v4716
          %v4733 = vrcp.pop %v4717
          %v4734 = vrcp.pop %v4718
          %v4735 = vrcp.pop %v4719
          %v4736 = vrcp.pop %v4720
          %v4737 = vrcp.pop %v4721
          %v4738 = vrcp.pop %v4722
          %v4739 = vrcp.pop %v4723
          %v4740 = vrcp.pop %v4724
          %4742 = vset.pattern.permute.xlu0 0
          %4743 = vperm.xlu0 %4742, %v4725
          %v4744 = vpop.permute.xlu0 %4743
          %4747 = vset.pattern.permute.xlu0 0
          %4748 = vperm.xlu0 %4747, %v4726
          %v4749 = vpop.permute.xlu0 %4748
          %4752 = vset.pattern.permute.xlu0 0
          %4753 = vperm.xlu0 %4752, %v4727
          %v4754 = vpop.permute.xlu0 %4753
          %4757 = vset.pattern.permute.xlu0 0
          %4758 = vperm.xlu0 %4757, %v4728
          %v4759 = vpop.permute.xlu0 %4758
          %4762 = vset.pattern.permute.xlu0 0
          %4763 = vperm.xlu0 %4762, %v4729
          %v4764 = vpop.permute.xlu0 %4763
          %4767 = vset.pattern.permute.xlu0 0
          %4768 = vperm.xlu0 %4767, %v4730
          %v4769 = vpop.permute.xlu0 %4768
          %4772 = vset.pattern.permute.xlu0 0
          %4773 = vperm.xlu0 %4772, %v4731
          %v4774 = vpop.permute.xlu0 %4773
          %4777 = vset.pattern.permute.xlu0 0
          %4778 = vperm.xlu0 %4777, %v4732
          %v4779 = vpop.permute.xlu0 %4778
          %4782 = vset.pattern.permute.xlu0 0
          %4783 = vperm.xlu0 %4782, %v4733
          %v4784 = vpop.permute.xlu0 %4783
          %4787 = vset.pattern.permute.xlu0 0
          %4788 = vperm.xlu0 %4787, %v4734
          %v4789 = vpop.permute.xlu0 %4788
          %4792 = vset.pattern.permute.xlu0 0
          %4793 = vperm.xlu0 %4792, %v4735
          %v4794 = vpop.permute.xlu0 %4793
          %4797 = vset.pattern.permute.xlu0 0
          %4798 = vperm.xlu0 %4797, %v4736
          %v4799 = vpop.permute.xlu0 %4798
          %4802 = vset.pattern.permute.xlu0 0
          %4803 = vperm.xlu0 %4802, %v4737
          %v4804 = vpop.permute.xlu0 %4803
          %4807 = vset.pattern.permute.xlu0 0
          %4808 = vperm.xlu0 %4807, %v4738
          %v4809 = vpop.permute.xlu0 %4808
          %4812 = vset.pattern.permute.xlu0 0
          %4813 = vperm.xlu0 %4812, %v4739
          %v4814 = vpop.permute.xlu0 %4813
          %4817 = vset.pattern.permute.xlu0 0
          %4818 = vperm.xlu0 %4817, %v4740
          %v4819 = vpop.permute.xlu0 %4818
          %v4821 = vmul.f32 %v4693, %v4744
          %v4822 = vmul.f32 %v4694, %v4749
          %v4823 = vmul.f32 %v4695, %v4754
          %v4824 = vmul.f32 %v4696, %v4759
          %v4825 = vmul.f32 %v4697, %v4764
          %v4826 = vmul.f32 %v4698, %v4769
          %v4827 = vmul.f32 %v4699, %v4774
          %v4828 = vmul.f32 %v4700, %v4779
          %v4829 = vmul.f32 %v4701, %v4784
          %v4830 = vmul.f32 %v4702, %v4789
          %v4831 = vmul.f32 %v4703, %v4794
          %v4832 = vmul.f32 %v4704, %v4799
          %v4833 = vmul.f32 %v4705, %v4804
          %v4834 = vmul.f32 %v4706, %v4809
          %v4835 = vmul.f32 %v4707, %v4814
          %v4836 = vmul.f32 %v4708, %v4819
          %v4837 = vld [vmem:[%s2 + $0x10] sm:$0xff]
          %v4838 = vld [vmem:[%s2 + $0x30] sm:$0xff]
          %v4839 = vld [vmem:[%s2 + $0x50] sm:$0xff]
          %v4840 = vld [vmem:[%s2 + $0x70] sm:$0xff]
          %4841 = vmatprep.subr.mxu0 0.0
          %4842 = vmatpush1.xpose.msra.mxu0 %v4821
          %4843 = vmatprep.subr.mxu0 0.0
          %4844 = vmatpush1.xpose.msra.mxu0 %v4822
          %4845 = vmatprep.subr.mxu0 0.0
          %4846 = vmatpush1.xpose.msra.mxu0 %v4823
          %4847 = vmatprep.subr.mxu0 0.0
          %4848 = vmatpush1.xpose.msra.mxu0 %v4824
          %4849 = vmatprep.subr.mxu0 0.0
          %4850 = vmatpush1.xpose.msra.mxu0 %v4825
          %4851 = vmatprep.subr.mxu0 0.0
          %4852 = vmatpush1.xpose.msra.mxu0 %v4826
          %4853 = vmatprep.subr.mxu0 0.0
          %4854 = vmatpush1.xpose.msra.mxu0 %v4827
          %4855 = vmatprep.subr.mxu0 0.0
          %4856 = vmatpush1.xpose.msra.mxu0 %v4828
          %4857 = vmatprep.subr.mxu0 0.0
          %4858 = vmatpush1.xpose.msra.mxu0 %v4829
          %4859 = vmatprep.subr.mxu0 0.0
          %4860 = vmatpush1.xpose.msra.mxu0 %v4830
          %4861 = vmatprep.subr.mxu0 0.0
          %4862 = vmatpush1.xpose.msra.mxu0 %v4831
          %4863 = vmatprep.subr.mxu0 0.0
          %4864 = vmatpush1.xpose.msra.mxu0 %v4832
          %4865 = vmatprep.subr.mxu0 0.0
          %4866 = vmatpush1.xpose.msra.mxu0 %v4833
          %4867 = vmatprep.subr.mxu0 0.0
          %4868 = vmatpush1.xpose.msra.mxu0 %v4834
          %4869 = vmatprep.subr.mxu0 0.0
          %4870 = vmatpush1.xpose.msra.mxu0 %v4835
          %4871 = vmatprep.subr.mxu0 0.0
          %4872 = vmatpush1.xpose.msra.mxu0 %v4836
          %4873 = vmatprep.subr.mxu0 0.0
          %4874 = vmatpush1.xpose.msra.mxu0 0.0
          %4875 = vmatprep.subr.mxu0 0.0
          %4876 = vmatpush1.xpose.msra.mxu0 0.0
          %4877 = vmatprep.subr.mxu0 0.0
          %4878 = vmatpush1.xpose.msra.mxu0 0.0
          %4879 = vmatprep.subr.mxu0 0.0
          %4880 = vmatpush1.xpose.msra.mxu0 0.0
          %4881 = vmatprep.subr.mxu0 0.0
          %4882 = vmatpush1.xpose.msra.mxu0 0.0
          %4883 = vmatprep.subr.mxu0 0.0
          %4884 = vmatpush1.xpose.msra.mxu0 0.0
          %4885 = vmatprep.subr.mxu0 0.0
          %4886 = vmatpush1.xpose.msra.mxu0 0.0
          %4887 = vmatprep.subr.mxu0 0.0
          %4888 = vmatpush1.xpose.msra.mxu0 0.0
          %4889 = vmatprep.subr.mxu0 0.0
          %4890 = vmatpush1.xpose.msra.mxu0 0.0
          %4891 = vmatprep.subr.mxu0 0.0
          %4892 = vmatpush1.xpose.msra.mxu0 0.0
          %4893 = vmatprep.subr.mxu0 0.0
          %4894 = vmatpush1.xpose.msra.mxu0 0.0
          %4895 = vmatprep.subr.mxu0 0.0
          %4896 = vmatpush1.xpose.msra.mxu0 0.0
          %4897 = vmatprep.subr.mxu0 0.0
          %4898 = vmatpush1.xpose.msra.mxu0 0.0
          %4899 = vmatprep.subr.mxu0 0.0
          %4900 = vmatpush1.xpose.msra.mxu0 0.0
          %4901 = vmatprep.subr.mxu0 0.0
          %4902 = vmatpush1.xpose.msra.mxu0 0.0
          %4903 = vmatprep.subr.mxu0 0.0
          %4904 = vmatpush1.xpose.msra.mxu0 0.0
          %4905 = vmatprep.mubr.f32.mxu0 0.0
          %4906 = vmatmul.mubr.f32.gmra.mrb[0].mxu0 %v4837
          %v4907 = vpop.f32.mrb[0].mxu0
          %v4908 = vadd.f32 0.0, %v4907
          %v4909 = vpop.f32.mrb[0].mxu0
          %4910 = vmatprep.mubr.f32.mxu0 0.0
          %4911 = vmatmul.mubr.f32.gmra.mrb[0].mxu0 %v4838
          %v4912 = vpop.f32.mrb[0].mxu0
          %v4913 = vadd.f32 0.0, %v4912
          %v4914 = vpop.f32.mrb[0].mxu0
          %4915 = vmatprep.mubr.f32.mxu0 0.0
          %4916 = vmatmul.mubr.f32.gmra.mrb[0].mxu0 %v4839
          %v4917 = vpop.f32.mrb[0].mxu0
          %v4918 = vadd.f32 0.0, %v4917
          %v4919 = vpop.f32.mrb[0].mxu0
          %4920 = vmatprep.mubr.f32.mxu0 0.0
          %4921 = vmatmul.mubr.f32.gmra.mrb[0].mxu0 %v4840
          %v4922 = vpop.f32.mrb[0].mxu0
          %v4923 = vadd.f32 0.0, %v4922
          %v4924 = vpop.f32.mrb[0].mxu0
          %4925 = vdwg.mxu0
          %4926 = vst [vmem:[%s230 + $0x10] sm:$0xff] %v4908
          %4927 = vst [vmem:[%s230 + $0x30] sm:$0xff] %v4913
          %4928 = vst [vmem:[%s230 + $0x50] sm:$0xff] %v4918
          %4929 = vst [vmem:[%s230 + $0x70] sm:$0xff] %v4923
          %v4930 = vld [vmem:[#allocation4 + $0x180] sm:$0xff]
          %v4931 = vld [vmem:[#allocation4 + $0x188] sm:$0xff]
          %v4932 = vld [vmem:[#allocation4 + $0x190] sm:$0xff]
          %v4933 = vld [vmem:[#allocation4 + $0x198] sm:$0xff]
          %v4934 = vld [vmem:[#allocation4 + $0x1a0] sm:$0xff]
          %v4935 = vld [vmem:[#allocation4 + $0x1a8] sm:$0xff]
          %v4936 = vld [vmem:[#allocation4 + $0x1b0] sm:$0xff]
          %v4937 = vld [vmem:[#allocation4 + $0x1b8] sm:$0xff]
          %v4938 = vld [vmem:[#allocation4 + $0x1c0] sm:$0xff]
          %v4939 = vld [vmem:[#allocation4 + $0x1c8] sm:$0xff]
          %v4940 = vld [vmem:[#allocation4 + $0x1d0] sm:$0xff]
          %v4941 = vld [vmem:[#allocation4 + $0x1d8] sm:$0xff]
          %v4942 = vld [vmem:[#allocation4 + $0x1e0] sm:$0xff]
          %v4943 = vld [vmem:[#allocation4 + $0x1e8] sm:$0xff]
          %v4944 = vld [vmem:[#allocation4 + $0x1f0] sm:$0xff]
          %v4945 = vld [vmem:[#allocation4 + $0x1f8] sm:$0xff]
          %v4946 = vld [vmem:[#allocation3 + $0x180] sm:$0xff]
          %v4947 = vld [vmem:[#allocation3 + $0x188] sm:$0xff]
          %v4948 = vld [vmem:[#allocation3 + $0x190] sm:$0xff]
          %v4949 = vld [vmem:[#allocation3 + $0x198] sm:$0xff]
          %v4950 = vld [vmem:[#allocation3 + $0x1a0] sm:$0xff]
          %v4951 = vld [vmem:[#allocation3 + $0x1a8] sm:$0xff]
          %v4952 = vld [vmem:[#allocation3 + $0x1b0] sm:$0xff]
          %v4953 = vld [vmem:[#allocation3 + $0x1b8] sm:$0xff]
          %v4954 = vld [vmem:[#allocation3 + $0x1c0] sm:$0xff]
          %v4955 = vld [vmem:[#allocation3 + $0x1c8] sm:$0xff]
          %v4956 = vld [vmem:[#allocation3 + $0x1d0] sm:$0xff]
          %v4957 = vld [vmem:[#allocation3 + $0x1d8] sm:$0xff]
          %v4958 = vld [vmem:[#allocation3 + $0x1e0] sm:$0xff]
          %v4959 = vld [vmem:[#allocation3 + $0x1e8] sm:$0xff]
          %v4960 = vld [vmem:[#allocation3 + $0x1f0] sm:$0xff]
          %v4961 = vld [vmem:[#allocation3 + $0x1f8] sm:$0xff]
          %v4962 = vrcp.pop %v4946
          %v4963 = vrcp.pop %v4947
          %v4964 = vrcp.pop %v4948
          %v4965 = vrcp.pop %v4949
          %v4966 = vrcp.pop %v4950
          %v4967 = vrcp.pop %v4951
          %v4968 = vrcp.pop %v4952
          %v4969 = vrcp.pop %v4953
          %v4970 = vrcp.pop %v4954
          %v4971 = vrcp.pop %v4955
          %v4972 = vrcp.pop %v4956
          %v4973 = vrcp.pop %v4957
          %v4974 = vrcp.pop %v4958
          %v4975 = vrcp.pop %v4959
          %v4976 = vrcp.pop %v4960
          %v4977 = vrcp.pop %v4961
          %4979 = vset.pattern.permute.xlu0 0
          %4980 = vperm.xlu0 %4979, %v4962
          %v4981 = vpop.permute.xlu0 %4980
          %4984 = vset.pattern.permute.xlu0 0
          %4985 = vperm.xlu0 %4984, %v4963
          %v4986 = vpop.permute.xlu0 %4985
          %4989 = vset.pattern.permute.xlu0 0
          %4990 = vperm.xlu0 %4989, %v4964
          %v4991 = vpop.permute.xlu0 %4990
          %4994 = vset.pattern.permute.xlu0 0
          %4995 = vperm.xlu0 %4994, %v4965
          %v4996 = vpop.permute.xlu0 %4995
          %4999 = vset.pattern.permute.xlu0 0
          %5000 = vperm.xlu0 %4999, %v4966
          %v5001 = vpop.permute.xlu0 %5000
          %5004 = vset.pattern.permute.xlu0 0
          %5005 = vperm.xlu0 %5004, %v4967
          %v5006 = vpop.permute.xlu0 %5005
          %5009 = vset.pattern.permute.xlu0 0
          %5010 = vperm.xlu0 %5009, %v4968
          %v5011 = vpop.permute.xlu0 %5010
          %5014 = vset.pattern.permute.xlu0 0
          %5015 = vperm.xlu0 %5014, %v4969
          %v5016 = vpop.permute.xlu0 %5015
          %5019 = vset.pattern.permute.xlu0 0
          %5020 = vperm.xlu0 %5019, %v4970
          %v5021 = vpop.permute.xlu0 %5020
          %5024 = vset.pattern.permute.xlu0 0
          %5025 = vperm.xlu0 %5024, %v4971
          %v5026 = vpop.permute.xlu0 %5025
          %5029 = vset.pattern.permute.xlu0 0
          %5030 = vperm.xlu0 %5029, %v4972
          %v5031 = vpop.permute.xlu0 %5030
          %5034 = vset.pattern.permute.xlu0 0
          %5035 = vperm.xlu0 %5034, %v4973
          %v5036 = vpop.permute.xlu0 %5035
          %5039 = vset.pattern.permute.xlu0 0
          %5040 = vperm.xlu0 %5039, %v4974
          %v5041 = vpop.permute.xlu0 %5040
          %5044 = vset.pattern.permute.xlu0 0
          %5045 = vperm.xlu0 %5044, %v4975
          %v5046 = vpop.permute.xlu0 %5045
          %5049 = vset.pattern.permute.xlu0 0
          %5050 = vperm.xlu0 %5049, %v4976
          %v5051 = vpop.permute.xlu0 %5050
          %5054 = vset.pattern.permute.xlu0 0
          %5055 = vperm.xlu0 %5054, %v4977
          %v5056 = vpop.permute.xlu0 %5055
          %v5058 = vmul.f32 %v4930, %v4981
          %v5059 = vmul.f32 %v4931, %v4986
          %v5060 = vmul.f32 %v4932, %v4991
          %v5061 = vmul.f32 %v4933, %v4996
          %v5062 = vmul.f32 %v4934, %v5001
          %v5063 = vmul.f32 %v4935, %v5006
          %v5064 = vmul.f32 %v4936, %v5011
          %v5065 = vmul.f32 %v4937, %v5016
          %v5066 = vmul.f32 %v4938, %v5021
          %v5067 = vmul.f32 %v4939, %v5026
          %v5068 = vmul.f32 %v4940, %v5031
          %v5069 = vmul.f32 %v4941, %v5036
          %v5070 = vmul.f32 %v4942, %v5041
          %v5071 = vmul.f32 %v4943, %v5046
          %v5072 = vmul.f32 %v4944, %v5051
          %v5073 = vmul.f32 %v4945, %v5056
          %v5074 = vld [vmem:[%s2 + $0x18] sm:$0xff]
          %v5075 = vld [vmem:[%s2 + $0x38] sm:$0xff]
          %v5076 = vld [vmem:[%s2 + $0x58] sm:$0xff]
          %v5077 = vld [vmem:[%s2 + $0x78] sm:$0xff]
          %5078 = vmatprep.subr.mxu0 0.0
          %5079 = vmatpush1.xpose.msra.mxu0 %v5058
          %5080 = vmatprep.subr.mxu0 0.0
          %5081 = vmatpush1.xpose.msra.mxu0 %v5059
          %5082 = vmatprep.subr.mxu0 0.0
          %5083 = vmatpush1.xpose.msra.mxu0 %v5060
          %5084 = vmatprep.subr.mxu0 0.0
          %5085 = vmatpush1.xpose.msra.mxu0 %v5061
          %5086 = vmatprep.subr.mxu0 0.0
          %5087 = vmatpush1.xpose.msra.mxu0 %v5062
          %5088 = vmatprep.subr.mxu0 0.0
          %5089 = vmatpush1.xpose.msra.mxu0 %v5063
          %5090 = vmatprep.subr.mxu0 0.0
          %5091 = vmatpush1.xpose.msra.mxu0 %v5064
          %5092 = vmatprep.subr.mxu0 0.0
          %5093 = vmatpush1.xpose.msra.mxu0 %v5065
          %5094 = vmatprep.subr.mxu0 0.0
          %5095 = vmatpush1.xpose.msra.mxu0 %v5066
          %5096 = vmatprep.subr.mxu0 0.0
          %5097 = vmatpush1.xpose.msra.mxu0 %v5067
          %5098 = vmatprep.subr.mxu0 0.0
          %5099 = vmatpush1.xpose.msra.mxu0 %v5068
          %5100 = vmatprep.subr.mxu0 0.0
          %5101 = vmatpush1.xpose.msra.mxu0 %v5069
          %5102 = vmatprep.subr.mxu0 0.0
          %5103 = vmatpush1.xpose.msra.mxu0 %v5070
          %5104 = vmatprep.subr.mxu0 0.0
          %5105 = vmatpush1.xpose.msra.mxu0 %v5071
          %5106 = vmatprep.subr.mxu0 0.0
          %5107 = vmatpush1.xpose.msra.mxu0 %v5072
          %5108 = vmatprep.subr.mxu0 0.0
          %5109 = vmatpush1.xpose.msra.mxu0 %v5073
          %5110 = vmatprep.subr.mxu0 0.0
          %5111 = vmatpush1.xpose.msra.mxu0 0.0
          %5112 = vmatprep.subr.mxu0 0.0
          %5113 = vmatpush1.xpose.msra.mxu0 0.0
          %5114 = vmatprep.subr.mxu0 0.0
          %5115 = vmatpush1.xpose.msra.mxu0 0.0
          %5116 = vmatprep.subr.mxu0 0.0
          %5117 = vmatpush1.xpose.msra.mxu0 0.0
          %5118 = vmatprep.subr.mxu0 0.0
          %5119 = vmatpush1.xpose.msra.mxu0 0.0
          %5120 = vmatprep.subr.mxu0 0.0
          %5121 = vmatpush1.xpose.msra.mxu0 0.0
          %5122 = vmatprep.subr.mxu0 0.0
          %5123 = vmatpush1.xpose.msra.mxu0 0.0
          %5124 = vmatprep.subr.mxu0 0.0
          %5125 = vmatpush1.xpose.msra.mxu0 0.0
          %5126 = vmatprep.subr.mxu0 0.0
          %5127 = vmatpush1.xpose.msra.mxu0 0.0
          %5128 = vmatprep.subr.mxu0 0.0
          %5129 = vmatpush1.xpose.msra.mxu0 0.0
          %5130 = vmatprep.subr.mxu0 0.0
          %5131 = vmatpush1.xpose.msra.mxu0 0.0
          %5132 = vmatprep.subr.mxu0 0.0
          %5133 = vmatpush1.xpose.msra.mxu0 0.0
          %5134 = vmatprep.subr.mxu0 0.0
          %5135 = vmatpush1.xpose.msra.mxu0 0.0
          %5136 = vmatprep.subr.mxu0 0.0
          %5137 = vmatpush1.xpose.msra.mxu0 0.0
          %5138 = vmatprep.subr.mxu0 0.0
          %5139 = vmatpush1.xpose.msra.mxu0 0.0
          %5140 = vmatprep.subr.mxu0 0.0
          %5141 = vmatpush1.xpose.msra.mxu0 0.0
          %5142 = vmatprep.mubr.f32.mxu0 0.0
          %5143 = vmatmul.mubr.f32.gmra.mrb[0].mxu0 %v5074
          %v5144 = vpop.f32.mrb[0].mxu0
          %v5145 = vadd.f32 0.0, %v5144
          %v5146 = vpop.f32.mrb[0].mxu0
          %5147 = vmatprep.mubr.f32.mxu0 0.0
          %5148 = vmatmul.mubr.f32.gmra.mrb[0].mxu0 %v5075
          %v5149 = vpop.f32.mrb[0].mxu0
          %v5150 = vadd.f32 0.0, %v5149
          %v5151 = vpop.f32.mrb[0].mxu0
          %5152 = vmatprep.mubr.f32.mxu0 0.0
          %5153 = vmatmul.mubr.f32.gmra.mrb[0].mxu0 %v5076
          %v5154 = vpop.f32.mrb[0].mxu0
          %v5155 = vadd.f32 0.0, %v5154
          %v5156 = vpop.f32.mrb[0].mxu0
          %5157 = vmatprep.mubr.f32.mxu0 0.0
          %5158 = vmatmul.mubr.f32.gmra.mrb[0].mxu0 %v5077
          %v5159 = vpop.f32.mrb[0].mxu0
          %v5160 = vadd.f32 0.0, %v5159
          %v5161 = vpop.f32.mrb[0].mxu0
          %5162 = vdwg.mxu0
          %5163 = vst [vmem:[%s230 + $0x18] sm:$0xff] %v5145
          %5164 = vst [vmem:[%s230 + $0x38] sm:$0xff] %v5150
          %5165 = vst [vmem:[%s230 + $0x58] sm:$0xff] %v5155
          %5166 = vst [vmem:[%s230 + $0x78] sm:$0xff] %v5160
        $region78: #{tpu_custom_call.1} parent=65 // pred_fallthru
          _
        %s5167 = sand.u32 %s107, 1
        %s5168 = scalar_lea.sflag [#allocation7], %s5167
        %s5169 = sand.u32 %s107, 1
        %s5170 = smul.addr %s5169, 128
        %s5171 = scalar_lea.vmem [#allocation6], %s5170
        // Predicated region
        $region79: #{tpu_custom_call.1} parent=65 // pred_check
          %p5172 = pneg %p117
        $region80: #{tpu_custom_call.1} parent=65 // pred_check_branch
          %5174 = sbr.rel (%p5172) target = $region82
        $region81: #{tpu_custom_call.1} parent=65 // pred_region
          %s5176 = ssub.s32 2048, 2048
          %5177 = vsyncadd %s5168, %s5176
          %s5178 = smul.addr %s21, 16
          %s5179 = smul.addr %s5178, 128
          %s5180 = scalar_lea.hbm %s3, %s5179
          %s5181 = sshll.u32 %s5171, 4
          %s5182 = int_to_ptr.vmem [resolvable:$true] %s5181
          %5187 = dma.vmem_to_hbm [thread:$0]  %s5182, 2048, %s5180, %s5168, 512, 512, 32
        $region82: #{tpu_custom_call.1} parent=65 // pred_fallthru
          _
      $region66: #{tpu_custom_call.1} parent=5 // pred_fallthru
        _
      %p5188 = scmp.le.s32.totalorder 2, %s12
      // Predicated region
      $region83: #{tpu_custom_call.1} parent=5 // pred_check
        %p5189 = pneg %p5188
      $region84: #{tpu_custom_call.1} parent=5 // pred_check_branch
        %5191 = sbr.rel (%p5189) target = $region86
      $region85: #{tpu_custom_call.1} parent=5 // pred_region
        %s5192 = ssub.s32 %s12, 2
        // Predicated region
        $region87: #{tpu_custom_call.1} parent=85 // pred_check
          %p5193 = pneg %p123
        $region88: #{tpu_custom_call.1} parent=85 // pred_check_branch
          %5195 = sbr.rel (%p5193) target = $region90
        $region89: #{tpu_custom_call.1} parent=85 // pred_region
          %s5196 = sand.u32 %s108, 1
          %s5197 = scalar_lea.sflag [#allocation7], %s5196
          %s5198 = sand.u32 %s108, 1
          %s5199 = smul.addr %s5198, 128
          %s5200 = scalar_lea.vmem [#allocation6], %s5199
          %5201 = dma.done %s5197, 2048
        $region90: #{tpu_custom_call.1} parent=85 // pred_fallthru
          _
      $region86: #{tpu_custom_call.1} parent=5 // pred_fallthru
        _
    $region6: #{tpu_custom_call.1} parent=1 // loop_footer
      %s16 = sadd.s32 1, %s12
    $region7: #{tpu_custom_call.1} parent=1 // loop_footer_branch
      %11 = sbr.rel target = $region3
    $region8: #{tpu_custom_call.1} parent=1 // loop_exit
      _
    %5202 = vsyncpa [#allocation7], 1
    %s5203 = scalar_lea.sflag [#allocation7], 1
    %5204 = vsyncpa %s5203, 1

</llo_original>
